<compile_context>
chip_gen: v7x
topology: tpu7x:2x2x1
jax: 0.10.0
libtpu: 0.0.40
codegen_flags: <defaults>
</compile_context>

<pallas_src>
import math
from functools import partial

import jax
import jax.numpy as jnp
from jax import lax
from jax.experimental import pallas as pl
from jax.experimental.pallas import tpu as pltpu

_VMEM_LIMIT = 32 * 1024 * 1024   # safe on v5e/v6e (128 MiB) and v7x (64 MiB physical) VMEM


def _round_up(x, m):
    return (x + m - 1) // m * m


def _pick_row_tile(M, cap=4096):
    """Row tile for K1. M is a multiple of 8 here (V padded). Big tiles amortize the
    ~0.35us per-grid-step overhead; split in two once there is enough work so a v7x
    megacore keeps both TensorCores busy (one extra step is negligible on v5e/v6e)."""
    if M <= cap:
        if M >= 1024 and M % 16 == 0:
            return M // 2
        return M
    return cap                      # cap is a multiple of 8; ragged tail handled by Pallas


def _pick_time_tile(T, cap=128):
    return min(T, cap)              # T==full-dim or 128 (multiple of 8); both legal blocks


# ---------------- K1: conv3 matmul + channel-mean projections, shared bf16 x block ----------

def _conv3m_kernel(x_ref, w3_ref, b3_ref, wm_ref, bmean_ref, o3_ref, om_ref):
    xb = x_ref[...]                                            # bf16 (pre-cast in wrapper)
    o3_ref[...] = (jnp.dot(xb, w3_ref[...], preferred_element_type=jnp.float32)
                   + b3_ref[...]).astype(o3_ref.dtype)         # x3 stored in bf16
    # mean_r(conv1/2(x)) == x @ mean_r(w1/2) + mean(b): tiny 2-column projection, same x block
    om_ref[...] = jnp.dot(xb, wm_ref[...], preferred_element_type=jnp.float32) + bmean_ref[...]


def conv3_and_means(x_flat, w3, b3, wm, bmean):
    M, Cin = x_flat.shape
    Cout = w3.shape[1]
    bm = _pick_row_tile(M)
    return pl.pallas_call(
        _conv3m_kernel,
        out_shape=(jax.ShapeDtypeStruct((M, Cout), jnp.bfloat16),
                   jax.ShapeDtypeStruct((M, 2), jnp.float32)),
        grid=(pl.cdiv(M, bm),),
        in_specs=[
            pl.BlockSpec((bm, Cin), lambda i: (i, 0)),
            pl.BlockSpec((Cin, Cout), lambda i: (0, 0)),
            pl.BlockSpec((1, Cout), lambda i: (0, 0)),
            pl.BlockSpec((Cin, 2), lambda i: (0, 0)),
            pl.BlockSpec((1, 2), lambda i: (0, 0)),
        ],
        out_specs=(pl.BlockSpec((bm, Cout), lambda i: (i, 0)),
                   pl.BlockSpec((bm, 2), lambda i: (i, 0))),
        compiler_params=pltpu.CompilerParams(
            dimension_semantics=("parallel",),
            vmem_limit_bytes=_VMEM_LIMIT),
    )(x_flat, w3, b3, wm, bmean)


# ---------------- K3: fused conv4 (once per n, VMEM-resident g) + xt attention + xc path -----
#   att[t,u,v] = tanh(m1t[t,u] - m2t[t,v]) * beta + 2*A[u,v]      (2*A absorbs the xc "+A")
#   g[v,u,c]   = (sum_r d[v,u,r] * w4[r,c] + b4[c]) * alpha       (computed at t==0, reused)
#   out[t,u,c] = sum_v att[t,u,v] * x3[t,v,c]  +  sum_v g[v,u,c] * x3[t,v,c]

def _ctrgc_fused_kernel(m1_ref, m2_ref, a2_ref, x3_ref, d_ref, w4_ref, b4_ref,
                        o_ref, g_ref, *, V, Vp, alpha, beta):
    # conv4(d) * alpha for this batch element; computed once (first time tile) into VMEM
    # scratch and reused by every time tile of the same n — g never hits HBM.
    @pl.when(pl.program_id(1) == 0)
    def _():
        g = jnp.dot(d_ref[0], w4_ref[...], preferred_element_type=jnp.float32)
        g_ref[...] = (g + b4_ref[...]) * alpha                 # (Vp*Vp, Cout), rows = [v, u]

    x3b = x3_ref[0]                                            # (tb, Vp, Cout) bf16

    # xt path: attention + batched MXU contraction over v
    att = (jnp.tanh(m1_ref[0][:, :, None] - m2_ref[0][:, None, :]) * beta
           + a2_ref[...][None, :, :])                          # (tb, Vp, Vp) f32
    vmask = lax.broadcasted_iota(jnp.int32, (1, 1, Vp), 2) < V
    att = jnp.where(vmask, att, 0.0).astype(jnp.bfloat16)      # zero padded-v columns
    acc = lax.dot_general(att, x3b,
                          dimension_numbers=(((2,), (1,)), ((0,), (0,))),
                          preferred_element_type=jnp.float32)  # (tb, Vp, Cout) f32

    # xc path: local accumulator, padded v skipped, single store at the end.
    for v in range(V):
        acc = acc + (x3b[:, v, :].astype(jnp.float32)[:, None, :]
                     * g_ref[v * Vp:(v + 1) * Vp, :][None, :, :])
    o_ref[0] = acc


def ctrgc_fused(m1t, m2t, adj2, x3, dflat, w4, b4, *, V, alpha, beta):
    N, T, Vp = m1t.shape
    Cout = x3.shape[-1]
    R = dflat.shape[-1]
    tb = _pick_time_tile(T)
    return pl.pallas_call(
        partial(_ctrgc_fused_kernel, V=V, Vp=Vp, alpha=alpha, beta=beta),
        out_shape=jax.ShapeDtypeStruct((N, T, Vp, Cout), jnp.float32),
        grid=(N, pl.cdiv(T, tb)),
        in_specs=[
            pl.BlockSpec((1, tb, Vp), lambda n, t: (n, t, 0)),
            pl.BlockSpec((1, tb, Vp), lambda n, t: (n, t, 0)),
            pl.BlockSpec((Vp, Vp), lambda n, t: (0, 0)),
            pl.BlockSpec((1, tb, Vp, Cout), lambda n, t: (n, t, 0, 0)),
            pl.BlockSpec((1, Vp * Vp, R), lambda n, t: (n, 0, 0)),
            pl.BlockSpec((R, Cout), lambda n, t: (0, 0)),
            pl.BlockSpec((1, Cout), lambda n, t: (0, 0)),
        ],
        out_specs=pl.BlockSpec((1, tb, Vp, Cout), lambda n, t: (n, t, 0, 0)),
        scratch_shapes=[pltpu.VMEM((Vp * Vp, Cout), jnp.float32)],
        compiler_params=pltpu.CompilerParams(
            dimension_semantics=("parallel", "arbitrary"),   # t is arbitrary: g scratch reuse
            vmem_limit_bytes=_VMEM_LIMIT),
    )(m1t, m2t, adj2, x3, dflat, w4, b4)


# ---------------- CTRGC forward (JAX glue around the two kernels) ----------------------------

@partial(jax.jit, static_argnames=("alpha", "beta"))
def ctrgc_forward(x_nctv, p, adj, alpha=1.0, beta=1.0):
    """Pallas CTRGC forward; input/output in PyTorch NCTV layout."""
    N, Cin, T, V = x_nctv.shape
    R = p['w1'].shape[1]
    Cout = p['w3'].shape[1]
    Vp = _round_up(V, 8)

    # NTVC layout, V zero-padded to a sublane multiple, activations in bf16 (one fused pass).
    x = jnp.transpose(x_nctv, (0, 2, 3, 1)).astype(jnp.bfloat16)
    x = jnp.pad(x, ((0, 0), (0, 0), (0, Vp - V), (0, 0)))                 # (N, T, Vp, Cin)

    # K1 weights: lane-dense conv3 + the 2 channel-mean projection columns (exact rewrite).
    w3b = p['w3'].astype(jnp.bfloat16)
    b3r = p['b3'].reshape(1, Cout).astype(jnp.float32)
    wm = jnp.concatenate([jnp.mean(p['w1'], axis=1, keepdims=True),
                          jnp.mean(p['w2'], axis=1, keepdims=True)],
                         axis=1).astype(jnp.bfloat16)                     # (Cin, 2)
    bmean = jnp.stack([jnp.mean(p['b1']), jnp.mean(p['b2'])]).reshape(1, 2).astype(jnp.float32)

    x3_flat, om = conv3_and_means(x.reshape(N * T * Vp, Cin), w3b, b3r, wm, bmean)
    x3 = x3_flat.reshape(N, T, Vp, Cout)                                  # bf16
    om = om.reshape(N, T, Vp, 2)
    m1t, m2t = om[..., 0], om[..., 1]                                     # (N, T, Vp) f32

    # xc path: time mean of x (tiny), pushed through w1/w2 (mean commutes with the 1x1 conv),
    # tanh outer difference laid out as d[n, v, u, r] so K3's g rows come out [v, u]-ordered.
    xm = jnp.mean(x.astype(jnp.float32), axis=1)                          # (N, Vp, Cin)
    m1c = xm @ p['w1'] + p['b1']                                          # (N, Vp, R)
    m2c = xm @ p['w2'] + p['b2']
    dT = jnp.tanh(m1c[:, None, :, :] - m2c[:, :, None, :])                # (N, Vp, Vp, R)
    dflat = dT.reshape(N, Vp * Vp, R).astype(jnp.bfloat16)

    # 2*A folds the xc-path "+A" into the xt-path attention; pad to (Vp, Vp).
    adj2 = jnp.pad(2.0 * adj.astype(jnp.float32), ((0, Vp - V), (0, Vp - V)))

    out = ctrgc_fused(m1t, m2t, adj2, x3, dflat,
                      p['w4'].astype(jnp.bfloat16),
                      p['b4'].reshape(1, Cout).astype(jnp.float32),
                      V=V, alpha=float(alpha), beta=float(beta))          # (N, T, Vp, Cout)
    out = out[:, :, :V, :]
    return jnp.transpose(out, (0, 3, 1, 2))                               # back to NCTV


# ---------------- Pure-JAX reference (mirrors the PyTorch CTRGC.forward) ---------------------

def ctrgc_reference(x, p, adj, alpha, beta):
    hp = lax.Precision.HIGHEST
    x1 = jnp.einsum('nctv,cr->nrtv', x, p['w1'], precision=hp) + p['b1'][None, :, None, None]
    x2 = jnp.einsum('nctv,cr->nrtv', x, p['w2'], precision=hp) + p['b2'][None, :, None, None]
    x3 = jnp.einsum('nctv,co->notv', x, p['w3'], precision=hp) + p['b3'][None, :, None, None]
    xt = jnp.tanh(x1.mean(1)[..., :, None] - x2.mean(1)[..., None, :])        # (N, T, V, V)
    xt = xt * beta + adj[None, None]
    xt = jnp.einsum('ntuv,nctv->nctu', xt, x3, precision=hp)
    xc = jnp.tanh(x1.mean(2)[..., :, None] - x2.mean(2)[..., None, :])        # (N, R, V, V)
    xc = jnp.einsum('nruv,ro->nouv', xc, p['w4'], precision=hp) + p['b4'][None, :, None, None]
    xc = xc * alpha + adj[None, None]
    xc = jnp.einsum('ncuv,nctv->nctu', xc, x3, precision=hp)
    return xt + xc


if __name__ == "__main__":
    # Small CTRGC: in_channels = out_channels = 64 -> rel_channels = 64 // 8 = 8
    N, Cin, T, V = 2, 64, 16, 15
    Cout = 64
    R = Cin // 8

    key = jax.random.PRNGKey(0)
    k = jax.random.split(key, 6)

    def conv_w(kk, cin, cout):            # kaiming_normal_(mode='fan_out') on a 1x1 conv
        return math.sqrt(2.0 / cout) * jax.random.normal(kk, (cin, cout), jnp.float32)

    params = {
        'w1': conv_w(k[0], Cin, R), 'b1': jnp.zeros((R,), jnp.float32),
        'w2': conv_w(k[1], Cin, R), 'b2': jnp.zeros((R,), jnp.float32),
        'w3': conv_w(k[2], Cin, Cout), 'b3': jnp.zeros((Cout,), jnp.float32),
        'w4': conv_w(k[3], R, Cout), 'b4': jnp.zeros((Cout,), jnp.float32),
    }
    adj = 0.2 * jax.random.normal(k[4], (V, V), jnp.float32)
    x = jax.random.normal(k[5], (N, Cin, T, V), jnp.float32)

    out = ctrgc_forward(x, params, adj, alpha=1.0, beta=1.0)
    out = jax.block_until_ready(out)
    assert out.shape == (N, Cout, T, V), out.shape
    assert bool(jnp.all(jnp.isfinite(out)))

    ref = ctrgc_reference(x, params, adj, 1.0, 1.0)
    # bf16 MXU operands / bf16-stored x3 vs the f32 HIGHEST-precision reference -> loose tol.
    err = float(jnp.max(jnp.abs(out - ref)) / (jnp.max(jnp.abs(ref)) + 1e-6))
    assert err < 5e-2, f"max relative error too large: {err}"
    print("KERNEL_OK")
</pallas_src>

<mosaic_0001>
module attributes {stable_mosaic.version = 11 : i64} {
  func.func @_conv3m_kernel(%arg0: i32, %arg1: memref<512x64xbf16, #tpu.memory_space<vmem>>, %arg2: memref<64x64xbf16, #tpu.memory_space<vmem>>, %arg3: memref<1x64xf32, #tpu.memory_space<vmem>>, %arg4: memref<64x2xbf16, #tpu.memory_space<vmem>>, %arg5: memref<1x2xf32, #tpu.memory_space<vmem>>, %arg6: memref<512x64xbf16, #tpu.memory_space<vmem>>, %arg7: memref<512x2xf32, #tpu.memory_space<vmem>>) attributes {dimension_semantics = [#tpu.dimension_semantics<parallel>], iteration_bounds = array<i64: 1>, scalar_prefetch = 0 : i64, scratch_operands = 0 : i64, tpu.core_type = #tpu.core_type<tc>, window_params = [{transform_indices = @transform_0, window_bounds = array<i64: 512, 64>}, {pipeline_mode = #tpu.pipeline_mode<synchronous>, transform_indices = @transform_1, window_bounds = array<i64: 64, 64>}, {pipeline_mode = #tpu.pipeline_mode<synchronous>, transform_indices = @transform_2, window_bounds = array<i64: 1, 64>}, {pipeline_mode = #tpu.pipeline_mode<synchronous>, transform_indices = @transform_3, window_bounds = array<i64: 64, 2>}, {pipeline_mode = #tpu.pipeline_mode<synchronous>, transform_indices = @transform_4, window_bounds = array<i64: 1, 2>}, {transform_indices = @transform_5, window_bounds = array<i64: 512, 64>}, {transform_indices = @transform_6, window_bounds = array<i64: 512, 2>}]} {
    %c0 = arith.constant 0 : index
    %c0_0 = arith.constant 0 : index
    %0 = vector.load %arg1[%c0, %c0_0] : memref<512x64xbf16, #tpu.memory_space<vmem>>, vector<512x64xbf16>
    %c0_1 = arith.constant 0 : index
    %c0_2 = arith.constant 0 : index
    %1 = vector.load %arg2[%c0_1, %c0_2] : memref<64x64xbf16, #tpu.memory_space<vmem>>, vector<64x64xbf16>
    %cst = arith.constant dense<0.000000e+00> : vector<512x64xf32>
    %2 = tpu.matmul %0, %1, %cst {dimension_numbers = #tpu.dot_dimension_numbers<[1], [0], [0], [1], [0, 0, 1, 1], [], []>} : vector<512x64xbf16>, vector<64x64xbf16>, vector<512x64xf32> -> vector<512x64xf32>
    %c0_3 = arith.constant 0 : index
    %c0_4 = arith.constant 0 : index
    %3 = vector.load %arg3[%c0_3, %c0_4] : memref<1x64xf32, #tpu.memory_space<vmem>>, vector<1x64xf32>
    %4 = vector.broadcast %3 : vector<1x64xf32> to vector<512x64xf32>
    %5 = arith.addf %2, %4 : vector<512x64xf32>
    %6 = arith.truncf %5 : vector<512x64xf32> to vector<512x64xbf16>
    %c0_5 = arith.constant 0 : index
    %c0_6 = arith.constant 0 : index
    %7 = vector.load %arg6[%c0_5, %c0_6] : memref<512x64xbf16, #tpu.memory_space<vmem>>, vector<512x64xbf16>
    tpu.vector_store %arg6[%c0_5, %c0_6], %6 {strides = array<i32>} : memref<512x64xbf16, #tpu.memory_space<vmem>>, vector<512x64xbf16>,
    %c0_7 = arith.constant 0 : index
    %c0_8 = arith.constant 0 : index
    %8 = vector.load %arg4[%c0_7, %c0_8] : memref<64x2xbf16, #tpu.memory_space<vmem>>, vector<64x2xbf16>
    %cst_9 = arith.constant dense<0.000000e+00> : vector<512x2xf32>
    %9 = tpu.matmul %0, %8, %cst_9 {dimension_numbers = #tpu.dot_dimension_numbers<[1], [0], [0], [1], [0, 0, 1, 1], [], []>} : vector<512x64xbf16>, vector<64x2xbf16>, vector<512x2xf32> -> vector<512x2xf32>
    %c0_10 = arith.constant 0 : index
    %c0_11 = arith.constant 0 : index
    %10 = vector.load %arg5[%c0_10, %c0_11] : memref<1x2xf32, #tpu.memory_space<vmem>>, vector<1x2xf32>
    %11 = vector.broadcast %10 : vector<1x2xf32> to vector<512x2xf32>
    %12 = arith.addf %9, %11 : vector<512x2xf32>
    %c0_12 = arith.constant 0 : index
    %c0_13 = arith.constant 0 : index
    %13 = vector.load %arg7[%c0_12, %c0_13] : memref<512x2xf32, #tpu.memory_space<vmem>>, vector<512x2xf32>
    tpu.vector_store %arg7[%c0_12, %c0_13], %12 {strides = array<i32>} : memref<512x2xf32, #tpu.memory_space<vmem>>, vector<512x2xf32>,
    return
  }
  func.func @transform_0(%arg0: i32) -> (i32, i32) {
    %c0_i32 = arith.constant 0 : i32
    %c0_i32_0 = arith.constant 0 : i32
    return %arg0, %c0_i32 : i32, i32
  }
  func.func @transform_1(%arg0: i32) -> (i32, i32) {
    %c0_i32 = arith.constant 0 : i32
    %c0_i32_0 = arith.constant 0 : i32
    %c0_i32_1 = arith.constant 0 : i32
    return %c0_i32, %c0_i32_0 : i32, i32
  }
  func.func @transform_2(%arg0: i32) -> (i32, i32) {
    %c0_i32 = arith.constant 0 : i32
    %c0_i32_0 = arith.constant 0 : i32
    %c0_i32_1 = arith.constant 0 : i32
    return %c0_i32, %c0_i32_0 : i32, i32
  }
  func.func @transform_3(%arg0: i32) -> (i32, i32) {
    %c0_i32 = arith.constant 0 : i32
    %c0_i32_0 = arith.constant 0 : i32
    %c0_i32_1 = arith.constant 0 : i32
    return %c0_i32, %c0_i32_0 : i32, i32
  }
  func.func @transform_4(%arg0: i32) -> (i32, i32) {
    %c0_i32 = arith.constant 0 : i32
    %c0_i32_0 = arith.constant 0 : i32
    %c0_i32_1 = arith.constant 0 : i32
    return %c0_i32, %c0_i32_0 : i32, i32
  }
  func.func @transform_5(%arg0: i32) -> (i32, i32) {
    %c0_i32 = arith.constant 0 : i32
    %c0_i32_0 = arith.constant 0 : i32
    return %arg0, %c0_i32 : i32, i32
  }
  func.func @transform_6(%arg0: i32) -> (i32, i32) {
    %c0_i32 = arith.constant 0 : i32
    %c0_i32_0 = arith.constant 0 : i32
    return %arg0, %c0_i32 : i32, i32
  }
}

module attributes {stable_mosaic.version = 11 : i64} {
  func.func @_ctrgc_fused_kernel(%arg0: i32, %arg1: i32, %arg2: memref<1x16x16xf32, #tpu.memory_space<vmem>>, %arg3: memref<1x16x16xf32, #tpu.memory_space<vmem>>, %arg4: memref<16x16xf32, #tpu.memory_space<vmem>>, %arg5: memref<1x16x16x64xbf16, #tpu.memory_space<vmem>>, %arg6: memref<1x256x8xbf16, #tpu.memory_space<vmem>>, %arg7: memref<8x64xbf16, #tpu.memory_space<vmem>>, %arg8: memref<1x64xf32, #tpu.memory_space<vmem>>, %arg9: memref<1x16x16x64xf32, #tpu.memory_space<vmem>>, %arg10: memref<256x64xf32, #tpu.memory_space<vmem>>) attributes {dimension_semantics = [#tpu.dimension_semantics<parallel>, #tpu.dimension_semantics<arbitrary>], iteration_bounds = array<i64: 2, 1>, scalar_prefetch = 0 : i64, scratch_operands = 1 : i64, tpu.core_type = #tpu.core_type<tc>, window_params = [{transform_indices = @transform_0, window_bounds = array<i64: 1, 16, 16>}, {transform_indices = @transform_1, window_bounds = array<i64: 1, 16, 16>}, {pipeline_mode = #tpu.pipeline_mode<synchronous>, transform_indices = @transform_2, window_bounds = array<i64: 16, 16>}, {transform_indices = @transform_3, window_bounds = array<i64: 1, 16, 16, 64>}, {transform_indices = @transform_4, window_bounds = array<i64: 1, 256, 8>}, {pipeline_mode = #tpu.pipeline_mode<synchronous>, transform_indices = @transform_5, window_bounds = array<i64: 8, 64>}, {pipeline_mode = #tpu.pipeline_mode<synchronous>, transform_indices = @transform_6, window_bounds = array<i64: 1, 64>}, {transform_indices = @transform_7, window_bounds = array<i64: 1, 16, 16, 64>}]} {
    %c0_i32 = arith.constant 0 : i32
    %0 = arith.cmpi eq, %arg1, %c0_i32 : i32
    %1 = arith.extui %0 : i1 to i32
    %c0_i32_0 = arith.constant 0 : i32
    %2 = arith.cmpi ne, %1, %c0_i32_0 : i32
    scf.if %2 {
      %c0_34 = arith.constant 0 : index
      %c0_35 = arith.constant 0 : index
      %c0_36 = arith.constant 0 : index
      %183 = vector.load %arg6[%c0_34, %c0_35, %c0_36] : memref<1x256x8xbf16, #tpu.memory_space<vmem>>, vector<1x256x8xbf16>
      %184 = vector.shape_cast %183 : vector<1x256x8xbf16> to vector<256x8xbf16>
      %c0_37 = arith.constant 0 : index
      %c0_38 = arith.constant 0 : index
      %185 = vector.load %arg7[%c0_37, %c0_38] : memref<8x64xbf16, #tpu.memory_space<vmem>>, vector<8x64xbf16>
      %cst_39 = arith.constant dense<0.000000e+00> : vector<256x64xf32>
      %186 = tpu.matmul %184, %185, %cst_39 {dimension_numbers = #tpu.dot_dimension_numbers<[1], [0], [0], [1], [0, 0, 1, 1], [], []>} : vector<256x8xbf16>, vector<8x64xbf16>, vector<256x64xf32> -> vector<256x64xf32>
      %c0_40 = arith.constant 0 : index
      %c0_41 = arith.constant 0 : index
      %187 = vector.load %arg8[%c0_40, %c0_41] : memref<1x64xf32, #tpu.memory_space<vmem>>, vector<1x64xf32>
      %188 = vector.broadcast %187 : vector<1x64xf32> to vector<256x64xf32>
      %189 = arith.addf %186, %188 : vector<256x64xf32>
      %cst_42 = arith.constant 1.000000e+00 : f32
      %190 = vector.broadcast %cst_42 : f32 to vector<256x64xf32>
      %191 = arith.mulf %189, %190 : vector<256x64xf32>
      %c0_43 = arith.constant 0 : index
      %c0_44 = arith.constant 0 : index
      %192 = vector.load %arg10[%c0_43, %c0_44] : memref<256x64xf32, #tpu.memory_space<vmem>>, vector<256x64xf32>
      tpu.vector_store %arg10[%c0_43, %c0_44], %191 {strides = array<i32>} : memref<256x64xf32, #tpu.memory_space<vmem>>, vector<256x64xf32>,
    } else {
    }
    %c0 = arith.constant 0 : index
    %c0_1 = arith.constant 0 : index
    %c0_2 = arith.constant 0 : index
    %c0_3 = arith.constant 0 : index
    %3 = vector.load %arg5[%c0, %c0_1, %c0_2, %c0_3] : memref<1x16x16x64xbf16, #tpu.memory_space<vmem>>, vector<1x16x16x64xbf16>
    %4 = vector.shape_cast %3 : vector<1x16x16x64xbf16> to vector<16x16x64xbf16>
    %c0_4 = arith.constant 0 : index
    %c0_5 = arith.constant 0 : index
    %c0_6 = arith.constant 0 : index
    %5 = vector.load %arg2[%c0_4, %c0_5, %c0_6] : memref<1x16x16xf32, #tpu.memory_space<vmem>>, vector<1x16x16xf32>
    %6 = vector.shape_cast %5 : vector<1x16x16xf32> to vector<16x16xf32>
    %7 = vector.shape_cast %6 : vector<16x16xf32> to vector<16x16x1xf32>
    %c0_7 = arith.constant 0 : index
    %c0_8 = arith.constant 0 : index
    %c0_9 = arith.constant 0 : index
    %8 = vector.load %arg3[%c0_7, %c0_8, %c0_9] : memref<1x16x16xf32, #tpu.memory_space<vmem>>, vector<1x16x16xf32>
    %9 = vector.shape_cast %8 : vector<1x16x16xf32> to vector<16x16xf32>
    %10 = vector.shape_cast %9 : vector<16x16xf32> to vector<16x1x16xf32>
    %11 = vector.broadcast %7 : vector<16x16x1xf32> to vector<16x16x16xf32>
    %12 = vector.broadcast %10 : vector<16x1x16xf32> to vector<16x16x16xf32>
    %13 = arith.subf %11, %12 : vector<16x16x16xf32>
    %14 = math.tanh %13 : vector<16x16x16xf32>
    %cst = arith.constant 1.000000e+00 : f32
    %15 = vector.broadcast %cst : f32 to vector<16x16x16xf32>
    %16 = arith.mulf %14, %15 : vector<16x16x16xf32>
    %c0_10 = arith.constant 0 : index
    %c0_11 = arith.constant 0 : index
    %17 = vector.load %arg4[%c0_10, %c0_11] : memref<16x16xf32, #tpu.memory_space<vmem>>, vector<16x16xf32>
    %18 = vector.shape_cast %17 : vector<16x16xf32> to vector<1x16x16xf32>
    %19 = vector.broadcast %18 : vector<1x16x16xf32> to vector<16x16x16xf32>
    %20 = arith.addf %16, %19 : vector<16x16x16xf32>
    %21 = tpu.iota {dimensions = array<i32: 2>} : vector<1x1x16xi32>
    %c15_i32 = arith.constant 15 : i32
    %22 = vector.broadcast %c15_i32 : i32 to vector<1x1x16xi32>
    %23 = arith.cmpi slt, %21, %22 : vector<1x1x16xi32>
    %cst_12 = arith.constant 0.000000e+00 : f32
    %24 = vector.shape_cast %23 : vector<1x1x16xi1> to vector<1x1x16xi1>
    %25 = vector.broadcast %24 : vector<1x1x16xi1> to vector<16x16x16xi1>
    %26 = vector.broadcast %cst_12 : f32 to vector<16x16x16xf32>
    %27 = arith.select %25, %20, %26 : vector<16x16x16xi1>, vector<16x16x16xf32>
    %28 = arith.truncf %27 : vector<16x16x16xf32> to vector<16x16x16xbf16>
    %cst_13 = arith.constant dense<0.000000e+00> : vector<16x16x64xf32>
    %29 = tpu.matmul %28, %4, %cst_13 {dimension_numbers = #tpu.dot_dimension_numbers<[2], [1], [1], [2], [0, 0, 0, 1, 1, 2], [0], [0]>} : vector<16x16x16xbf16>, vector<16x16x64xbf16>, vector<16x16x64xf32> -> vector<16x16x64xf32>
    %30 = vector.extract_strided_slice %4 {offsets = [0, 0, 0], sizes = [16, 1, 64], strides = [1, 1, 1]} : vector<16x16x64xbf16> to vector<16x1x64xbf16>
    %31 = vector.shape_cast %30 : vector<16x1x64xbf16> to vector<16x64xbf16>
    %32 = arith.extf %31 : vector<16x64xbf16> to vector<16x64xf32>
    %33 = vector.shape_cast %32 : vector<16x64xf32> to vector<16x1x64xf32>
    %c0_14 = arith.constant 0 : index
    %c0_15 = arith.constant 0 : index
    %34 = vector.load %arg10[%c0_14, %c0_15] : memref<256x64xf32, #tpu.memory_space<vmem>>, vector<16x64xf32>
    %35 = vector.shape_cast %34 : vector<16x64xf32> to vector<1x16x64xf32>
    %36 = vector.broadcast %33 : vector<16x1x64xf32> to vector<16x16x64xf32>
    %37 = vector.broadcast %35 : vector<1x16x64xf32> to vector<16x16x64xf32>
    %38 = arith.mulf %36, %37 : vector<16x16x64xf32>
    %39 = arith.addf %29, %38 : vector<16x16x64xf32>
    %40 = vector.extract_strided_slice %4 {offsets = [0, 1, 0], sizes = [16, 1, 64], strides = [1, 1, 1]} : vector<16x16x64xbf16> to vector<16x1x64xbf16>
    %41 = vector.shape_cast %40 : vector<16x1x64xbf16> to vector<16x64xbf16>
    %42 = arith.extf %41 : vector<16x64xbf16> to vector<16x64xf32>
    %43 = vector.shape_cast %42 : vector<16x64xf32> to vector<16x1x64xf32>
    %c16 = arith.constant 16 : index
    %c0_16 = arith.constant 0 : index
    %44 = vector.load %arg10[%c16, %c0_16] : memref<256x64xf32, #tpu.memory_space<vmem>>, vector<16x64xf32>
    %45 = vector.shape_cast %44 : vector<16x64xf32> to vector<1x16x64xf32>
    %46 = vector.broadcast %43 : vector<16x1x64xf32> to vector<16x16x64xf32>
    %47 = vector.broadcast %45 : vector<1x16x64xf32> to vector<16x16x64xf32>
    %48 = arith.mulf %46, %47 : vector<16x16x64xf32>
    %49 = arith.addf %39, %48 : vector<16x16x64xf32>
    %50 = vector.extract_strided_slice %4 {offsets = [0, 2, 0], sizes = [16, 1, 64], strides = [1, 1, 1]} : vector<16x16x64xbf16> to vector<16x1x64xbf16>
    %51 = vector.shape_cast %50 : vector<16x1x64xbf16> to vector<16x64xbf16>
    %52 = arith.extf %51 : vector<16x64xbf16> to vector<16x64xf32>
    %53 = vector.shape_cast %52 : vector<16x64xf32> to vector<16x1x64xf32>
    %c32 = arith.constant 32 : index
    %c0_17 = arith.constant 0 : index
    %54 = vector.load %arg10[%c32, %c0_17] : memref<256x64xf32, #tpu.memory_space<vmem>>, vector<16x64xf32>
    %55 = vector.shape_cast %54 : vector<16x64xf32> to vector<1x16x64xf32>
    %56 = vector.broadcast %53 : vector<16x1x64xf32> to vector<16x16x64xf32>
    %57 = vector.broadcast %55 : vector<1x16x64xf32> to vector<16x16x64xf32>
    %58 = arith.mulf %56, %57 : vector<16x16x64xf32>
    %59 = arith.addf %49, %58 : vector<16x16x64xf32>
    %60 = vector.extract_strided_slice %4 {offsets = [0, 3, 0], sizes = [16, 1, 64], strides = [1, 1, 1]} : vector<16x16x64xbf16> to vector<16x1x64xbf16>
    %61 = vector.shape_cast %60 : vector<16x1x64xbf16> to vector<16x64xbf16>
    %62 = arith.extf %61 : vector<16x64xbf16> to vector<16x64xf32>
    %63 = vector.shape_cast %62 : vector<16x64xf32> to vector<16x1x64xf32>
    %c48 = arith.constant 48 : index
    %c0_18 = arith.constant 0 : index
    %64 = vector.load %arg10[%c48, %c0_18] : memref<256x64xf32, #tpu.memory_space<vmem>>, vector<16x64xf32>
    %65 = vector.shape_cast %64 : vector<16x64xf32> to vector<1x16x64xf32>
    %66 = vector.broadcast %63 : vector<16x1x64xf32> to vector<16x16x64xf32>
    %67 = vector.broadcast %65 : vector<1x16x64xf32> to vector<16x16x64xf32>
    %68 = arith.mulf %66, %67 : vector<16x16x64xf32>
    %69 = arith.addf %59, %68 : vector<16x16x64xf32>
    %70 = vector.extract_strided_slice %4 {offsets = [0, 4, 0], sizes = [16, 1, 64], strides = [1, 1, 1]} : vector<16x16x64xbf16> to vector<16x1x64xbf16>
    %71 = vector.shape_cast %70 : vector<16x1x64xbf16> to vector<16x64xbf16>
    %72 = arith.extf %71 : vector<16x64xbf16> to vector<16x64xf32>
    %73 = vector.shape_cast %72 : vector<16x64xf32> to vector<16x1x64xf32>
    %c64 = arith.constant 64 : index
    %c0_19 = arith.constant 0 : index
    %74 = vector.load %arg10[%c64, %c0_19] : memref<256x64xf32, #tpu.memory_space<vmem>>, vector<16x64xf32>
    %75 = vector.shape_cast %74 : vector<16x64xf32> to vector<1x16x64xf32>
    %76 = vector.broadcast %73 : vector<16x1x64xf32> to vector<16x16x64xf32>
    %77 = vector.broadcast %75 : vector<1x16x64xf32> to vector<16x16x64xf32>
    %78 = arith.mulf %76, %77 : vector<16x16x64xf32>
    %79 = arith.addf %69, %78 : vector<16x16x64xf32>
    %80 = vector.extract_strided_slice %4 {offsets = [0, 5, 0], sizes = [16, 1, 64], strides = [1, 1, 1]} : vector<16x16x64xbf16> to vector<16x1x64xbf16>
    %81 = vector.shape_cast %80 : vector<16x1x64xbf16> to vector<16x64xbf16>
    %82 = arith.extf %81 : vector<16x64xbf16> to vector<16x64xf32>
    %83 = vector.shape_cast %82 : vector<16x64xf32> to vector<16x1x64xf32>
    %c80 = arith.constant 80 : index
    %c0_20 = arith.constant 0 : index
    %84 = vector.load %arg10[%c80, %c0_20] : memref<256x64xf32, #tpu.memory_space<vmem>>, vector<16x64xf32>
    %85 = vector.shape_cast %84 : vector<16x64xf32> to vector<1x16x64xf32>
    %86 = vector.broadcast %83 : vector<16x1x64xf32> to vector<16x16x64xf32>
    %87 = vector.broadcast %85 : vector<1x16x64xf32> to vector<16x16x64xf32>
    %88 = arith.mulf %86, %87 : vector<16x16x64xf32>
    %89 = arith.addf %79, %88 : vector<16x16x64xf32>
    %90 = vector.extract_strided_slice %4 {offsets = [0, 6, 0], sizes = [16, 1, 64], strides = [1, 1, 1]} : vector<16x16x64xbf16> to vector<16x1x64xbf16>
    %91 = vector.shape_cast %90 : vector<16x1x64xbf16> to vector<16x64xbf16>
    %92 = arith.extf %91 : vector<16x64xbf16> to vector<16x64xf32>
    %93 = vector.shape_cast %92 : vector<16x64xf32> to vector<16x1x64xf32>
    %c96 = arith.constant 96 : index
    %c0_21 = arith.constant 0 : index
    %94 = vector.load %arg10[%c96, %c0_21] : memref<256x64xf32, #tpu.memory_space<vmem>>, vector<16x64xf32>
    %95 = vector.shape_cast %94 : vector<16x64xf32> to vector<1x16x64xf32>
    %96 = vector.broadcast %93 : vector<16x1x64xf32> to vector<16x16x64xf32>
    %97 = vector.broadcast %95 : vector<1x16x64xf32> to vector<16x16x64xf32>
    %98 = arith.mulf %96, %97 : vector<16x16x64xf32>
    %99 = arith.addf %89, %98 : vector<16x16x64xf32>
    %100 = vector.extract_strided_slice %4 {offsets = [0, 7, 0], sizes = [16, 1, 64], strides = [1, 1, 1]} : vector<16x16x64xbf16> to vector<16x1x64xbf16>
    %101 = vector.shape_cast %100 : vector<16x1x64xbf16> to vector<16x64xbf16>
    %102 = arith.extf %101 : vector<16x64xbf16> to vector<16x64xf32>
    %103 = vector.shape_cast %102 : vector<16x64xf32> to vector<16x1x64xf32>
    %c112 = arith.constant 112 : index
    %c0_22 = arith.constant 0 : index
    %104 = vector.load %arg10[%c112, %c0_22] : memref<256x64xf32, #tpu.memory_space<vmem>>, vector<16x64xf32>
    %105 = vector.shape_cast %104 : vector<16x64xf32> to vector<1x16x64xf32>
    %106 = vector.broadcast %103 : vector<16x1x64xf32> to vector<16x16x64xf32>
    %107 = vector.broadcast %105 : vector<1x16x64xf32> to vector<16x16x64xf32>
    %108 = arith.mulf %106, %107 : vector<16x16x64xf32>
    %109 = arith.addf %99, %108 : vector<16x16x64xf32>
    %110 = vector.extract_strided_slice %4 {offsets = [0, 8, 0], sizes = [16, 1, 64], strides = [1, 1, 1]} : vector<16x16x64xbf16> to vector<16x1x64xbf16>
    %111 = vector.shape_cast %110 : vector<16x1x64xbf16> to vector<16x64xbf16>
    %112 = arith.extf %111 : vector<16x64xbf16> to vector<16x64xf32>
    %113 = vector.shape_cast %112 : vector<16x64xf32> to vector<16x1x64xf32>
    %c128 = arith.constant 128 : index
    %c0_23 = arith.constant 0 : index
    %114 = vector.load %arg10[%c128, %c0_23] : memref<256x64xf32, #tpu.memory_space<vmem>>, vector<16x64xf32>
    %115 = vector.shape_cast %114 : vector<16x64xf32> to vector<1x16x64xf32>
    %116 = vector.broadcast %113 : vector<16x1x64xf32> to vector<16x16x64xf32>
    %117 = vector.broadcast %115 : vector<1x16x64xf32> to vector<16x16x64xf32>
    %118 = arith.mulf %116, %117 : vector<16x16x64xf32>
    %119 = arith.addf %109, %118 : vector<16x16x64xf32>
    %120 = vector.extract_strided_slice %4 {offsets = [0, 9, 0], sizes = [16, 1, 64], strides = [1, 1, 1]} : vector<16x16x64xbf16> to vector<16x1x64xbf16>
    %121 = vector.shape_cast %120 : vector<16x1x64xbf16> to vector<16x64xbf16>
    %122 = arith.extf %121 : vector<16x64xbf16> to vector<16x64xf32>
    %123 = vector.shape_cast %122 : vector<16x64xf32> to vector<16x1x64xf32>
    %c144 = arith.constant 144 : index
    %c0_24 = arith.constant 0 : index
    %124 = vector.load %arg10[%c144, %c0_24] : memref<256x64xf32, #tpu.memory_space<vmem>>, vector<16x64xf32>
    %125 = vector.shape_cast %124 : vector<16x64xf32> to vector<1x16x64xf32>
    %126 = vector.broadcast %123 : vector<16x1x64xf32> to vector<16x16x64xf32>
    %127 = vector.broadcast %125 : vector<1x16x64xf32> to vector<16x16x64xf32>
    %128 = arith.mulf %126, %127 : vector<16x16x64xf32>
    %129 = arith.addf %119, %128 : vector<16x16x64xf32>
    %130 = vector.extract_strided_slice %4 {offsets = [0, 10, 0], sizes = [16, 1, 64], strides = [1, 1, 1]} : vector<16x16x64xbf16> to vector<16x1x64xbf16>
    %131 = vector.shape_cast %130 : vector<16x1x64xbf16> to vector<16x64xbf16>
    %132 = arith.extf %131 : vector<16x64xbf16> to vector<16x64xf32>
    %133 = vector.shape_cast %132 : vector<16x64xf32> to vector<16x1x64xf32>
    %c160 = arith.constant 160 : index
    %c0_25 = arith.constant 0 : index
    %134 = vector.load %arg10[%c160, %c0_25] : memref<256x64xf32, #tpu.memory_space<vmem>>, vector<16x64xf32>
    %135 = vector.shape_cast %134 : vector<16x64xf32> to vector<1x16x64xf32>
    %136 = vector.broadcast %133 : vector<16x1x64xf32> to vector<16x16x64xf32>
    %137 = vector.broadcast %135 : vector<1x16x64xf32> to vector<16x16x64xf32>
    %138 = arith.mulf %136, %137 : vector<16x16x64xf32>
    %139 = arith.addf %129, %138 : vector<16x16x64xf32>
    %140 = vector.extract_strided_slice %4 {offsets = [0, 11, 0], sizes = [16, 1, 64], strides = [1, 1, 1]} : vector<16x16x64xbf16> to vector<16x1x64xbf16>
    %141 = vector.shape_cast %140 : vector<16x1x64xbf16> to vector<16x64xbf16>
    %142 = arith.extf %141 : vector<16x64xbf16> to vector<16x64xf32>
    %143 = vector.shape_cast %142 : vector<16x64xf32> to vector<16x1x64xf32>
    %c176 = arith.constant 176 : index
    %c0_26 = arith.constant 0 : index
    %144 = vector.load %arg10[%c176, %c0_26] : memref<256x64xf32, #tpu.memory_space<vmem>>, vector<16x64xf32>
    %145 = vector.shape_cast %144 : vector<16x64xf32> to vector<1x16x64xf32>
    %146 = vector.broadcast %143 : vector<16x1x64xf32> to vector<16x16x64xf32>
    %147 = vector.broadcast %145 : vector<1x16x64xf32> to vector<16x16x64xf32>
    %148 = arith.mulf %146, %147 : vector<16x16x64xf32>
    %149 = arith.addf %139, %148 : vector<16x16x64xf32>
    %150 = vector.extract_strided_slice %4 {offsets = [0, 12, 0], sizes = [16, 1, 64], strides = [1, 1, 1]} : vector<16x16x64xbf16> to vector<16x1x64xbf16>
    %151 = vector.shape_cast %150 : vector<16x1x64xbf16> to vector<16x64xbf16>
    %152 = arith.extf %151 : vector<16x64xbf16> to vector<16x64xf32>
    %153 = vector.shape_cast %152 : vector<16x64xf32> to vector<16x1x64xf32>
    %c192 = arith.constant 192 : index
    %c0_27 = arith.constant 0 : index
    %154 = vector.load %arg10[%c192, %c0_27] : memref<256x64xf32, #tpu.memory_space<vmem>>, vector<16x64xf32>
    %155 = vector.shape_cast %154 : vector<16x64xf32> to vector<1x16x64xf32>
    %156 = vector.broadcast %153 : vector<16x1x64xf32> to vector<16x16x64xf32>
    %157 = vector.broadcast %155 : vector<1x16x64xf32> to vector<16x16x64xf32>
    %158 = arith.mulf %156, %157 : vector<16x16x64xf32>
    %159 = arith.addf %149, %158 : vector<16x16x64xf32>
    %160 = vector.extract_strided_slice %4 {offsets = [0, 13, 0], sizes = [16, 1, 64], strides = [1, 1, 1]} : vector<16x16x64xbf16> to vector<16x1x64xbf16>
    %161 = vector.shape_cast %160 : vector<16x1x64xbf16> to vector<16x64xbf16>
    %162 = arith.extf %161 : vector<16x64xbf16> to vector<16x64xf32>
    %163 = vector.shape_cast %162 : vector<16x64xf32> to vector<16x1x64xf32>
    %c208 = arith.constant 208 : index
    %c0_28 = arith.constant 0 : index
    %164 = vector.load %arg10[%c208, %c0_28] : memref<256x64xf32, #tpu.memory_space<vmem>>, vector<16x64xf32>
    %165 = vector.shape_cast %164 : vector<16x64xf32> to vector<1x16x64xf32>
    %166 = vector.broadcast %163 : vector<16x1x64xf32> to vector<16x16x64xf32>
    %167 = vector.broadcast %165 : vector<1x16x64xf32> to vector<16x16x64xf32>
    %168 = arith.mulf %166, %167 : vector<16x16x64xf32>
    %169 = arith.addf %159, %168 : vector<16x16x64xf32>
    %170 = vector.extract_strided_slice %4 {offsets = [0, 14, 0], sizes = [16, 1, 64], strides = [1, 1, 1]} : vector<16x16x64xbf16> to vector<16x1x64xbf16>
    %171 = vector.shape_cast %170 : vector<16x1x64xbf16> to vector<16x64xbf16>
    %172 = arith.extf %171 : vector<16x64xbf16> to vector<16x64xf32>
    %173 = vector.shape_cast %172 : vector<16x64xf32> to vector<16x1x64xf32>
    %c224 = arith.constant 224 : index
    %c0_29 = arith.constant 0 : index
    %174 = vector.load %arg10[%c224, %c0_29] : memref<256x64xf32, #tpu.memory_space<vmem>>, vector<16x64xf32>
    %175 = vector.shape_cast %174 : vector<16x64xf32> to vector<1x16x64xf32>
    %176 = vector.broadcast %173 : vector<16x1x64xf32> to vector<16x16x64xf32>
    %177 = vector.broadcast %175 : vector<1x16x64xf32> to vector<16x16x64xf32>
    %178 = arith.mulf %176, %177 : vector<16x16x64xf32>
    %179 = arith.addf %169, %178 : vector<16x16x64xf32>
    %c0_30 = arith.constant 0 : index
    %c0_31 = arith.constant 0 : index
    %c0_32 = arith.constant 0 : index
    %c0_33 = arith.constant 0 : index
    %180 = vector.load %arg9[%c0_30, %c0_31, %c0_32, %c0_33] : memref<1x16x16x64xf32, #tpu.memory_space<vmem>>, vector<1x16x16x64xf32>
    %181 = vector.shape_cast %180 : vector<1x16x16x64xf32> to vector<16x16x64xf32>
    %182 = vector.shape_cast %179 : vector<16x16x64xf32> to vector<1x16x16x64xf32>
    tpu.vector_store %arg9[%c0_30, %c0_31, %c0_32, %c0_33], %182 {strides = array<i32>} : memref<1x16x16x64xf32, #tpu.memory_space<vmem>>, vector<1x16x16x64xf32>,
    return
  }
  func.func @transform_0(%arg0: i32, %arg1: i32) -> (i32, i32, i32) {
    %c0_i32 = arith.constant 0 : i32
    %c0_i32_0 = arith.constant 0 : i32
    return %arg0, %arg1, %c0_i32 : i32, i32, i32
  }
  func.func @transform_1(%arg0: i32, %arg1: i32) -> (i32, i32, i32) {
    %c0_i32 = arith.constant 0 : i32
    %c0_i32_0 = arith.constant 0 : i32
    return %arg0, %arg1, %c0_i32 : i32, i32, i32
  }
  func.func @transform_2(%arg0: i32, %arg1: i32) -> (i32, i32) {
    %c0_i32 = arith.constant 0 : i32
    %c0_i32_0 = arith.constant 0 : i32
    %c0_i32_1 = arith.constant 0 : i32
    return %c0_i32, %c0_i32_0 : i32, i32
  }
  func.func @transform_3(%arg0: i32, %arg1: i32) -> (i32, i32, i32, i32) {
    %c0_i32 = arith.constant 0 : i32
    %c0_i32_0 = arith.constant 0 : i32
    %c0_i32_1 = arith.constant 0 : i32
    return %arg0, %arg1, %c0_i32, %c0_i32_0 : i32, i32, i32, i32
  }
  func.func @transform_4(%arg0: i32, %arg1: i32) -> (i32, i32, i32) {
    %c0_i32 = arith.constant 0 : i32
    %c0_i32_0 = arith.constant 0 : i32
    %c0_i32_1 = arith.constant 0 : i32
    return %arg0, %c0_i32, %c0_i32_0 : i32, i32, i32
  }
  func.func @transform_5(%arg0: i32, %arg1: i32) -> (i32, i32) {
    %c0_i32 = arith.constant 0 : i32
    %c0_i32_0 = arith.constant 0 : i32
    %c0_i32_1 = arith.constant 0 : i32
    return %c0_i32, %c0_i32_0 : i32, i32
  }
  func.func @transform_6(%arg0: i32, %arg1: i32) -> (i32, i32) {
    %c0_i32 = arith.constant 0 : i32
    %c0_i32_0 = arith.constant 0 : i32
    %c0_i32_1 = arith.constant 0 : i32
    return %c0_i32, %c0_i32_0 : i32, i32
  }
  func.func @transform_7(%arg0: i32, %arg1: i32) -> (i32, i32, i32, i32) {
    %c0_i32 = arith.constant 0 : i32
    %c0_i32_0 = arith.constant 0 : i32
    %c0_i32_1 = arith.constant 0 : i32
    return %arg0, %arg1, %c0_i32, %c0_i32_0 : i32, i32, i32, i32
  }
}

</mosaic_0001>

<llo_original>
// kernel: ctrgc_forward.2
$region0: #{ctrgc_forward.2}
  #allocation0 [shape = 'u32[]', space=smem, size = 0x4, offset = 0x4, fixed_abs, tag = 'smem constant byte address 0x4 - core index']
  #allocation1 [shape = 'u32[144,128]{1,0:T(1,128)}', space=vmem, size = 0x12000, scoped, tag = 'internal scratch']
  %s0 = inlined_call_operand.vmem [shape: bf16[512,64], index: 0, kind: input, shape index: {}]
  %s1 = inlined_call_operand.vmem [shape: bf16[64,64], index: 1, kind: input, shape index: {}]
  %s2 = inlined_call_operand.vmem [shape: f32[1,64], index: 2, kind: input, shape index: {}]
  %s3 = inlined_call_operand.vmem [shape: bf16[64,2], index: 3, kind: input, shape index: {}]
  %s4 = inlined_call_operand.vmem [shape: f32[1,2], index: 4, kind: input, shape index: {}]
  %s5 = inlined_call_operand.vmem [shape: bf16[512,64], index: 5, kind: output, shape index: {0}]
  %s6 = inlined_call_operand.vmem [shape: f32[512,2], index: 6, kind: output, shape index: {1}]
  %7 = xla_tuple %s5, %s6
  %s8 = sld [smem:[#allocation0]]
  $region38: #{ctrgc_forward.2} parent=0
    _
  %s10 = ssub.s32 1, %s8
  %s11 = scalar_select 0, %s10, %s8
  // Predicated region
  $region2: #{ctrgc_forward.2} parent=0 // pred_check
    _
  $region3: #{ctrgc_forward.2} parent=0 // pred_check_branch
    %13 = sbr.rel (0) target = $region5
  $region4: #{ctrgc_forward.2} parent=0 // pred_region
    _
  $region5: #{ctrgc_forward.2} parent=0 // pred_fallthru
    _
  // Predicated region
  $region6: #{ctrgc_forward.2} parent=0 // pred_check
    _
  $region7: #{ctrgc_forward.2} parent=0 // pred_check_branch
    %15 = sbr.rel (0) target = $region9
  $region8: #{ctrgc_forward.2} parent=0 // pred_region
    _
  $region9: #{ctrgc_forward.2} parent=0 // pred_fallthru
    _
  // Predicated region
  $region10: #{ctrgc_forward.2} parent=0 // pred_check
    _
  $region11: #{ctrgc_forward.2} parent=0 // pred_check_branch
    %17 = sbr.rel (0) target = $region13
  $region12: #{ctrgc_forward.2} parent=0 // pred_region
    _
  $region13: #{ctrgc_forward.2} parent=0 // pred_fallthru
    _
  // Predicated region
  $region14: #{ctrgc_forward.2} parent=0 // pred_check
    _
  $region15: #{ctrgc_forward.2} parent=0 // pred_check_branch
    %19 = sbr.rel (0) target = $region17
  $region16: #{ctrgc_forward.2} parent=0 // pred_region
    _
  $region17: #{ctrgc_forward.2} parent=0 // pred_fallthru
    _
  // Predicated region
  $region18: #{ctrgc_forward.2} parent=0 // pred_check
    _
  $region19: #{ctrgc_forward.2} parent=0 // pred_check_branch
    %21 = sbr.rel (0) target = $region21
  $region20: #{ctrgc_forward.2} parent=0 // pred_region
    _
  $region21: #{ctrgc_forward.2} parent=0 // pred_fallthru
    _
  %v23 = vld [vmem:[%s0] sm:$0xf]
  %v24 = vld [vmem:[%s0 + $0x4] sm:$0xf]
  %v25 = vld [vmem:[%s0 + $0x8] sm:$0xf]
  %v26 = vld [vmem:[%s0 + $0xc] sm:$0xf]
  %v27 = vld [vmem:[%s0 + $0x10] sm:$0xf]
  %v28 = vld [vmem:[%s0 + $0x14] sm:$0xf]
  %v29 = vld [vmem:[%s0 + $0x18] sm:$0xf]
  %v30 = vld [vmem:[%s0 + $0x1c] sm:$0xf]
  %v31 = vld [vmem:[%s0 + $0x20] sm:$0xf]
  %v32 = vld [vmem:[%s0 + $0x24] sm:$0xf]
  %v33 = vld [vmem:[%s0 + $0x28] sm:$0xf]
  %v34 = vld [vmem:[%s0 + $0x2c] sm:$0xf]
  %v35 = vld [vmem:[%s0 + $0x30] sm:$0xf]
  %v36 = vld [vmem:[%s0 + $0x34] sm:$0xf]
  %v37 = vld [vmem:[%s0 + $0x38] sm:$0xf]
  %v38 = vld [vmem:[%s0 + $0x3c] sm:$0xf]
  %v39 = vld [vmem:[%s0 + $0x40] sm:$0xf]
  %v40 = vld [vmem:[%s0 + $0x44] sm:$0xf]
  %v41 = vld [vmem:[%s0 + $0x48] sm:$0xf]
  %v42 = vld [vmem:[%s0 + $0x4c] sm:$0xf]
  %v43 = vld [vmem:[%s0 + $0x50] sm:$0xf]
  %v44 = vld [vmem:[%s0 + $0x54] sm:$0xf]
  %v45 = vld [vmem:[%s0 + $0x58] sm:$0xf]
  %v46 = vld [vmem:[%s0 + $0x5c] sm:$0xf]
  %v47 = vld [vmem:[%s0 + $0x60] sm:$0xf]
  %v48 = vld [vmem:[%s0 + $0x64] sm:$0xf]
  %v49 = vld [vmem:[%s0 + $0x68] sm:$0xf]
  %v50 = vld [vmem:[%s0 + $0x6c] sm:$0xf]
  %v51 = vld [vmem:[%s0 + $0x70] sm:$0xf]
  %v52 = vld [vmem:[%s0 + $0x74] sm:$0xf]
  %v53 = vld [vmem:[%s0 + $0x78] sm:$0xf]
  %v54 = vld [vmem:[%s0 + $0x7c] sm:$0xf]
  %v55 = vld [vmem:[%s0 + $0x80] sm:$0xf]
  %v56 = vld [vmem:[%s0 + $0x84] sm:$0xf]
  %v57 = vld [vmem:[%s0 + $0x88] sm:$0xf]
  %v58 = vld [vmem:[%s0 + $0x8c] sm:$0xf]
  %v59 = vld [vmem:[%s0 + $0x90] sm:$0xf]
  %v60 = vld [vmem:[%s0 + $0x94] sm:$0xf]
  %v61 = vld [vmem:[%s0 + $0x98] sm:$0xf]
  %v62 = vld [vmem:[%s0 + $0x9c] sm:$0xf]
  %v63 = vld [vmem:[%s0 + $0xa0] sm:$0xf]
  %v64 = vld [vmem:[%s0 + $0xa4] sm:$0xf]
  %v65 = vld [vmem:[%s0 + $0xa8] sm:$0xf]
  %v66 = vld [vmem:[%s0 + $0xac] sm:$0xf]
  %v67 = vld [vmem:[%s0 + $0xb0] sm:$0xf]
  %v68 = vld [vmem:[%s0 + $0xb4] sm:$0xf]
  %v69 = vld [vmem:[%s0 + $0xb8] sm:$0xf]
  %v70 = vld [vmem:[%s0 + $0xbc] sm:$0xf]
  %v71 = vld [vmem:[%s0 + $0xc0] sm:$0xf]
  %v72 = vld [vmem:[%s0 + $0xc4] sm:$0xf]
  %v73 = vld [vmem:[%s0 + $0xc8] sm:$0xf]
  %v74 = vld [vmem:[%s0 + $0xcc] sm:$0xf]
  %v75 = vld [vmem:[%s0 + $0xd0] sm:$0xf]
  %v76 = vld [vmem:[%s0 + $0xd4] sm:$0xf]
  %v77 = vld [vmem:[%s0 + $0xd8] sm:$0xf]
  %v78 = vld [vmem:[%s0 + $0xdc] sm:$0xf]
  %v79 = vld [vmem:[%s0 + $0xe0] sm:$0xf]
  %v80 = vld [vmem:[%s0 + $0xe4] sm:$0xf]
  %v81 = vld [vmem:[%s0 + $0xe8] sm:$0xf]
  %v82 = vld [vmem:[%s0 + $0xec] sm:$0xf]
  %v83 = vld [vmem:[%s0 + $0xf0] sm:$0xf]
  %v84 = vld [vmem:[%s0 + $0xf4] sm:$0xf]
  %v85 = vld [vmem:[%s0 + $0xf8] sm:$0xf]
  %v86 = vld [vmem:[%s0 + $0xfc] sm:$0xf]
  %v87 = vld [vmem:[%s1] sm:$0xf]
  %v88 = vld [vmem:[%s1 + $0x4] sm:$0xf]
  %v89 = vld [vmem:[%s1 + $0x8] sm:$0xf]
  %v90 = vld [vmem:[%s1 + $0xc] sm:$0xf]
  %v91 = vld [vmem:[%s1 + $0x10] sm:$0xf]
  %v92 = vld [vmem:[%s1 + $0x14] sm:$0xf]
  %v93 = vld [vmem:[%s1 + $0x18] sm:$0xf]
  %v94 = vld [vmem:[%s1 + $0x1c] sm:$0xf]
  %v95 = vld [vmem:[%s2] sm:$0x1]
  %v97 = vlaneseq
  %v98 = vshrl.u32 %v97, 7
  %v99 = vsub.s32 0, %v98
  %v100 = vrot.slane %v95, %v99
  %v166 = vunpack.c.l.b16 %v23
  %v167 = vunpack.c.l.b16 %v24
  %v168 = vunpack.c.l.b16 %v25
  %v169 = vunpack.c.l.b16 %v26
  %v170 = vunpack.c.l.b16 %v27
  %v171 = vunpack.c.l.b16 %v28
  %v172 = vunpack.c.l.b16 %v29
  %v173 = vunpack.c.l.b16 %v30
  %v174 = vunpack.c.l.b16 %v31
  %v175 = vunpack.c.l.b16 %v32
  %v176 = vunpack.c.l.b16 %v33
  %v177 = vunpack.c.l.b16 %v34
  %v178 = vunpack.c.l.b16 %v35
  %v179 = vunpack.c.l.b16 %v36
  %v180 = vunpack.c.l.b16 %v37
  %v181 = vunpack.c.l.b16 %v38
  %v182 = vunpack.c.l.b16 %v39
  %v183 = vunpack.c.l.b16 %v40
  %v184 = vunpack.c.l.b16 %v41
  %v185 = vunpack.c.l.b16 %v42
  %v186 = vunpack.c.l.b16 %v43
  %v187 = vunpack.c.l.b16 %v44
  %v188 = vunpack.c.l.b16 %v45
  %v189 = vunpack.c.l.b16 %v46
  %v190 = vunpack.c.l.b16 %v47
  %v191 = vunpack.c.l.b16 %v48
  %v192 = vunpack.c.l.b16 %v49
  %v193 = vunpack.c.l.b16 %v50
  %v194 = vunpack.c.l.b16 %v51
  %v195 = vunpack.c.l.b16 %v52
  %v196 = vunpack.c.l.b16 %v53
  %v197 = vunpack.c.l.b16 %v54
  %v198 = vunpack.c.l.b16 %v55
  %v199 = vunpack.c.l.b16 %v56
  %v200 = vunpack.c.l.b16 %v57
  %v201 = vunpack.c.l.b16 %v58
  %v202 = vunpack.c.l.b16 %v59
  %v203 = vunpack.c.l.b16 %v60
  %v204 = vunpack.c.l.b16 %v61
  %v205 = vunpack.c.l.b16 %v62
  %v206 = vunpack.c.l.b16 %v63
  %v207 = vunpack.c.l.b16 %v64
  %v208 = vunpack.c.l.b16 %v65
  %v209 = vunpack.c.l.b16 %v66
  %v210 = vunpack.c.l.b16 %v67
  %v211 = vunpack.c.l.b16 %v68
  %v212 = vunpack.c.l.b16 %v69
  %v213 = vunpack.c.l.b16 %v70
  %v214 = vunpack.c.l.b16 %v71
  %v215 = vunpack.c.l.b16 %v72
  %v216 = vunpack.c.l.b16 %v73
  %v217 = vunpack.c.l.b16 %v74
  %v218 = vunpack.c.l.b16 %v75
  %v219 = vunpack.c.l.b16 %v76
  %v220 = vunpack.c.l.b16 %v77
  %v221 = vunpack.c.l.b16 %v78
  %v222 = vunpack.c.l.b16 %v79
  %v223 = vunpack.c.l.b16 %v80
  %v224 = vunpack.c.l.b16 %v81
  %v225 = vunpack.c.l.b16 %v82
  %v226 = vunpack.c.l.b16 %v83
  %v227 = vunpack.c.l.b16 %v84
  %v228 = vunpack.c.l.b16 %v85
  %v229 = vunpack.c.l.b16 %v86
  %v230 = vpack.c.b16 %v167, %v166
  %v231 = vpack.c.b16 %v169, %v168
  %v232 = vpack.c.b16 %v171, %v170
  %v233 = vpack.c.b16 %v173, %v172
  %v234 = vpack.c.b16 %v175, %v174
  %v235 = vpack.c.b16 %v177, %v176
  %v236 = vpack.c.b16 %v179, %v178
  %v237 = vpack.c.b16 %v181, %v180
  %v238 = vpack.c.b16 %v183, %v182
  %v239 = vpack.c.b16 %v185, %v184
  %v240 = vpack.c.b16 %v187, %v186
  %v241 = vpack.c.b16 %v189, %v188
  %v242 = vpack.c.b16 %v191, %v190
  %v243 = vpack.c.b16 %v193, %v192
  %v244 = vpack.c.b16 %v195, %v194
  %v245 = vpack.c.b16 %v197, %v196
  %v246 = vpack.c.b16 %v199, %v198
  %v247 = vpack.c.b16 %v201, %v200
  %v248 = vpack.c.b16 %v203, %v202
  %v249 = vpack.c.b16 %v205, %v204
  %v250 = vpack.c.b16 %v207, %v206
  %v251 = vpack.c.b16 %v209, %v208
  %v252 = vpack.c.b16 %v211, %v210
  %v253 = vpack.c.b16 %v213, %v212
  %v254 = vpack.c.b16 %v215, %v214
  %v255 = vpack.c.b16 %v217, %v216
  %v256 = vpack.c.b16 %v219, %v218
  %v257 = vpack.c.b16 %v221, %v220
  %v258 = vpack.c.b16 %v223, %v222
  %v259 = vpack.c.b16 %v225, %v224
  %v260 = vpack.c.b16 %v227, %v226
  %v261 = vpack.c.b16 %v229, %v228
  %v270 = vunpack.c.l.b16 %v87
  %v271 = vunpack.c.l.b16 %v88
  %v272 = vunpack.c.l.b16 %v89
  %v273 = vunpack.c.l.b16 %v90
  %v274 = vunpack.c.l.b16 %v91
  %v275 = vunpack.c.l.b16 %v92
  %v276 = vunpack.c.l.b16 %v93
  %v277 = vunpack.c.l.b16 %v94
  %v278 = vpack.c.b16 %v271, %v270
  %v279 = vpack.c.b16 %v273, %v272
  %v280 = vpack.c.b16 %v275, %v274
  %v281 = vpack.c.b16 %v277, %v276
  %vm286 = vcmask 523264
  %v288 = vsel %vm286, %v230, 0
  %v291 = vsel %vm286, %v231, 0
  %v294 = vsel %vm286, %v232, 0
  %v297 = vsel %vm286, %v233, 0
  %v300 = vsel %vm286, %v234, 0
  %v303 = vsel %vm286, %v235, 0
  %v306 = vsel %vm286, %v236, 0
  %v309 = vsel %vm286, %v237, 0
  %v312 = vsel %vm286, %v238, 0
  %v315 = vsel %vm286, %v239, 0
  %v318 = vsel %vm286, %v240, 0
  %v321 = vsel %vm286, %v241, 0
  %v324 = vsel %vm286, %v242, 0
  %v327 = vsel %vm286, %v243, 0
  %v330 = vsel %vm286, %v244, 0
  %v333 = vsel %vm286, %v245, 0
  %v336 = vsel %vm286, %v246, 0
  %v339 = vsel %vm286, %v247, 0
  %v342 = vsel %vm286, %v248, 0
  %v345 = vsel %vm286, %v249, 0
  %v348 = vsel %vm286, %v250, 0
  %v351 = vsel %vm286, %v251, 0
  %v354 = vsel %vm286, %v252, 0
  %v357 = vsel %vm286, %v253, 0
  %v360 = vsel %vm286, %v254, 0
  %v363 = vsel %vm286, %v255, 0
  %v366 = vsel %vm286, %v256, 0
  %v369 = vsel %vm286, %v257, 0
  %v372 = vsel %vm286, %v258, 0
  %v375 = vsel %vm286, %v259, 0
  %v378 = vsel %vm286, %v260, 0
  %v381 = vsel %vm286, %v261, 0
  %383 = vmatprep.subr.bf16.mxu0 0
  %384 = vmatpush1.bf16.msra.mxu0 %v278
  %385 = vmatprep.subr.bf16.mxu0 0
  %386 = vmatpush1.bf16.msra.mxu0 %v279
  %387 = vmatprep.subr.bf16.mxu0 0
  %388 = vmatpush1.bf16.msra.mxu0 %v280
  %389 = vmatprep.subr.bf16.mxu0 0
  %390 = vmatpush1.bf16.msra.mxu0 %v281
  %391 = vmatprep.subr.bf16.mxu0 0
  %392 = vmatpush1.bf16.msra.mxu0 0
  %393 = vmatprep.subr.bf16.mxu0 0
  %394 = vmatpush1.bf16.msra.mxu0 0
  %395 = vmatprep.subr.bf16.mxu0 0
  %396 = vmatpush1.bf16.msra.mxu0 0
  %397 = vmatprep.subr.bf16.mxu0 0
  %398 = vmatpush1.bf16.msra.mxu0 0
  %399 = vmatprep.subr.bf16.mxu0 0
  %400 = vmatpush1.bf16.msra.mxu0 0
  %401 = vmatprep.subr.bf16.mxu0 0
  %402 = vmatpush1.bf16.msra.mxu0 0
  %403 = vmatprep.subr.bf16.mxu0 0
  %404 = vmatpush1.bf16.msra.mxu0 0
  %405 = vmatprep.subr.bf16.mxu0 0
  %406 = vmatpush1.bf16.msra.mxu0 0
  %407 = vmatprep.subr.bf16.mxu0 0
  %408 = vmatpush1.bf16.msra.mxu0 0
  %409 = vmatprep.subr.bf16.mxu0 0
  %410 = vmatpush1.bf16.msra.mxu0 0
  %411 = vmatprep.subr.bf16.mxu0 0
  %412 = vmatpush1.bf16.msra.mxu0 0
  %413 = vmatprep.subr.bf16.mxu0 0
  %414 = vmatpush1.bf16.msra.mxu0 0
  %415 = vmatprep.mubr.bf16.mxu0 0
  %416 = vmatmul.mubr.bf16.gmra.mrb[0].mxu0 %v288
  %v417 = vpop.f32.mrb[0].mxu0
  %v418 = vadd.f32 %v100, %v417
  %v419 = vpop.f32.mrb[0].mxu0
  %v420 = vpop.f32.mrb[0].mxu0
  %v421 = vadd.f32 %v100, %v420
  %v422 = vpop.f32.mrb[0].mxu0
  %423 = vmatprep.mubr.bf16.mxu0 0
  %424 = vmatmul.mubr.bf16.gmra.mrb[0].mxu0 %v291
  %v425 = vpop.f32.mrb[0].mxu0
  %v426 = vadd.f32 %v100, %v425
  %v427 = vpop.f32.mrb[0].mxu0
  %v428 = vpop.f32.mrb[0].mxu0
  %v429 = vadd.f32 %v100, %v428
  %v430 = vpop.f32.mrb[0].mxu0
  %431 = vmatprep.mubr.bf16.mxu0 0
  %432 = vmatmul.mubr.bf16.gmra.mrb[0].mxu0 %v294
  %v433 = vpop.f32.mrb[0].mxu0
  %v434 = vadd.f32 %v100, %v433
  %v435 = vpop.f32.mrb[0].mxu0
  %v436 = vpop.f32.mrb[0].mxu0
  %v437 = vadd.f32 %v100, %v436
  %v438 = vpop.f32.mrb[0].mxu0
  %439 = vmatprep.mubr.bf16.mxu0 0
  %440 = vmatmul.mubr.bf16.gmra.mrb[0].mxu0 %v297
  %v441 = vpop.f32.mrb[0].mxu0
  %v442 = vadd.f32 %v100, %v441
  %v443 = vpop.f32.mrb[0].mxu0
  %v444 = vpop.f32.mrb[0].mxu0
  %v445 = vadd.f32 %v100, %v444
  %v446 = vpop.f32.mrb[0].mxu0
  %447 = vmatprep.mubr.bf16.mxu0 0
  %448 = vmatmul.mubr.bf16.gmra.mrb[0].mxu0 %v300
  %v449 = vpop.f32.mrb[0].mxu0
  %v450 = vadd.f32 %v100, %v449
  %v451 = vpop.f32.mrb[0].mxu0
  %v452 = vpop.f32.mrb[0].mxu0
  %v453 = vadd.f32 %v100, %v452
  %v454 = vpop.f32.mrb[0].mxu0
  %455 = vmatprep.mubr.bf16.mxu0 0
  %456 = vmatmul.mubr.bf16.gmra.mrb[0].mxu0 %v303
  %v457 = vpop.f32.mrb[0].mxu0
  %v458 = vadd.f32 %v100, %v457
  %v459 = vpop.f32.mrb[0].mxu0
  %v460 = vpop.f32.mrb[0].mxu0
  %v461 = vadd.f32 %v100, %v460
  %v462 = vpop.f32.mrb[0].mxu0
  %463 = vmatprep.mubr.bf16.mxu0 0
  %464 = vmatmul.mubr.bf16.gmra.mrb[0].mxu0 %v306
  %v465 = vpop.f32.mrb[0].mxu0
  %v466 = vadd.f32 %v100, %v465
  %v467 = vpop.f32.mrb[0].mxu0
  %v468 = vpop.f32.mrb[0].mxu0
  %v469 = vadd.f32 %v100, %v468
  %v470 = vpop.f32.mrb[0].mxu0
  %471 = vmatprep.mubr.bf16.mxu0 0
  %472 = vmatmul.mubr.bf16.gmra.mrb[0].mxu0 %v309
  %v473 = vpop.f32.mrb[0].mxu0
  %v474 = vadd.f32 %v100, %v473
  %v475 = vpop.f32.mrb[0].mxu0
  %v476 = vpop.f32.mrb[0].mxu0
  %v477 = vadd.f32 %v100, %v476
  %v478 = vpop.f32.mrb[0].mxu0
  %479 = vmatprep.mubr.bf16.mxu0 0
  %480 = vmatmul.mubr.bf16.gmra.mrb[0].mxu0 %v312
  %v481 = vpop.f32.mrb[0].mxu0
  %v482 = vadd.f32 %v100, %v481
  %v483 = vpop.f32.mrb[0].mxu0
  %v484 = vpop.f32.mrb[0].mxu0
  %v485 = vadd.f32 %v100, %v484
  %v486 = vpop.f32.mrb[0].mxu0
  %487 = vmatprep.mubr.bf16.mxu0 0
  %488 = vmatmul.mubr.bf16.gmra.mrb[0].mxu0 %v315
  %v489 = vpop.f32.mrb[0].mxu0
  %v490 = vadd.f32 %v100, %v489
  %v491 = vpop.f32.mrb[0].mxu0
  %v492 = vpop.f32.mrb[0].mxu0
  %v493 = vadd.f32 %v100, %v492
  %v494 = vpop.f32.mrb[0].mxu0
  %495 = vmatprep.mubr.bf16.mxu0 0
  %496 = vmatmul.mubr.bf16.gmra.mrb[0].mxu0 %v318
  %v497 = vpop.f32.mrb[0].mxu0
  %v498 = vadd.f32 %v100, %v497
  %v499 = vpop.f32.mrb[0].mxu0
  %v500 = vpop.f32.mrb[0].mxu0
  %v501 = vadd.f32 %v100, %v500
  %v502 = vpop.f32.mrb[0].mxu0
  %503 = vmatprep.mubr.bf16.mxu0 0
  %504 = vmatmul.mubr.bf16.gmra.mrb[0].mxu0 %v321
  %v505 = vpop.f32.mrb[0].mxu0
  %v506 = vadd.f32 %v100, %v505
  %v507 = vpop.f32.mrb[0].mxu0
  %v508 = vpop.f32.mrb[0].mxu0
  %v509 = vadd.f32 %v100, %v508
  %v510 = vpop.f32.mrb[0].mxu0
  %511 = vmatprep.mubr.bf16.mxu0 0
  %512 = vmatmul.mubr.bf16.gmra.mrb[0].mxu0 %v324
  %v513 = vpop.f32.mrb[0].mxu0
  %v514 = vadd.f32 %v100, %v513
  %v515 = vpop.f32.mrb[0].mxu0
  %v516 = vpop.f32.mrb[0].mxu0
  %v517 = vadd.f32 %v100, %v516
  %v518 = vpop.f32.mrb[0].mxu0
  %519 = vmatprep.mubr.bf16.mxu0 0
  %520 = vmatmul.mubr.bf16.gmra.mrb[0].mxu0 %v327
  %v521 = vpop.f32.mrb[0].mxu0
  %v522 = vadd.f32 %v100, %v521
  %v523 = vpop.f32.mrb[0].mxu0
  %v524 = vpop.f32.mrb[0].mxu0
  %v525 = vadd.f32 %v100, %v524
  %v526 = vpop.f32.mrb[0].mxu0
  %527 = vmatprep.mubr.bf16.mxu0 0
  %528 = vmatmul.mubr.bf16.gmra.mrb[0].mxu0 %v330
  %v529 = vpop.f32.mrb[0].mxu0
  %v530 = vadd.f32 %v100, %v529
  %v531 = vpop.f32.mrb[0].mxu0
  %v532 = vpop.f32.mrb[0].mxu0
  %v533 = vadd.f32 %v100, %v532
  %v534 = vpop.f32.mrb[0].mxu0
  %535 = vmatprep.mubr.bf16.mxu0 0
  %536 = vmatmul.mubr.bf16.gmra.mrb[0].mxu0 %v333
  %v537 = vpop.f32.mrb[0].mxu0
  %v538 = vadd.f32 %v100, %v537
  %v539 = vpop.f32.mrb[0].mxu0
  %v540 = vpop.f32.mrb[0].mxu0
  %v541 = vadd.f32 %v100, %v540
  %v542 = vpop.f32.mrb[0].mxu0
  %543 = vmatprep.mubr.bf16.mxu0 0
  %544 = vmatmul.mubr.bf16.gmra.mrb[0].mxu0 %v336
  %v545 = vpop.f32.mrb[0].mxu0
  %v546 = vadd.f32 %v100, %v545
  %v547 = vpop.f32.mrb[0].mxu0
  %v548 = vpop.f32.mrb[0].mxu0
  %v549 = vadd.f32 %v100, %v548
  %v550 = vpop.f32.mrb[0].mxu0
  %551 = vmatprep.mubr.bf16.mxu0 0
  %552 = vmatmul.mubr.bf16.gmra.mrb[0].mxu0 %v339
  %v553 = vpop.f32.mrb[0].mxu0
  %v554 = vadd.f32 %v100, %v553
  %v555 = vpop.f32.mrb[0].mxu0
  %v556 = vpop.f32.mrb[0].mxu0
  %v557 = vadd.f32 %v100, %v556
  %v558 = vpop.f32.mrb[0].mxu0
  %559 = vmatprep.mubr.bf16.mxu0 0
  %560 = vmatmul.mubr.bf16.gmra.mrb[0].mxu0 %v342
  %v561 = vpop.f32.mrb[0].mxu0
  %v562 = vadd.f32 %v100, %v561
  %v563 = vpop.f32.mrb[0].mxu0
  %v564 = vpop.f32.mrb[0].mxu0
  %v565 = vadd.f32 %v100, %v564
  %v566 = vpop.f32.mrb[0].mxu0
  %567 = vmatprep.mubr.bf16.mxu0 0
  %568 = vmatmul.mubr.bf16.gmra.mrb[0].mxu0 %v345
  %v569 = vpop.f32.mrb[0].mxu0
  %v570 = vadd.f32 %v100, %v569
  %v571 = vpop.f32.mrb[0].mxu0
  %v572 = vpop.f32.mrb[0].mxu0
  %v573 = vadd.f32 %v100, %v572
  %v574 = vpop.f32.mrb[0].mxu0
  %575 = vmatprep.mubr.bf16.mxu0 0
  %576 = vmatmul.mubr.bf16.gmra.mrb[0].mxu0 %v348
  %v577 = vpop.f32.mrb[0].mxu0
  %v578 = vadd.f32 %v100, %v577
  %v579 = vpop.f32.mrb[0].mxu0
  %v580 = vpop.f32.mrb[0].mxu0
  %v581 = vadd.f32 %v100, %v580
  %v582 = vpop.f32.mrb[0].mxu0
  %583 = vmatprep.mubr.bf16.mxu0 0
  %584 = vmatmul.mubr.bf16.gmra.mrb[0].mxu0 %v351
  %v585 = vpop.f32.mrb[0].mxu0
  %v586 = vadd.f32 %v100, %v585
  %v587 = vpop.f32.mrb[0].mxu0
  %v588 = vpop.f32.mrb[0].mxu0
  %v589 = vadd.f32 %v100, %v588
  %v590 = vpop.f32.mrb[0].mxu0
  %591 = vmatprep.mubr.bf16.mxu0 0
  %592 = vmatmul.mubr.bf16.gmra.mrb[0].mxu0 %v354
  %v593 = vpop.f32.mrb[0].mxu0
  %v594 = vadd.f32 %v100, %v593
  %v595 = vpop.f32.mrb[0].mxu0
  %v596 = vpop.f32.mrb[0].mxu0
  %v597 = vadd.f32 %v100, %v596
  %v598 = vpop.f32.mrb[0].mxu0
  %599 = vmatprep.mubr.bf16.mxu0 0
  %600 = vmatmul.mubr.bf16.gmra.mrb[0].mxu0 %v357
  %v601 = vpop.f32.mrb[0].mxu0
  %v602 = vadd.f32 %v100, %v601
  %v603 = vpop.f32.mrb[0].mxu0
  %v604 = vpop.f32.mrb[0].mxu0
  %v605 = vadd.f32 %v100, %v604
  %v606 = vpop.f32.mrb[0].mxu0
  %607 = vmatprep.mubr.bf16.mxu0 0
  %608 = vmatmul.mubr.bf16.gmra.mrb[0].mxu0 %v360
  %v609 = vpop.f32.mrb[0].mxu0
  %v610 = vadd.f32 %v100, %v609
  %v611 = vpop.f32.mrb[0].mxu0
  %v612 = vpop.f32.mrb[0].mxu0
  %v613 = vadd.f32 %v100, %v612
  %v614 = vpop.f32.mrb[0].mxu0
  %615 = vmatprep.mubr.bf16.mxu0 0
  %616 = vmatmul.mubr.bf16.gmra.mrb[0].mxu0 %v363
  %v617 = vpop.f32.mrb[0].mxu0
  %v618 = vadd.f32 %v100, %v617
  %v619 = vpop.f32.mrb[0].mxu0
  %v620 = vpop.f32.mrb[0].mxu0
  %v621 = vadd.f32 %v100, %v620
  %v622 = vpop.f32.mrb[0].mxu0
  %623 = vmatprep.mubr.bf16.mxu0 0
  %624 = vmatmul.mubr.bf16.gmra.mrb[0].mxu0 %v366
  %v625 = vpop.f32.mrb[0].mxu0
  %v626 = vadd.f32 %v100, %v625
  %v627 = vpop.f32.mrb[0].mxu0
  %v628 = vpop.f32.mrb[0].mxu0
  %v629 = vadd.f32 %v100, %v628
  %v630 = vpop.f32.mrb[0].mxu0
  %631 = vmatprep.mubr.bf16.mxu0 0
  %632 = vmatmul.mubr.bf16.gmra.mrb[0].mxu0 %v369
  %v633 = vpop.f32.mrb[0].mxu0
  %v634 = vadd.f32 %v100, %v633
  %v635 = vpop.f32.mrb[0].mxu0
  %v636 = vpop.f32.mrb[0].mxu0
  %v637 = vadd.f32 %v100, %v636
  %v638 = vpop.f32.mrb[0].mxu0
  %639 = vmatprep.mubr.bf16.mxu0 0
  %640 = vmatmul.mubr.bf16.gmra.mrb[0].mxu0 %v372
  %v641 = vpop.f32.mrb[0].mxu0
  %v642 = vadd.f32 %v100, %v641
  %v643 = vpop.f32.mrb[0].mxu0
  %v644 = vpop.f32.mrb[0].mxu0
  %v645 = vadd.f32 %v100, %v644
  %v646 = vpop.f32.mrb[0].mxu0
  %647 = vmatprep.mubr.bf16.mxu0 0
  %648 = vmatmul.mubr.bf16.gmra.mrb[0].mxu0 %v375
  %v649 = vpop.f32.mrb[0].mxu0
  %v650 = vadd.f32 %v100, %v649
  %v651 = vpop.f32.mrb[0].mxu0
  %v652 = vpop.f32.mrb[0].mxu0
  %v653 = vadd.f32 %v100, %v652
  %v654 = vpop.f32.mrb[0].mxu0
  %655 = vmatprep.mubr.bf16.mxu0 0
  %656 = vmatmul.mubr.bf16.gmra.mrb[0].mxu0 %v378
  %v657 = vpop.f32.mrb[0].mxu0
  %v658 = vadd.f32 %v100, %v657
  %v659 = vpop.f32.mrb[0].mxu0
  %v660 = vpop.f32.mrb[0].mxu0
  %v661 = vadd.f32 %v100, %v660
  %v662 = vpop.f32.mrb[0].mxu0
  %663 = vmatprep.mubr.bf16.mxu0 0
  %664 = vmatmul.mubr.bf16.gmra.mrb[0].mxu0 %v381
  %v665 = vpop.f32.mrb[0].mxu0
  %v666 = vadd.f32 %v100, %v665
  %v667 = vpop.f32.mrb[0].mxu0
  %v668 = vpop.f32.mrb[0].mxu0
  %v669 = vadd.f32 %v100, %v668
  %v670 = vpop.f32.mrb[0].mxu0
  %671 = vdwg.mxu0
  %v672 = vpack.c.bf16 %v421, %v418
  %v673 = vpack.c.bf16 %v429, %v426
  %v674 = vpack.c.bf16 %v437, %v434
  %v675 = vpack.c.bf16 %v445, %v442
  %v676 = vpack.c.bf16 %v453, %v450
  %v677 = vpack.c.bf16 %v461, %v458
  %v678 = vpack.c.bf16 %v469, %v466
  %v679 = vpack.c.bf16 %v477, %v474
  %v680 = vpack.c.bf16 %v485, %v482
  %v681 = vpack.c.bf16 %v493, %v490
  %v682 = vpack.c.bf16 %v501, %v498
  %v683 = vpack.c.bf16 %v509, %v506
  %v684 = vpack.c.bf16 %v517, %v514
  %v685 = vpack.c.bf16 %v525, %v522
  %v686 = vpack.c.bf16 %v533, %v530
  %v687 = vpack.c.bf16 %v541, %v538
  %v688 = vpack.c.bf16 %v549, %v546
  %v689 = vpack.c.bf16 %v557, %v554
  %v690 = vpack.c.bf16 %v565, %v562
  %v691 = vpack.c.bf16 %v573, %v570
  %v692 = vpack.c.bf16 %v581, %v578
  %v693 = vpack.c.bf16 %v589, %v586
  %v694 = vpack.c.bf16 %v597, %v594
  %v695 = vpack.c.bf16 %v605, %v602
  %v696 = vpack.c.bf16 %v613, %v610
  %v697 = vpack.c.bf16 %v621, %v618
  %v698 = vpack.c.bf16 %v629, %v626
  %v699 = vpack.c.bf16 %v637, %v634
  %v700 = vpack.c.bf16 %v645, %v642
  %v701 = vpack.c.bf16 %v653, %v650
  %v702 = vpack.c.bf16 %v661, %v658
  %v703 = vpack.c.bf16 %v669, %v666
  %v736 = vunpack.c.l.b16 %v672
  %v737 = vunpack.c.h.b16 %v672
  %v738 = vunpack.c.l.b16 %v673
  %v739 = vunpack.c.h.b16 %v673
  %v740 = vunpack.c.l.b16 %v674
  %v741 = vunpack.c.h.b16 %v674
  %v742 = vunpack.c.l.b16 %v675
  %v743 = vunpack.c.h.b16 %v675
  %v744 = vunpack.c.l.b16 %v676
  %v745 = vunpack.c.h.b16 %v676
  %v746 = vunpack.c.l.b16 %v677
  %v747 = vunpack.c.h.b16 %v677
  %v748 = vunpack.c.l.b16 %v678
  %v749 = vunpack.c.h.b16 %v678
  %v750 = vunpack.c.l.b16 %v679
  %v751 = vunpack.c.h.b16 %v679
  %v752 = vunpack.c.l.b16 %v680
  %v753 = vunpack.c.h.b16 %v680
  %v754 = vunpack.c.l.b16 %v681
  %v755 = vunpack.c.h.b16 %v681
  %v756 = vunpack.c.l.b16 %v682
  %v757 = vunpack.c.h.b16 %v682
  %v758 = vunpack.c.l.b16 %v683
  %v759 = vunpack.c.h.b16 %v683
  %v760 = vunpack.c.l.b16 %v684
  %v761 = vunpack.c.h.b16 %v684
  %v762 = vunpack.c.l.b16 %v685
  %v763 = vunpack.c.h.b16 %v685
  %v764 = vunpack.c.l.b16 %v686
  %v765 = vunpack.c.h.b16 %v686
  %v766 = vunpack.c.l.b16 %v687
  %v767 = vunpack.c.h.b16 %v687
  %v768 = vunpack.c.l.b16 %v688
  %v769 = vunpack.c.h.b16 %v688
  %v770 = vunpack.c.l.b16 %v689
  %v771 = vunpack.c.h.b16 %v689
  %v772 = vunpack.c.l.b16 %v690
  %v773 = vunpack.c.h.b16 %v690
  %v774 = vunpack.c.l.b16 %v691
  %v775 = vunpack.c.h.b16 %v691
  %v776 = vunpack.c.l.b16 %v692
  %v777 = vunpack.c.h.b16 %v692
  %v778 = vunpack.c.l.b16 %v693
  %v779 = vunpack.c.h.b16 %v693
  %v780 = vunpack.c.l.b16 %v694
  %v781 = vunpack.c.h.b16 %v694
  %v782 = vunpack.c.l.b16 %v695
  %v783 = vunpack.c.h.b16 %v695
  %v784 = vunpack.c.l.b16 %v696
  %v785 = vunpack.c.h.b16 %v696
  %v786 = vunpack.c.l.b16 %v697
  %v787 = vunpack.c.h.b16 %v697
  %v788 = vunpack.c.l.b16 %v698
  %v789 = vunpack.c.h.b16 %v698
  %v790 = vunpack.c.l.b16 %v699
  %v791 = vunpack.c.h.b16 %v699
  %v792 = vunpack.c.l.b16 %v700
  %v793 = vunpack.c.h.b16 %v700
  %v794 = vunpack.c.l.b16 %v701
  %v795 = vunpack.c.h.b16 %v701
  %v796 = vunpack.c.l.b16 %v702
  %v797 = vunpack.c.h.b16 %v702
  %v798 = vunpack.c.l.b16 %v703
  %v799 = vunpack.c.h.b16 %v703
  %v800 = vpack.c.b16 %v736, %v736
  %v801 = vpack.c.b16 %v737, %v737
  %v802 = vpack.c.b16 %v738, %v738
  %v803 = vpack.c.b16 %v739, %v739
  %v804 = vpack.c.b16 %v740, %v740
  %v805 = vpack.c.b16 %v741, %v741
  %v806 = vpack.c.b16 %v742, %v742
  %v807 = vpack.c.b16 %v743, %v743
  %v808 = vpack.c.b16 %v744, %v744
  %v809 = vpack.c.b16 %v745, %v745
  %v810 = vpack.c.b16 %v746, %v746
  %v811 = vpack.c.b16 %v747, %v747
  %v812 = vpack.c.b16 %v748, %v748
  %v813 = vpack.c.b16 %v749, %v749
  %v814 = vpack.c.b16 %v750, %v750
  %v815 = vpack.c.b16 %v751, %v751
  %v816 = vpack.c.b16 %v752, %v752
  %v817 = vpack.c.b16 %v753, %v753
  %v818 = vpack.c.b16 %v754, %v754
  %v819 = vpack.c.b16 %v755, %v755
  %v820 = vpack.c.b16 %v756, %v756
  %v821 = vpack.c.b16 %v757, %v757
  %v822 = vpack.c.b16 %v758, %v758
  %v823 = vpack.c.b16 %v759, %v759
  %v824 = vpack.c.b16 %v760, %v760
  %v825 = vpack.c.b16 %v761, %v761
  %v826 = vpack.c.b16 %v762, %v762
  %v827 = vpack.c.b16 %v763, %v763
  %v828 = vpack.c.b16 %v764, %v764
  %v829 = vpack.c.b16 %v765, %v765
  %v830 = vpack.c.b16 %v766, %v766
  %v831 = vpack.c.b16 %v767, %v767
  %v832 = vpack.c.b16 %v768, %v768
  %v833 = vpack.c.b16 %v769, %v769
  %v834 = vpack.c.b16 %v770, %v770
  %v835 = vpack.c.b16 %v771, %v771
  %v836 = vpack.c.b16 %v772, %v772
  %v837 = vpack.c.b16 %v773, %v773
  %v838 = vpack.c.b16 %v774, %v774
  %v839 = vpack.c.b16 %v775, %v775
  %v840 = vpack.c.b16 %v776, %v776
  %v841 = vpack.c.b16 %v777, %v777
  %v842 = vpack.c.b16 %v778, %v778
  %v843 = vpack.c.b16 %v779, %v779
  %v844 = vpack.c.b16 %v780, %v780
  %v845 = vpack.c.b16 %v781, %v781
  %v846 = vpack.c.b16 %v782, %v782
  %v847 = vpack.c.b16 %v783, %v783
  %v848 = vpack.c.b16 %v784, %v784
  %v849 = vpack.c.b16 %v785, %v785
  %v850 = vpack.c.b16 %v786, %v786
  %v851 = vpack.c.b16 %v787, %v787
  %v852 = vpack.c.b16 %v788, %v788
  %v853 = vpack.c.b16 %v789, %v789
  %v854 = vpack.c.b16 %v790, %v790
  %v855 = vpack.c.b16 %v791, %v791
  %v856 = vpack.c.b16 %v792, %v792
  %v857 = vpack.c.b16 %v793, %v793
  %v858 = vpack.c.b16 %v794, %v794
  %v859 = vpack.c.b16 %v795, %v795
  %v860 = vpack.c.b16 %v796, %v796
  %v861 = vpack.c.b16 %v797, %v797
  %v862 = vpack.c.b16 %v798, %v798
  %v863 = vpack.c.b16 %v799, %v799
  %vm928 = vcmask 519168
  %929 = vst.msk [vmem:[%s5] sm:$0xf] %vm928, %v800
  %930 = vst.msk [vmem:[%s5 + $0x4] sm:$0xf] %vm928, %v801
  %931 = vst.msk [vmem:[%s5 + $0x8] sm:$0xf] %vm928, %v802
  %932 = vst.msk [vmem:[%s5 + $0xc] sm:$0xf] %vm928, %v803
  %933 = vst.msk [vmem:[%s5 + $0x10] sm:$0xf] %vm928, %v804
  %934 = vst.msk [vmem:[%s5 + $0x14] sm:$0xf] %vm928, %v805
  %935 = vst.msk [vmem:[%s5 + $0x18] sm:$0xf] %vm928, %v806
  %936 = vst.msk [vmem:[%s5 + $0x1c] sm:$0xf] %vm928, %v807
  %937 = vst.msk [vmem:[%s5 + $0x20] sm:$0xf] %vm928, %v808
  %938 = vst.msk [vmem:[%s5 + $0x24] sm:$0xf] %vm928, %v809
  %939 = vst.msk [vmem:[%s5 + $0x28] sm:$0xf] %vm928, %v810
  %940 = vst.msk [vmem:[%s5 + $0x2c] sm:$0xf] %vm928, %v811
  %941 = vst.msk [vmem:[%s5 + $0x30] sm:$0xf] %vm928, %v812
  %942 = vst.msk [vmem:[%s5 + $0x34] sm:$0xf] %vm928, %v813
  %943 = vst.msk [vmem:[%s5 + $0x38] sm:$0xf] %vm928, %v814
  %944 = vst.msk [vmem:[%s5 + $0x3c] sm:$0xf] %vm928, %v815
  %945 = vst.msk [vmem:[%s5 + $0x40] sm:$0xf] %vm928, %v816
  %946 = vst.msk [vmem:[%s5 + $0x44] sm:$0xf] %vm928, %v817
  %947 = vst.msk [vmem:[%s5 + $0x48] sm:$0xf] %vm928, %v818
  %948 = vst.msk [vmem:[%s5 + $0x4c] sm:$0xf] %vm928, %v819
  %949 = vst.msk [vmem:[%s5 + $0x50] sm:$0xf] %vm928, %v820
  %950 = vst.msk [vmem:[%s5 + $0x54] sm:$0xf] %vm928, %v821
  %951 = vst.msk [vmem:[%s5 + $0x58] sm:$0xf] %vm928, %v822
  %952 = vst.msk [vmem:[%s5 + $0x5c] sm:$0xf] %vm928, %v823
  %953 = vst.msk [vmem:[%s5 + $0x60] sm:$0xf] %vm928, %v824
  %954 = vst.msk [vmem:[%s5 + $0x64] sm:$0xf] %vm928, %v825
  %955 = vst.msk [vmem:[%s5 + $0x68] sm:$0xf] %vm928, %v826
  %956 = vst.msk [vmem:[%s5 + $0x6c] sm:$0xf] %vm928, %v827
  %957 = vst.msk [vmem:[%s5 + $0x70] sm:$0xf] %vm928, %v828
  %958 = vst.msk [vmem:[%s5 + $0x74] sm:$0xf] %vm928, %v829
  %959 = vst.msk [vmem:[%s5 + $0x78] sm:$0xf] %vm928, %v830
  %960 = vst.msk [vmem:[%s5 + $0x7c] sm:$0xf] %vm928, %v831
  %961 = vst.msk [vmem:[%s5 + $0x80] sm:$0xf] %vm928, %v832
  %962 = vst.msk [vmem:[%s5 + $0x84] sm:$0xf] %vm928, %v833
  %963 = vst.msk [vmem:[%s5 + $0x88] sm:$0xf] %vm928, %v834
  %964 = vst.msk [vmem:[%s5 + $0x8c] sm:$0xf] %vm928, %v835
  %965 = vst.msk [vmem:[%s5 + $0x90] sm:$0xf] %vm928, %v836
  %966 = vst.msk [vmem:[%s5 + $0x94] sm:$0xf] %vm928, %v837
  %967 = vst.msk [vmem:[%s5 + $0x98] sm:$0xf] %vm928, %v838
  %968 = vst.msk [vmem:[%s5 + $0x9c] sm:$0xf] %vm928, %v839
  %969 = vst.msk [vmem:[%s5 + $0xa0] sm:$0xf] %vm928, %v840
  %970 = vst.msk [vmem:[%s5 + $0xa4] sm:$0xf] %vm928, %v841
  %971 = vst.msk [vmem:[%s5 + $0xa8] sm:$0xf] %vm928, %v842
  %972 = vst.msk [vmem:[%s5 + $0xac] sm:$0xf] %vm928, %v843
  %973 = vst.msk [vmem:[%s5 + $0xb0] sm:$0xf] %vm928, %v844
  %974 = vst.msk [vmem:[%s5 + $0xb4] sm:$0xf] %vm928, %v845
  %975 = vst.msk [vmem:[%s5 + $0xb8] sm:$0xf] %vm928, %v846
  %976 = vst.msk [vmem:[%s5 + $0xbc] sm:$0xf] %vm928, %v847
  %977 = vst.msk [vmem:[%s5 + $0xc0] sm:$0xf] %vm928, %v848
  %978 = vst.msk [vmem:[%s5 + $0xc4] sm:$0xf] %vm928, %v849
  %979 = vst.msk [vmem:[%s5 + $0xc8] sm:$0xf] %vm928, %v850
  %980 = vst.msk [vmem:[%s5 + $0xcc] sm:$0xf] %vm928, %v851
  %981 = vst.msk [vmem:[%s5 + $0xd0] sm:$0xf] %vm928, %v852
  %982 = vst.msk [vmem:[%s5 + $0xd4] sm:$0xf] %vm928, %v853
  %983 = vst.msk [vmem:[%s5 + $0xd8] sm:$0xf] %vm928, %v854
  %984 = vst.msk [vmem:[%s5 + $0xdc] sm:$0xf] %vm928, %v855
  %985 = vst.msk [vmem:[%s5 + $0xe0] sm:$0xf] %vm928, %v856
  %986 = vst.msk [vmem:[%s5 + $0xe4] sm:$0xf] %vm928, %v857
  %987 = vst.msk [vmem:[%s5 + $0xe8] sm:$0xf] %vm928, %v858
  %988 = vst.msk [vmem:[%s5 + $0xec] sm:$0xf] %vm928, %v859
  %989 = vst.msk [vmem:[%s5 + $0xf0] sm:$0xf] %vm928, %v860
  %990 = vst.msk [vmem:[%s5 + $0xf4] sm:$0xf] %vm928, %v861
  %991 = vst.msk [vmem:[%s5 + $0xf8] sm:$0xf] %vm928, %v862
  %992 = vst.msk [vmem:[%s5 + $0xfc] sm:$0xf] %vm928, %v863
  %v993 = vld [vmem:[%s3] sm:$0xf]
  %v994 = vld [vmem:[%s3 + $0x4] sm:$0xf]
  %v995 = vld [vmem:[%s3 + $0x8] sm:$0xf]
  %v996 = vld [vmem:[%s3 + $0xc] sm:$0xf]
  %v997 = vld [vmem:[%s3 + $0x10] sm:$0xf]
  %v998 = vld [vmem:[%s3 + $0x14] sm:$0xf]
  %v999 = vld [vmem:[%s3 + $0x18] sm:$0xf]
  %v1000 = vld [vmem:[%s3 + $0x1c] sm:$0xf]
  %v1001 = vld [vmem:[%s4] sm:$0x1]
  %v1003 = vlaneseq
  %v1004 = vshrl.u32 %v1003, 7
  %v1005 = vsub.s32 0, %v1004
  %v1006 = vrot.slane %v1001, %v1005
  %v1016 = vunpack.c.l.b16 %v993
  %v1017 = vunpack.c.l.b16 %v994
  %v1018 = vunpack.c.l.b16 %v995
  %v1019 = vunpack.c.l.b16 %v996
  %v1020 = vunpack.c.l.b16 %v997
  %v1021 = vunpack.c.l.b16 %v998
  %v1022 = vunpack.c.l.b16 %v999
  %v1023 = vunpack.c.l.b16 %v1000
  %v1024 = vpack.c.b16 %v1017, %v1016
  %v1025 = vpack.c.b16 %v1019, %v1018
  %v1026 = vpack.c.b16 %v1021, %v1020
  %v1027 = vpack.c.b16 %v1023, %v1022
  %1032 = vmatprep.subr.bf16.mxu0 0
  %1033 = vmatpush1.bf16.msra.mxu0 %v1024
  %1034 = vmatprep.subr.bf16.mxu0 0
  %1035 = vmatpush1.bf16.msra.mxu0 %v1025
  %1036 = vmatprep.subr.bf16.mxu0 0
  %1037 = vmatpush1.bf16.msra.mxu0 %v1026
  %1038 = vmatprep.subr.bf16.mxu0 0
  %1039 = vmatpush1.bf16.msra.mxu0 %v1027
  %1040 = vmatprep.subr.bf16.mxu0 0
  %1041 = vmatpush1.bf16.msra.mxu0 0
  %1042 = vmatprep.subr.bf16.mxu0 0
  %1043 = vmatpush1.bf16.msra.mxu0 0
  %1044 = vmatprep.subr.bf16.mxu0 0
  %1045 = vmatpush1.bf16.msra.mxu0 0
  %1046 = vmatprep.subr.bf16.mxu0 0
  %1047 = vmatpush1.bf16.msra.mxu0 0
  %1048 = vmatprep.subr.bf16.mxu0 0
  %1049 = vmatpush1.bf16.msra.mxu0 0
  %1050 = vmatprep.subr.bf16.mxu0 0
  %1051 = vmatpush1.bf16.msra.mxu0 0
  %1052 = vmatprep.subr.bf16.mxu0 0
  %1053 = vmatpush1.bf16.msra.mxu0 0
  %1054 = vmatprep.subr.bf16.mxu0 0
  %1055 = vmatpush1.bf16.msra.mxu0 0
  %1056 = vmatprep.subr.bf16.mxu0 0
  %1057 = vmatpush1.bf16.msra.mxu0 0
  %1058 = vmatprep.subr.bf16.mxu0 0
  %1059 = vmatpush1.bf16.msra.mxu0 0
  %1060 = vmatprep.subr.bf16.mxu0 0
  %1061 = vmatpush1.bf16.msra.mxu0 0
  %1062 = vmatprep.subr.bf16.mxu0 0
  %1063 = vmatpush1.bf16.msra.mxu0 0
  %1064 = vmatprep.mubr.bf16.mxu0 0
  %1065 = vmatmul.mubr.bf16.gmra.mrb[0].mxu0 %v288
  %v1066 = vpop.f32.mrb[0].mxu0
  %v1067 = vadd.f32 %v1006, %v1066
  %v1068 = vpop.f32.mrb[0].mxu0
  %v1069 = vpop.f32.mrb[0].mxu0
  %v1070 = vadd.f32 %v1006, %v1069
  %v1071 = vpop.f32.mrb[0].mxu0
  %1072 = vmatprep.mubr.bf16.mxu0 0
  %1073 = vmatmul.mubr.bf16.gmra.mrb[0].mxu0 %v291
  %v1074 = vpop.f32.mrb[0].mxu0
  %v1075 = vadd.f32 %v1006, %v1074
  %v1076 = vpop.f32.mrb[0].mxu0
  %v1077 = vpop.f32.mrb[0].mxu0
  %v1078 = vadd.f32 %v1006, %v1077
  %v1079 = vpop.f32.mrb[0].mxu0
  %1080 = vmatprep.mubr.bf16.mxu0 0
  %1081 = vmatmul.mubr.bf16.gmra.mrb[0].mxu0 %v294
  %v1082 = vpop.f32.mrb[0].mxu0
  %v1083 = vadd.f32 %v1006, %v1082
  %v1084 = vpop.f32.mrb[0].mxu0
  %v1085 = vpop.f32.mrb[0].mxu0
  %v1086 = vadd.f32 %v1006, %v1085
  %v1087 = vpop.f32.mrb[0].mxu0
  %1088 = vmatprep.mubr.bf16.mxu0 0
  %1089 = vmatmul.mubr.bf16.gmra.mrb[0].mxu0 %v297
  %v1090 = vpop.f32.mrb[0].mxu0
  %v1091 = vadd.f32 %v1006, %v1090
  %v1092 = vpop.f32.mrb[0].mxu0
  %v1093 = vpop.f32.mrb[0].mxu0
  %v1094 = vadd.f32 %v1006, %v1093
  %v1095 = vpop.f32.mrb[0].mxu0
  %1096 = vmatprep.mubr.bf16.mxu0 0
  %1097 = vmatmul.mubr.bf16.gmra.mrb[0].mxu0 %v300
  %v1098 = vpop.f32.mrb[0].mxu0
  %v1099 = vadd.f32 %v1006, %v1098
  %v1100 = vpop.f32.mrb[0].mxu0
  %v1101 = vpop.f32.mrb[0].mxu0
  %v1102 = vadd.f32 %v1006, %v1101
  %v1103 = vpop.f32.mrb[0].mxu0
  %1104 = vmatprep.mubr.bf16.mxu0 0
  %1105 = vmatmul.mubr.bf16.gmra.mrb[0].mxu0 %v303
  %v1106 = vpop.f32.mrb[0].mxu0
  %v1107 = vadd.f32 %v1006, %v1106
  %v1108 = vpop.f32.mrb[0].mxu0
  %v1109 = vpop.f32.mrb[0].mxu0
  %v1110 = vadd.f32 %v1006, %v1109
  %v1111 = vpop.f32.mrb[0].mxu0
  %1112 = vmatprep.mubr.bf16.mxu0 0
  %1113 = vmatmul.mubr.bf16.gmra.mrb[0].mxu0 %v306
  %v1114 = vpop.f32.mrb[0].mxu0
  %v1115 = vadd.f32 %v1006, %v1114
  %v1116 = vpop.f32.mrb[0].mxu0
  %v1117 = vpop.f32.mrb[0].mxu0
  %v1118 = vadd.f32 %v1006, %v1117
  %v1119 = vpop.f32.mrb[0].mxu0
  %1120 = vmatprep.mubr.bf16.mxu0 0
  %1121 = vmatmul.mubr.bf16.gmra.mrb[0].mxu0 %v309
  %v1122 = vpop.f32.mrb[0].mxu0
  %v1123 = vadd.f32 %v1006, %v1122
  %v1124 = vpop.f32.mrb[0].mxu0
  %v1125 = vpop.f32.mrb[0].mxu0
  %v1126 = vadd.f32 %v1006, %v1125
  %v1127 = vpop.f32.mrb[0].mxu0
  %1128 = vmatprep.mubr.bf16.mxu0 0
  %1129 = vmatmul.mubr.bf16.gmra.mrb[0].mxu0 %v312
  %v1130 = vpop.f32.mrb[0].mxu0
  %v1131 = vadd.f32 %v1006, %v1130
  %v1132 = vpop.f32.mrb[0].mxu0
  %v1133 = vpop.f32.mrb[0].mxu0
  %v1134 = vadd.f32 %v1006, %v1133
  %v1135 = vpop.f32.mrb[0].mxu0
  %1136 = vmatprep.mubr.bf16.mxu0 0
  %1137 = vmatmul.mubr.bf16.gmra.mrb[0].mxu0 %v315
  %v1138 = vpop.f32.mrb[0].mxu0
  %v1139 = vadd.f32 %v1006, %v1138
  %v1140 = vpop.f32.mrb[0].mxu0
  %v1141 = vpop.f32.mrb[0].mxu0
  %v1142 = vadd.f32 %v1006, %v1141
  %v1143 = vpop.f32.mrb[0].mxu0
  %1144 = vmatprep.mubr.bf16.mxu0 0
  %1145 = vmatmul.mubr.bf16.gmra.mrb[0].mxu0 %v318
  %v1146 = vpop.f32.mrb[0].mxu0
  %v1147 = vadd.f32 %v1006, %v1146
  %v1148 = vpop.f32.mrb[0].mxu0
  %v1149 = vpop.f32.mrb[0].mxu0
  %v1150 = vadd.f32 %v1006, %v1149
  %v1151 = vpop.f32.mrb[0].mxu0
  %1152 = vmatprep.mubr.bf16.mxu0 0
  %1153 = vmatmul.mubr.bf16.gmra.mrb[0].mxu0 %v321
  %v1154 = vpop.f32.mrb[0].mxu0
  %v1155 = vadd.f32 %v1006, %v1154
  %v1156 = vpop.f32.mrb[0].mxu0
  %v1157 = vpop.f32.mrb[0].mxu0
  %v1158 = vadd.f32 %v1006, %v1157
  %v1159 = vpop.f32.mrb[0].mxu0
  %1160 = vmatprep.mubr.bf16.mxu0 0
  %1161 = vmatmul.mubr.bf16.gmra.mrb[0].mxu0 %v324
  %v1162 = vpop.f32.mrb[0].mxu0
  %v1163 = vadd.f32 %v1006, %v1162
  %v1164 = vpop.f32.mrb[0].mxu0
  %v1165 = vpop.f32.mrb[0].mxu0
  %v1166 = vadd.f32 %v1006, %v1165
  %v1167 = vpop.f32.mrb[0].mxu0
  %1168 = vmatprep.mubr.bf16.mxu0 0
  %1169 = vmatmul.mubr.bf16.gmra.mrb[0].mxu0 %v327
  %v1170 = vpop.f32.mrb[0].mxu0
  %v1171 = vadd.f32 %v1006, %v1170
  %v1172 = vpop.f32.mrb[0].mxu0
  %v1173 = vpop.f32.mrb[0].mxu0
  %v1174 = vadd.f32 %v1006, %v1173
  %v1175 = vpop.f32.mrb[0].mxu0
  %1176 = vmatprep.mubr.bf16.mxu0 0
  %1177 = vmatmul.mubr.bf16.gmra.mrb[0].mxu0 %v330
  %v1178 = vpop.f32.mrb[0].mxu0
  %v1179 = vadd.f32 %v1006, %v1178
  %v1180 = vpop.f32.mrb[0].mxu0
  %v1181 = vpop.f32.mrb[0].mxu0
  %v1182 = vadd.f32 %v1006, %v1181
  %v1183 = vpop.f32.mrb[0].mxu0
  %1184 = vmatprep.mubr.bf16.mxu0 0
  %1185 = vmatmul.mubr.bf16.gmra.mrb[0].mxu0 %v333
  %v1186 = vpop.f32.mrb[0].mxu0
  %v1187 = vadd.f32 %v1006, %v1186
  %v1188 = vpop.f32.mrb[0].mxu0
  %v1189 = vpop.f32.mrb[0].mxu0
  %v1190 = vadd.f32 %v1006, %v1189
  %v1191 = vpop.f32.mrb[0].mxu0
  %1192 = vmatprep.mubr.bf16.mxu0 0
  %1193 = vmatmul.mubr.bf16.gmra.mrb[0].mxu0 %v336
  %v1194 = vpop.f32.mrb[0].mxu0
  %v1195 = vadd.f32 %v1006, %v1194
  %v1196 = vpop.f32.mrb[0].mxu0
  %v1197 = vpop.f32.mrb[0].mxu0
  %v1198 = vadd.f32 %v1006, %v1197
  %v1199 = vpop.f32.mrb[0].mxu0
  %1200 = vmatprep.mubr.bf16.mxu0 0
  %1201 = vmatmul.mubr.bf16.gmra.mrb[0].mxu0 %v339
  %v1202 = vpop.f32.mrb[0].mxu0
  %v1203 = vadd.f32 %v1006, %v1202
  %v1204 = vpop.f32.mrb[0].mxu0
  %v1205 = vpop.f32.mrb[0].mxu0
  %v1206 = vadd.f32 %v1006, %v1205
  %v1207 = vpop.f32.mrb[0].mxu0
  %1208 = vmatprep.mubr.bf16.mxu0 0
  %1209 = vmatmul.mubr.bf16.gmra.mrb[0].mxu0 %v342
  %v1210 = vpop.f32.mrb[0].mxu0
  %v1211 = vadd.f32 %v1006, %v1210
  %v1212 = vpop.f32.mrb[0].mxu0
  %v1213 = vpop.f32.mrb[0].mxu0
  %v1214 = vadd.f32 %v1006, %v1213
  %v1215 = vpop.f32.mrb[0].mxu0
  %1216 = vmatprep.mubr.bf16.mxu0 0
  %1217 = vmatmul.mubr.bf16.gmra.mrb[0].mxu0 %v345
  %v1218 = vpop.f32.mrb[0].mxu0
  %v1219 = vadd.f32 %v1006, %v1218
  %v1220 = vpop.f32.mrb[0].mxu0
  %v1221 = vpop.f32.mrb[0].mxu0
  %v1222 = vadd.f32 %v1006, %v1221
  %v1223 = vpop.f32.mrb[0].mxu0
  %1224 = vmatprep.mubr.bf16.mxu0 0
  %1225 = vmatmul.mubr.bf16.gmra.mrb[0].mxu0 %v348
  %v1226 = vpop.f32.mrb[0].mxu0
  %v1227 = vadd.f32 %v1006, %v1226
  %v1228 = vpop.f32.mrb[0].mxu0
  %v1229 = vpop.f32.mrb[0].mxu0
  %v1230 = vadd.f32 %v1006, %v1229
  %v1231 = vpop.f32.mrb[0].mxu0
  %1232 = vmatprep.mubr.bf16.mxu0 0
  %1233 = vmatmul.mubr.bf16.gmra.mrb[0].mxu0 %v351
  %v1234 = vpop.f32.mrb[0].mxu0
  %v1235 = vadd.f32 %v1006, %v1234
  %v1236 = vpop.f32.mrb[0].mxu0
  %v1237 = vpop.f32.mrb[0].mxu0
  %v1238 = vadd.f32 %v1006, %v1237
  %v1239 = vpop.f32.mrb[0].mxu0
  %1240 = vmatprep.mubr.bf16.mxu0 0
  %1241 = vmatmul.mubr.bf16.gmra.mrb[0].mxu0 %v354
  %v1242 = vpop.f32.mrb[0].mxu0
  %v1243 = vadd.f32 %v1006, %v1242
  %v1244 = vpop.f32.mrb[0].mxu0
  %v1245 = vpop.f32.mrb[0].mxu0
  %v1246 = vadd.f32 %v1006, %v1245
  %v1247 = vpop.f32.mrb[0].mxu0
  %1248 = vmatprep.mubr.bf16.mxu0 0
  %1249 = vmatmul.mubr.bf16.gmra.mrb[0].mxu0 %v357
  %v1250 = vpop.f32.mrb[0].mxu0
  %v1251 = vadd.f32 %v1006, %v1250
  %v1252 = vpop.f32.mrb[0].mxu0
  %v1253 = vpop.f32.mrb[0].mxu0
  %v1254 = vadd.f32 %v1006, %v1253
  %v1255 = vpop.f32.mrb[0].mxu0
  %1256 = vmatprep.mubr.bf16.mxu0 0
  %1257 = vmatmul.mubr.bf16.gmra.mrb[0].mxu0 %v360
  %v1258 = vpop.f32.mrb[0].mxu0
  %v1259 = vadd.f32 %v1006, %v1258
  %v1260 = vpop.f32.mrb[0].mxu0
  %v1261 = vpop.f32.mrb[0].mxu0
  %v1262 = vadd.f32 %v1006, %v1261
  %v1263 = vpop.f32.mrb[0].mxu0
  %1264 = vmatprep.mubr.bf16.mxu0 0
  %1265 = vmatmul.mubr.bf16.gmra.mrb[0].mxu0 %v363
  %v1266 = vpop.f32.mrb[0].mxu0
  %v1267 = vadd.f32 %v1006, %v1266
  %v1268 = vpop.f32.mrb[0].mxu0
  %v1269 = vpop.f32.mrb[0].mxu0
  %v1270 = vadd.f32 %v1006, %v1269
  %v1271 = vpop.f32.mrb[0].mxu0
  %1272 = vmatprep.mubr.bf16.mxu0 0
  %1273 = vmatmul.mubr.bf16.gmra.mrb[0].mxu0 %v366
  %v1274 = vpop.f32.mrb[0].mxu0
  %v1275 = vadd.f32 %v1006, %v1274
  %v1276 = vpop.f32.mrb[0].mxu0
  %v1277 = vpop.f32.mrb[0].mxu0
  %v1278 = vadd.f32 %v1006, %v1277
  %v1279 = vpop.f32.mrb[0].mxu0
  %1280 = vmatprep.mubr.bf16.mxu0 0
  %1281 = vmatmul.mubr.bf16.gmra.mrb[0].mxu0 %v369
  %v1282 = vpop.f32.mrb[0].mxu0
  %v1283 = vadd.f32 %v1006, %v1282
  %v1284 = vpop.f32.mrb[0].mxu0
  %v1285 = vpop.f32.mrb[0].mxu0
  %v1286 = vadd.f32 %v1006, %v1285
  %v1287 = vpop.f32.mrb[0].mxu0
  %1288 = vmatprep.mubr.bf16.mxu0 0
  %1289 = vmatmul.mubr.bf16.gmra.mrb[0].mxu0 %v372
  %v1290 = vpop.f32.mrb[0].mxu0
  %v1291 = vadd.f32 %v1006, %v1290
  %v1292 = vpop.f32.mrb[0].mxu0
  %v1293 = vpop.f32.mrb[0].mxu0
  %v1294 = vadd.f32 %v1006, %v1293
  %v1295 = vpop.f32.mrb[0].mxu0
  %1296 = vmatprep.mubr.bf16.mxu0 0
  %1297 = vmatmul.mubr.bf16.gmra.mrb[0].mxu0 %v375
  %v1298 = vpop.f32.mrb[0].mxu0
  %v1299 = vadd.f32 %v1006, %v1298
  %v1300 = vpop.f32.mrb[0].mxu0
  %v1301 = vpop.f32.mrb[0].mxu0
  %v1302 = vadd.f32 %v1006, %v1301
  %v1303 = vpop.f32.mrb[0].mxu0
  %1304 = vmatprep.mubr.bf16.mxu0 0
  %1305 = vmatmul.mubr.bf16.gmra.mrb[0].mxu0 %v378
  %v1306 = vpop.f32.mrb[0].mxu0
  %v1307 = vadd.f32 %v1006, %v1306
  %v1308 = vpop.f32.mrb[0].mxu0
  %v1309 = vpop.f32.mrb[0].mxu0
  %v1310 = vadd.f32 %v1006, %v1309
  %v1311 = vpop.f32.mrb[0].mxu0
  %1312 = vmatprep.mubr.bf16.mxu0 0
  %1313 = vmatmul.mubr.bf16.gmra.mrb[0].mxu0 %v381
  %v1314 = vpop.f32.mrb[0].mxu0
  %v1315 = vadd.f32 %v1006, %v1314
  %v1316 = vpop.f32.mrb[0].mxu0
  %v1317 = vpop.f32.mrb[0].mxu0
  %v1318 = vadd.f32 %v1006, %v1317
  %v1319 = vpop.f32.mrb[0].mxu0
  %1320 = vdwg.mxu0
  %vm1321 = vcmask 15360
  %1322 = vst.msk [vmem:[%s6] sm:$0xff] %vm1321, %v1067
  %1323 = vst.msk [vmem:[%s6 + $0x8] sm:$0xff] %vm1321, %v1070
  %1324 = vst.msk [vmem:[%s6 + $0x10] sm:$0xff] %vm1321, %v1075
  %1325 = vst.msk [vmem:[%s6 + $0x18] sm:$0xff] %vm1321, %v1078
  %1326 = vst.msk [vmem:[%s6 + $0x20] sm:$0xff] %vm1321, %v1083
  %1327 = vst.msk [vmem:[%s6 + $0x28] sm:$0xff] %vm1321, %v1086
  %1328 = vst.msk [vmem:[%s6 + $0x30] sm:$0xff] %vm1321, %v1091
  %1329 = vst.msk [vmem:[%s6 + $0x38] sm:$0xff] %vm1321, %v1094
  %1330 = vst.msk [vmem:[%s6 + $0x40] sm:$0xff] %vm1321, %v1099
  %1331 = vst.msk [vmem:[%s6 + $0x48] sm:$0xff] %vm1321, %v1102
  %1332 = vst.msk [vmem:[%s6 + $0x50] sm:$0xff] %vm1321, %v1107
  %1333 = vst.msk [vmem:[%s6 + $0x58] sm:$0xff] %vm1321, %v1110
  %1334 = vst.msk [vmem:[%s6 + $0x60] sm:$0xff] %vm1321, %v1115
  %1335 = vst.msk [vmem:[%s6 + $0x68] sm:$0xff] %vm1321, %v1118
  %1336 = vst.msk [vmem:[%s6 + $0x70] sm:$0xff] %vm1321, %v1123
  %1337 = vst.msk [vmem:[%s6 + $0x78] sm:$0xff] %vm1321, %v1126
  %1338 = vst.msk [vmem:[%s6 + $0x80] sm:$0xff] %vm1321, %v1131
  %1339 = vst.msk [vmem:[%s6 + $0x88] sm:$0xff] %vm1321, %v1134
  %1340 = vst.msk [vmem:[%s6 + $0x90] sm:$0xff] %vm1321, %v1139
  %1341 = vst.msk [vmem:[%s6 + $0x98] sm:$0xff] %vm1321, %v1142
  %1342 = vst.msk [vmem:[%s6 + $0xa0] sm:$0xff] %vm1321, %v1147
  %1343 = vst.msk [vmem:[%s6 + $0xa8] sm:$0xff] %vm1321, %v1150
  %1344 = vst.msk [vmem:[%s6 + $0xb0] sm:$0xff] %vm1321, %v1155
  %1345 = vst.msk [vmem:[%s6 + $0xb8] sm:$0xff] %vm1321, %v1158
  %1346 = vst.msk [vmem:[%s6 + $0xc0] sm:$0xff] %vm1321, %v1163
  %1347 = vst.msk [vmem:[%s6 + $0xc8] sm:$0xff] %vm1321, %v1166
  %1348 = vst.msk [vmem:[%s6 + $0xd0] sm:$0xff] %vm1321, %v1171
  %1349 = vst.msk [vmem:[%s6 + $0xd8] sm:$0xff] %vm1321, %v1174
  %1350 = vst.msk [vmem:[%s6 + $0xe0] sm:$0xff] %vm1321, %v1179
  %1351 = vst.msk [vmem:[%s6 + $0xe8] sm:$0xff] %vm1321, %v1182
  %1352 = vst.msk [vmem:[%s6 + $0xf0] sm:$0xff] %vm1321, %v1187
  %1353 = vst.msk [vmem:[%s6 + $0xf8] sm:$0xff] %vm1321, %v1190
  %1354 = vst.msk [vmem:[%s6 + $0x100] sm:$0xff] %vm1321, %v1195
  %1355 = vst.msk [vmem:[%s6 + $0x108] sm:$0xff] %vm1321, %v1198
  %1356 = vst.msk [vmem:[%s6 + $0x110] sm:$0xff] %vm1321, %v1203
  %1357 = vst.msk [vmem:[%s6 + $0x118] sm:$0xff] %vm1321, %v1206
  %1358 = vst.msk [vmem:[%s6 + $0x120] sm:$0xff] %vm1321, %v1211
  %1359 = vst.msk [vmem:[%s6 + $0x128] sm:$0xff] %vm1321, %v1214
  %1360 = vst.msk [vmem:[%s6 + $0x130] sm:$0xff] %vm1321, %v1219
  %1361 = vst.msk [vmem:[%s6 + $0x138] sm:$0xff] %vm1321, %v1222
  %1362 = vst.msk [vmem:[%s6 + $0x140] sm:$0xff] %vm1321, %v1227
  %1363 = vst.msk [vmem:[%s6 + $0x148] sm:$0xff] %vm1321, %v1230
  %1364 = vst.msk [vmem:[%s6 + $0x150] sm:$0xff] %vm1321, %v1235
  %1365 = vst.msk [vmem:[%s6 + $0x158] sm:$0xff] %vm1321, %v1238
  %1366 = vst.msk [vmem:[%s6 + $0x160] sm:$0xff] %vm1321, %v1243
  %1367 = vst.msk [vmem:[%s6 + $0x168] sm:$0xff] %vm1321, %v1246
  %1368 = vst.msk [vmem:[%s6 + $0x170] sm:$0xff] %vm1321, %v1251
  %1369 = vst.msk [vmem:[%s6 + $0x178] sm:$0xff] %vm1321, %v1254
  %1370 = vst.msk [vmem:[%s6 + $0x180] sm:$0xff] %vm1321, %v1259
  %1371 = vst.msk [vmem:[%s6 + $0x188] sm:$0xff] %vm1321, %v1262
  %1372 = vst.msk [vmem:[%s6 + $0x190] sm:$0xff] %vm1321, %v1267
  %1373 = vst.msk [vmem:[%s6 + $0x198] sm:$0xff] %vm1321, %v1270
  %1374 = vst.msk [vmem:[%s6 + $0x1a0] sm:$0xff] %vm1321, %v1275
  %1375 = vst.msk [vmem:[%s6 + $0x1a8] sm:$0xff] %vm1321, %v1278
  %1376 = vst.msk [vmem:[%s6 + $0x1b0] sm:$0xff] %vm1321, %v1283
  %1377 = vst.msk [vmem:[%s6 + $0x1b8] sm:$0xff] %vm1321, %v1286
  %1378 = vst.msk [vmem:[%s6 + $0x1c0] sm:$0xff] %vm1321, %v1291
  %1379 = vst.msk [vmem:[%s6 + $0x1c8] sm:$0xff] %vm1321, %v1294
  %1380 = vst.msk [vmem:[%s6 + $0x1d0] sm:$0xff] %vm1321, %v1299
  %1381 = vst.msk [vmem:[%s6 + $0x1d8] sm:$0xff] %vm1321, %v1302
  %1382 = vst.msk [vmem:[%s6 + $0x1e0] sm:$0xff] %vm1321, %v1307
  %1383 = vst.msk [vmem:[%s6 + $0x1e8] sm:$0xff] %vm1321, %v1310
  %1384 = vst.msk [vmem:[%s6 + $0x1f0] sm:$0xff] %vm1321, %v1315
  %1385 = vst.msk [vmem:[%s6 + $0x1f8] sm:$0xff] %vm1321, %v1318
  // Predicated region
  $region22: #{ctrgc_forward.2} parent=0 // pred_check
    _
  $region23: #{ctrgc_forward.2} parent=0 // pred_check_branch
    %1387 = sbr.rel (0) target = $region25
  $region24: #{ctrgc_forward.2} parent=0 // pred_region
    _
  $region25: #{ctrgc_forward.2} parent=0 // pred_fallthru
    _
  // Predicated region
  $region26: #{ctrgc_forward.2} parent=0 // pred_check
    _
  $region27: #{ctrgc_forward.2} parent=0 // pred_check_branch
    %1389 = sbr.rel (0) target = $region29
  $region28: #{ctrgc_forward.2} parent=0 // pred_region
    _
  $region29: #{ctrgc_forward.2} parent=0 // pred_fallthru
    _
  // Predicated region
  $region30: #{ctrgc_forward.2} parent=0 // pred_check
    _
  $region31: #{ctrgc_forward.2} parent=0 // pred_check_branch
    %1391 = sbr.rel (0) target = $region33
  $region32: #{ctrgc_forward.2} parent=0 // pred_region
    _
  $region33: #{ctrgc_forward.2} parent=0 // pred_fallthru
    _
  // Predicated region
  $region34: #{ctrgc_forward.2} parent=0 // pred_check
    _
  $region35: #{ctrgc_forward.2} parent=0 // pred_check_branch
    %1393 = sbr.rel (0) target = $region37
  $region36: #{ctrgc_forward.2} parent=0 // pred_region
    _
  $region37: #{ctrgc_forward.2} parent=0 // pred_fallthru
    _

// kernel: ctrgc_forward.3
$region0: #{ctrgc_forward.3}
  #allocation0 [shape = 'u32[]', space=smem, size = 0x4, offset = 0x4, fixed_abs, tag = 'smem constant byte address 0x4 - core index']
  #allocation1 [shape = 'u32[144,128]{1,0:T(1,128)}', space=vmem, size = 0x12000, scoped, tag = 'internal scratch']
  #allocation2 [shape = 'f32[256,64]{1,0:T(8,128)}', space=vmem, size = 0x20000, scoped, tag = 'scratch operand']
  %s0 = inlined_call_operand.vmem [shape: f32[2,16,16], index: 0, kind: input, shape index: {}]
  %s1 = inlined_call_operand.vmem [shape: f32[2,16,16], index: 1, kind: input, shape index: {}]
  %s2 = inlined_call_operand.vmem [shape: f32[16,16], index: 2, kind: input, shape index: {}]
  %s3 = inlined_call_operand.vmem [shape: bf16[2,16,16,64], index: 3, kind: input, shape index: {}]
  %s4 = inlined_call_operand.vmem [shape: bf16[2,256,8], index: 4, kind: input, shape index: {}]
  %s5 = inlined_call_operand.vmem [shape: bf16[8,64], index: 5, kind: input, shape index: {}]
  %s6 = inlined_call_operand.vmem [shape: f32[1,64], index: 6, kind: input, shape index: {}]
  %s7 = inlined_call_operand.vmem [shape: f32[2,16,16,64], index: 7, kind: output, shape index: {}]
  %s8 = sld [smem:[#allocation0]]
  $region65: #{ctrgc_forward.3} parent=0
    _
  %s10 = ssub.s32 1, %s8
  %s11 = scalar_select 0, %s10, %s8
  loop: start=0, step=1, limit=4
  $region2: #{ctrgc_forward.3} parent=0 // loop_pre_header
    _
  $region3: #{ctrgc_forward.3} parent=0 // loop_header
    %s13 = sphi 0, %s17
    %p14 = scmp.ge.s32.totalorder %s13, 4
    %s20 = sphi 0, %s32
    %s21 = sphi 0, %s28
    %s22 = sphi 0, %s20
    %s23 = sphi 0, %s21
    %s24 = sphi 0, %s22
    %s25 = sphi 0, %s23
    %s37 = sphi 0, %s39
    %s40 = sphi 0, %s37
    %s41 = sphi 0, %s40
    %s57 = sphi 0, %s41
    %s65 = sphi 0, %s67
    %s68 = sphi 0, %s65
    %s69 = sphi 0, %s68
    %s85 = sphi 0, %s69
    %s89 = sphi 0, %s89
    %s91 = sphi 0, %s89
    %s92 = sphi 0, %s91
    %s106 = sphi 0, %s92
    %s114 = sphi 0, %s116
    %s117 = sphi 0, %s114
    %s118 = sphi 0, %s117
    %s134 = sphi 0, %s118
    %s140 = sphi 0, %s142
    %s143 = sphi 0, %s140
    %s144 = sphi 0, %s143
    %s160 = sphi 0, %s144
    %s164 = sphi 0, %s164
    %s166 = sphi 0, %s164
    %s167 = sphi 0, %s166
    %s181 = sphi 0, %s167
    %s185 = sphi 0, %s185
    %s187 = sphi 0, %s185
    %s188 = sphi 0, %s187
    %s202 = sphi 0, %s188
    %s210 = sphi 0, %s212
    %s213 = sphi 0, %s210
    %s214 = sphi 0, %s213
    %s230 = sphi 0, %s214
  $region4: #{ctrgc_forward.3} parent=0 // loop_header_branch
    %16 = sbr.rel (%p14) target = $region8
  $region5: #{ctrgc_forward.3} parent=0 // loop_body
    %s18 = ssub.s32 %s13, 1
    %s19 = ssub.s32 %s13, 2
    %s26 = sadd.s32 1, %s21
    %p27 = scmp.ge.s32.totalorder %s26, 1
    %s28 = scalar_select %p27, 0, %s26
    %s29 = sadd.s32 1, %s20
    %s30 = scalar_select %p27, %s29, %s20
    %p31 = scmp.ge.s32.totalorder %s30, 2
    %s32 = scalar_select %p31, 0, %s30
    %s33 = ssub.s32 %s20, %s32
    %s34 = ssub.s32 %s21, %s28
    %s35 = sor.u32 %s33, %s34
    %p36 = scmp.eq.s32.totalorder %s35, 0
    %s38 = sadd.s32 %s37, 1
    %s39 = scalar_select %p36, %s37, %s38
    %p42 = pneg %p36
    %p43 = scmp.eq.s32.totalorder %s13, 1
    %p44 = por %p42, %p43
    %p45 = scmp.ne.s32.totalorder %s37, %s40
    %p46 = scmp.eq.s32.totalorder %s13, 0
    %p47 = por %p45, %p46
    %p48 = scmp.ne.s32.totalorder %s37, %s40
    %p49 = scmp.eq.s32.totalorder %s18, 1
    %p50 = por %p48, %p49
    %p51 = scmp.ne.s32.totalorder %s40, %s41
    %p52 = scmp.eq.s32.totalorder %s18, 0
    %p53 = por %p51, %p52
    %p54 = scmp.ne.s32.totalorder %s40, %s41
    %p55 = scmp.eq.s32.totalorder %s19, 1
    %p56 = por %p54, %p55
    %p58 = scmp.ne.s32.totalorder %s41, %s57
    %p59 = scmp.eq.s32.totalorder %s19, 0
    %p60 = por %p58, %p59
    %s61 = ssub.s32 %s20, %s32
    %s62 = ssub.s32 %s21, %s28
    %s63 = sor.u32 %s61, %s62
    %p64 = scmp.eq.s32.totalorder %s63, 0
    %s66 = sadd.s32 %s65, 1
    %s67 = scalar_select %p64, %s65, %s66
    %p70 = pneg %p64
    %p71 = scmp.eq.s32.totalorder %s13, 1
    %p72 = por %p70, %p71
    %p73 = scmp.ne.s32.totalorder %s65, %s68
    %p74 = scmp.eq.s32.totalorder %s13, 0
    %p75 = por %p73, %p74
    %p76 = scmp.ne.s32.totalorder %s65, %s68
    %p77 = scmp.eq.s32.totalorder %s18, 1
    %p78 = por %p76, %p77
    %p79 = scmp.ne.s32.totalorder %s68, %s69
    %p80 = scmp.eq.s32.totalorder %s18, 0
    %p81 = por %p79, %p80
    %p82 = scmp.ne.s32.totalorder %s68, %s69
    %p83 = scmp.eq.s32.totalorder %s19, 1
    %p84 = por %p82, %p83
    %p86 = scmp.ne.s32.totalorder %s69, %s85
    %p87 = scmp.eq.s32.totalorder %s19, 0
    %p88 = por %p86, %p87
    %s90 = sadd.s32 %s89, 1
    %p93 = scmp.eq.s32.totalorder %s13, 1
    %p94 = scmp.ne.s32.totalorder %s89, %s91
    %p95 = scmp.eq.s32.totalorder %s13, 0
    %p96 = por %p94, %p95
    %p97 = scmp.ne.s32.totalorder %s89, %s91
    %p98 = scmp.eq.s32.totalorder %s18, 1
    %p99 = por %p97, %p98
    %p100 = scmp.ne.s32.totalorder %s91, %s92
    %p101 = scmp.eq.s32.totalorder %s18, 0
    %p102 = por %p100, %p101
    %p103 = scmp.ne.s32.totalorder %s91, %s92
    %p104 = scmp.eq.s32.totalorder %s19, 1
    %p105 = por %p103, %p104
    %p107 = scmp.ne.s32.totalorder %s92, %s106
    %p108 = scmp.eq.s32.totalorder %s19, 0
    %p109 = por %p107, %p108
    %s110 = ssub.s32 %s20, %s32
    %s111 = ssub.s32 %s21, %s28
    %s112 = sor.u32 %s110, %s111
    %p113 = scmp.eq.s32.totalorder %s112, 0
    %s115 = sadd.s32 %s114, 1
    %s116 = scalar_select %p113, %s114, %s115
    %p119 = pneg %p113
    %p120 = scmp.eq.s32.totalorder %s13, 1
    %p121 = por %p119, %p120
    %p122 = scmp.ne.s32.totalorder %s114, %s117
    %p123 = scmp.eq.s32.totalorder %s13, 0
    %p124 = por %p122, %p123
    %p125 = scmp.ne.s32.totalorder %s114, %s117
    %p126 = scmp.eq.s32.totalorder %s18, 1
    %p127 = por %p125, %p126
    %p128 = scmp.ne.s32.totalorder %s117, %s118
    %p129 = scmp.eq.s32.totalorder %s18, 0
    %p130 = por %p128, %p129
    %p131 = scmp.ne.s32.totalorder %s117, %s118
    %p132 = scmp.eq.s32.totalorder %s19, 1
    %p133 = por %p131, %p132
    %p135 = scmp.ne.s32.totalorder %s118, %s134
    %p136 = scmp.eq.s32.totalorder %s19, 0
    %p137 = por %p135, %p136
    %s138 = ssub.s32 %s20, %s32
    %p139 = scmp.eq.s32.totalorder %s138, 0
    %s141 = sadd.s32 %s140, 1
    %s142 = scalar_select %p139, %s140, %s141
    %p145 = pneg %p139
    %p146 = scmp.eq.s32.totalorder %s13, 1
    %p147 = por %p145, %p146
    %p148 = scmp.ne.s32.totalorder %s140, %s143
    %p149 = scmp.eq.s32.totalorder %s13, 0
    %p150 = por %p148, %p149
    %p151 = scmp.ne.s32.totalorder %s140, %s143
    %p152 = scmp.eq.s32.totalorder %s18, 1
    %p153 = por %p151, %p152
    %p154 = scmp.ne.s32.totalorder %s143, %s144
    %p155 = scmp.eq.s32.totalorder %s18, 0
    %p156 = por %p154, %p155
    %p157 = scmp.ne.s32.totalorder %s143, %s144
    %p158 = scmp.eq.s32.totalorder %s19, 1
    %p159 = por %p157, %p158
    %p161 = scmp.ne.s32.totalorder %s144, %s160
    %p162 = scmp.eq.s32.totalorder %s19, 0
    %p163 = por %p161, %p162
    %s165 = sadd.s32 %s164, 1
    %p168 = scmp.eq.s32.totalorder %s13, 1
    %p169 = scmp.ne.s32.totalorder %s164, %s166
    %p170 = scmp.eq.s32.totalorder %s13, 0
    %p171 = por %p169, %p170
    %p172 = scmp.ne.s32.totalorder %s164, %s166
    %p173 = scmp.eq.s32.totalorder %s18, 1
    %p174 = por %p172, %p173
    %p175 = scmp.ne.s32.totalorder %s166, %s167
    %p176 = scmp.eq.s32.totalorder %s18, 0
    %p177 = por %p175, %p176
    %p178 = scmp.ne.s32.totalorder %s166, %s167
    %p179 = scmp.eq.s32.totalorder %s19, 1
    %p180 = por %p178, %p179
    %p182 = scmp.ne.s32.totalorder %s167, %s181
    %p183 = scmp.eq.s32.totalorder %s19, 0
    %p184 = por %p182, %p183
    %s186 = sadd.s32 %s185, 1
    %p189 = scmp.eq.s32.totalorder %s13, 1
    %p190 = scmp.ne.s32.totalorder %s185, %s187
    %p191 = scmp.eq.s32.totalorder %s13, 0
    %p192 = por %p190, %p191
    %p193 = scmp.ne.s32.totalorder %s185, %s187
    %p194 = scmp.eq.s32.totalorder %s18, 1
    %p195 = por %p193, %p194
    %p196 = scmp.ne.s32.totalorder %s187, %s188
    %p197 = scmp.eq.s32.totalorder %s18, 0
    %p198 = por %p196, %p197
    %p199 = scmp.ne.s32.totalorder %s187, %s188
    %p200 = scmp.eq.s32.totalorder %s19, 1
    %p201 = por %p199, %p200
    %p203 = scmp.ne.s32.totalorder %s188, %s202
    %p204 = scmp.eq.s32.totalorder %s19, 0
    %p205 = por %p203, %p204
    %s206 = ssub.s32 %s20, %s32
    %s207 = ssub.s32 %s21, %s28
    %s208 = sor.u32 %s206, %s207
    %p209 = scmp.eq.s32.totalorder %s208, 0
    %s211 = sadd.s32 %s210, 1
    %s212 = scalar_select %p209, %s210, %s211
    %p215 = pneg %p209
    %p216 = scmp.eq.s32.totalorder %s13, 1
    %p217 = por %p215, %p216
    %p218 = scmp.ne.s32.totalorder %s210, %s213
    %p219 = scmp.eq.s32.totalorder %s13, 0
    %p220 = por %p218, %p219
    %p221 = scmp.ne.s32.totalorder %s210, %s213
    %p222 = scmp.eq.s32.totalorder %s18, 1
    %p223 = por %p221, %p222
    %p224 = scmp.ne.s32.totalorder %s213, %s214
    %p225 = scmp.eq.s32.totalorder %s18, 0
    %p226 = por %p224, %p225
    %p227 = scmp.ne.s32.totalorder %s213, %s214
    %p228 = scmp.eq.s32.totalorder %s19, 1
    %p229 = por %p227, %p228
    %p231 = scmp.ne.s32.totalorder %s214, %s230
    %p232 = scmp.eq.s32.totalorder %s19, 0
    %p233 = por %p231, %p232
    %p234 = scmp.le.s32.totalorder 1, %s13
    %p235 = scmp.lt.s32.totalorder %s13, 3
    %p236 = pnand %p234, %p235
    %p237 = pneg %p236
    // Predicated region
    $region9: #{ctrgc_forward.3} parent=5 // pred_check
      _
    $region10: #{ctrgc_forward.3} parent=5 // pred_check_branch
      %239 = sbr.rel (%p236) target = $region12
    $region11: #{ctrgc_forward.3} parent=5 // pred_region
      %s240 = ssub.s32 %s13, 1
      // Predicated region
      $region13: #{ctrgc_forward.3} parent=11 // pred_check
        %p241 = pneg %p102
      $region14: #{ctrgc_forward.3} parent=11 // pred_check_branch
        %243 = sbr.rel (%p241) target = $region16
      $region15: #{ctrgc_forward.3} parent=11 // pred_region
        _
      $region16: #{ctrgc_forward.3} parent=11 // pred_fallthru
        _
      // Predicated region
      $region17: #{ctrgc_forward.3} parent=11 // pred_check
        %p244 = pneg %p177
      $region18: #{ctrgc_forward.3} parent=11 // pred_check_branch
        %246 = sbr.rel (%p244) target = $region20
      $region19: #{ctrgc_forward.3} parent=11 // pred_region
        _
      $region20: #{ctrgc_forward.3} parent=11 // pred_fallthru
        _
      // Predicated region
      $region21: #{ctrgc_forward.3} parent=11 // pred_check
        %p247 = pneg %p198
      $region22: #{ctrgc_forward.3} parent=11 // pred_check_branch
        %249 = sbr.rel (%p247) target = $region24
      $region23: #{ctrgc_forward.3} parent=11 // pred_region
        _
      $region24: #{ctrgc_forward.3} parent=11 // pred_fallthru
        _
    $region12: #{ctrgc_forward.3} parent=5 // pred_fallthru
      _
    %p250 = scmp.lt.s32.totalorder %s13, 2
    // Predicated region
    $region25: #{ctrgc_forward.3} parent=5 // pred_check
      %p251 = pneg %p250
    $region26: #{ctrgc_forward.3} parent=5 // pred_check_branch
      %253 = sbr.rel (%p251) target = $region28
    $region27: #{ctrgc_forward.3} parent=5 // pred_region
      // Predicated region
      $region29: #{ctrgc_forward.3} parent=27 // pred_check
        %p254 = pneg %p47
      $region30: #{ctrgc_forward.3} parent=27 // pred_check_branch
        %256 = sbr.rel (%p254) target = $region32
      $region31: #{ctrgc_forward.3} parent=27 // pred_region
        %s257 = smul.u32 2, %s21
        %p258 = scmp.lt.s32.totalorder %s20, 1
        %s259 = scalar_select %p258, %s20, 1
        %p260 = scmp.lt.s32.totalorder %s257, 1
        %s261 = scalar_select %p260, %s257, 1
        %s262 = smul.addr %s259, 2
        %s263 = sadd.s32 %s261, %s262
        %s264 = smul.addr %s263, 8
        %s265 = scalar_lea.vmem %s0, %s264
        %s266 = smul.u32 2, %s21
      $region32: #{ctrgc_forward.3} parent=27 // pred_fallthru
        _
      // Predicated region
      $region33: #{ctrgc_forward.3} parent=27 // pred_check
        %p267 = pneg %p75
      $region34: #{ctrgc_forward.3} parent=27 // pred_check_branch
        %269 = sbr.rel (%p267) target = $region36
      $region35: #{ctrgc_forward.3} parent=27 // pred_region
        %s270 = smul.u32 2, %s21
        %p271 = scmp.lt.s32.totalorder %s20, 1
        %s272 = scalar_select %p271, %s20, 1
        %p273 = scmp.lt.s32.totalorder %s270, 1
        %s274 = scalar_select %p273, %s270, 1
        %s275 = smul.addr %s272, 2
        %s276 = sadd.s32 %s274, %s275
        %s277 = smul.addr %s276, 8
        %s278 = scalar_lea.vmem %s1, %s277
        %s279 = smul.u32 2, %s21
      $region36: #{ctrgc_forward.3} parent=27 // pred_fallthru
        _
      // Predicated region
      $region37: #{ctrgc_forward.3} parent=27 // pred_check
        %p280 = pneg %p124
      $region38: #{ctrgc_forward.3} parent=27 // pred_check_branch
        %282 = sbr.rel (%p280) target = $region40
      $region39: #{ctrgc_forward.3} parent=27 // pred_region
        %s283 = smul.u32 16, %s21
        %p284 = scmp.lt.s32.totalorder %s20, 1
        %s285 = scalar_select %p284, %s20, 1
        %p286 = scmp.lt.s32.totalorder %s283, 15
        %s287 = scalar_select %p286, %s283, 15
        %s288 = smul.addr %s287, 2
        %s289 = smul.addr %s285, 32
        %s290 = sadd.s32 %s288, %s289
        %s291 = smul.addr %s290, 4
        %s292 = scalar_lea.vmem %s3, %s291
        %s293 = smul.u32 16, %s21
      $region40: #{ctrgc_forward.3} parent=27 // pred_fallthru
        _
      // Predicated region
      $region41: #{ctrgc_forward.3} parent=27 // pred_check
        %p294 = pneg %p150
      $region42: #{ctrgc_forward.3} parent=27 // pred_check_branch
        %296 = sbr.rel (%p294) target = $region44
      $region43: #{ctrgc_forward.3} parent=27 // pred_region
        %p297 = scmp.lt.s32.totalorder %s20, 1
        %s298 = scalar_select %p297, %s20, 1
        %s299 = smul.addr %s298, 32
        %s300 = smul.addr %s299, 4
        %s301 = scalar_lea.vmem %s4, %s300
      $region44: #{ctrgc_forward.3} parent=27 // pred_fallthru
        _
    $region28: #{ctrgc_forward.3} parent=5 // pred_fallthru
      _
    %p302 = scmp.le.s32.totalorder 1, %s13
    %p303 = scmp.lt.s32.totalorder %s13, 3
    %p304 = pnand %p302, %p303
    %p305 = pneg %p304
    // Predicated region
    $region45: #{ctrgc_forward.3} parent=5 // pred_check
      _
    $region46: #{ctrgc_forward.3} parent=5 // pred_check_branch
      %307 = sbr.rel (%p304) target = $region48
    $region47: #{ctrgc_forward.3} parent=5 // pred_region
      %s308 = ssub.s32 %s13, 1
      %s309 = smul.u32 2, %s23
      %p310 = scmp.lt.s32.totalorder %s22, 1
      %s311 = scalar_select %p310, %s22, 1
      %p312 = scmp.lt.s32.totalorder %s309, 1
      %s313 = scalar_select %p312, %s309, 1
      %s314 = smul.addr %s311, 2
      %s315 = sadd.s32 %s313, %s314
      %s316 = smul.addr %s315, 8
      %s317 = scalar_lea.vmem %s0, %s316
      %p318 = pneg %p53
      %p319 = pneg %p50
      %s320 = smul.u32 2, %s23
      %p321 = scmp.lt.s32.totalorder %s22, 1
      %s322 = scalar_select %p321, %s22, 1
      %p323 = scmp.lt.s32.totalorder %s320, 1
      %s324 = scalar_select %p323, %s320, 1
      %s325 = smul.addr %s322, 2
      %s326 = sadd.s32 %s324, %s325
      %s327 = smul.addr %s326, 8
      %s328 = scalar_lea.vmem %s1, %s327
      %p329 = pneg %p81
      %p330 = pneg %p78
      %p331 = pneg %p102
      %p332 = pneg %p99
      %s333 = smul.u32 16, %s23
      %p334 = scmp.lt.s32.totalorder %s22, 1
      %s335 = scalar_select %p334, %s22, 1
      %p336 = scmp.lt.s32.totalorder %s333, 15
      %s337 = scalar_select %p336, %s333, 15
      %s338 = smul.addr %s337, 2
      %s339 = smul.addr %s335, 32
      %s340 = sadd.s32 %s338, %s339
      %s341 = smul.addr %s340, 4
      %s342 = scalar_lea.vmem %s3, %s341
      %p343 = pneg %p130
      %p344 = pneg %p127
      %p345 = scmp.lt.s32.totalorder %s22, 1
      %s346 = scalar_select %p345, %s22, 1
      %s347 = smul.addr %s346, 32
      %s348 = smul.addr %s347, 4
      %s349 = scalar_lea.vmem %s4, %s348
      %p350 = pneg %p156
      %p351 = pneg %p153
      %p352 = pneg %p177
      %p353 = pneg %p174
      %p354 = pneg %p198
      %p355 = pneg %p195
      %p356 = pneg %p226
      %p357 = pneg %p223
      %s358 = smul.u32 16, %s23
      %p359 = scmp.lt.s32.totalorder %s22, 1
      %s360 = scalar_select %p359, %s22, 1
      %p361 = scmp.lt.s32.totalorder %s358, 15
      %s362 = scalar_select %p361, %s358, 15
      %s363 = smul.addr %s362, 2
      %s364 = smul.addr %s360, 32
      %s365 = sadd.s32 %s363, %s364
      %s366 = smul.addr %s365, 8
      %s367 = scalar_lea.vmem %s7, %s366
      %s368 = smul.u32 2, %s23
      %p369 = scmp.lt.s32.totalorder %s22, 1
      %s370 = scalar_select %p369, %s22, 1
      %p371 = scmp.lt.s32.totalorder %s368, 1
      %s372 = scalar_select %p371, %s368, 1
      %s373 = smul.addr %s370, 2
      %s374 = sadd.s32 %s372, %s373
      %s375 = smul.addr %s374, 8
      %s376 = scalar_lea.vmem %s0, %s375
      %s377 = smul.u32 2, %s23
      %s378 = smul.u32 2, %s23
      %p379 = scmp.lt.s32.totalorder %s22, 1
      %s380 = scalar_select %p379, %s22, 1
      %p381 = scmp.lt.s32.totalorder %s378, 1
      %s382 = scalar_select %p381, %s378, 1
      %s383 = smul.addr %s380, 2
      %s384 = sadd.s32 %s382, %s383
      %s385 = smul.addr %s384, 8
      %s386 = scalar_lea.vmem %s1, %s385
      %s387 = smul.u32 2, %s23
      %s388 = smul.u32 16, %s23
      %p389 = scmp.lt.s32.totalorder %s22, 1
      %s390 = scalar_select %p389, %s22, 1
      %p391 = scmp.lt.s32.totalorder %s388, 15
      %s392 = scalar_select %p391, %s388, 15
      %s393 = smul.addr %s392, 2
      %s394 = smul.addr %s390, 32
      %s395 = sadd.s32 %s393, %s394
      %s396 = smul.addr %s395, 4
      %s397 = scalar_lea.vmem %s3, %s396
      %s398 = smul.u32 16, %s23
      %p399 = scmp.lt.s32.totalorder %s22, 1
      %s400 = scalar_select %p399, %s22, 1
      %s401 = smul.addr %s400, 32
      %s402 = smul.addr %s401, 4
      %s403 = scalar_lea.vmem %s4, %s402
      %s404 = smul.u32 16, %s23
      %p405 = scmp.lt.s32.totalorder %s22, 1
      %s406 = scalar_select %p405, %s22, 1
      %p407 = scmp.lt.s32.totalorder %s404, 15
      %s408 = scalar_select %p407, %s404, 15
      %s409 = smul.addr %s408, 2
      %s410 = smul.addr %s406, 32
      %s411 = sadd.s32 %s409, %s410
      %s412 = smul.addr %s411, 8
      %s413 = scalar_lea.vmem %s7, %s412
      %s414 = smul.u32 16, %s23
      %p416 = scmp.eq.s32.totalorder %s23, 0
      // Predicated region
      $region49: #{ctrgc_forward.3} parent=47 // pred_check
        %p417 = pneg %p416
      $region50: #{ctrgc_forward.3} parent=47 // pred_check_branch
        %419 = sbr.rel (%p417) target = $region52
      $region51: #{ctrgc_forward.3} parent=47 // pred_region
        %v420 = vld [vmem:[%s403] sm:$0xf]
        %v421 = vld [vmem:[%s403 + $0x4] sm:$0xf]
        %v422 = vld [vmem:[%s403 + $0x8] sm:$0xf]
        %v423 = vld [vmem:[%s403 + $0xc] sm:$0xf]
        %v424 = vld [vmem:[%s403 + $0x10] sm:$0xf]
        %v425 = vld [vmem:[%s403 + $0x14] sm:$0xf]
        %v426 = vld [vmem:[%s403 + $0x18] sm:$0xf]
        %v427 = vld [vmem:[%s403 + $0x1c] sm:$0xf]
        %v428 = vld [vmem:[%s403 + $0x20] sm:$0xf]
        %v429 = vld [vmem:[%s403 + $0x24] sm:$0xf]
        %v430 = vld [vmem:[%s403 + $0x28] sm:$0xf]
        %v431 = vld [vmem:[%s403 + $0x2c] sm:$0xf]
        %v432 = vld [vmem:[%s403 + $0x30] sm:$0xf]
        %v433 = vld [vmem:[%s403 + $0x34] sm:$0xf]
        %v434 = vld [vmem:[%s403 + $0x38] sm:$0xf]
        %v435 = vld [vmem:[%s403 + $0x3c] sm:$0xf]
        %v436 = vld [vmem:[%s403 + $0x40] sm:$0xf]
        %v437 = vld [vmem:[%s403 + $0x44] sm:$0xf]
        %v438 = vld [vmem:[%s403 + $0x48] sm:$0xf]
        %v439 = vld [vmem:[%s403 + $0x4c] sm:$0xf]
        %v440 = vld [vmem:[%s403 + $0x50] sm:$0xf]
        %v441 = vld [vmem:[%s403 + $0x54] sm:$0xf]
        %v442 = vld [vmem:[%s403 + $0x58] sm:$0xf]
        %v443 = vld [vmem:[%s403 + $0x5c] sm:$0xf]
        %v444 = vld [vmem:[%s403 + $0x60] sm:$0xf]
        %v445 = vld [vmem:[%s403 + $0x64] sm:$0xf]
        %v446 = vld [vmem:[%s403 + $0x68] sm:$0xf]
        %v447 = vld [vmem:[%s403 + $0x6c] sm:$0xf]
        %v448 = vld [vmem:[%s403 + $0x70] sm:$0xf]
        %v449 = vld [vmem:[%s403 + $0x74] sm:$0xf]
        %v450 = vld [vmem:[%s403 + $0x78] sm:$0xf]
        %v451 = vld [vmem:[%s403 + $0x7c] sm:$0xf]
        %v452 = vld [vmem:[%s5] sm:$0xf]
        %v453 = vld [vmem:[%s6] sm:$0x1]
        %v455 = vlaneseq
        %v456 = vshrl.u32 %v455, 7
        %v457 = vsub.s32 0, %v456
        %v458 = vrot.slane %v453, %v457
        %v492 = vunpack.c.l.b16 %v420
        %v493 = vunpack.c.l.b16 %v421
        %v494 = vunpack.c.l.b16 %v422
        %v495 = vunpack.c.l.b16 %v423
        %v496 = vunpack.c.l.b16 %v424
        %v497 = vunpack.c.l.b16 %v425
        %v498 = vunpack.c.l.b16 %v426
        %v499 = vunpack.c.l.b16 %v427
        %v500 = vunpack.c.l.b16 %v428
        %v501 = vunpack.c.l.b16 %v429
        %v502 = vunpack.c.l.b16 %v430
        %v503 = vunpack.c.l.b16 %v431
        %v504 = vunpack.c.l.b16 %v432
        %v505 = vunpack.c.l.b16 %v433
        %v506 = vunpack.c.l.b16 %v434
        %v507 = vunpack.c.l.b16 %v435
        %v508 = vunpack.c.l.b16 %v436
        %v509 = vunpack.c.l.b16 %v437
        %v510 = vunpack.c.l.b16 %v438
        %v511 = vunpack.c.l.b16 %v439
        %v512 = vunpack.c.l.b16 %v440
        %v513 = vunpack.c.l.b16 %v441
        %v514 = vunpack.c.l.b16 %v442
        %v515 = vunpack.c.l.b16 %v443
        %v516 = vunpack.c.l.b16 %v444
        %v517 = vunpack.c.l.b16 %v445
        %v518 = vunpack.c.l.b16 %v446
        %v519 = vunpack.c.l.b16 %v447
        %v520 = vunpack.c.l.b16 %v448
        %v521 = vunpack.c.l.b16 %v449
        %v522 = vunpack.c.l.b16 %v450
        %v523 = vunpack.c.l.b16 %v451
        %v524 = vpack.c.b16 %v493, %v492
        %v525 = vpack.c.b16 %v495, %v494
        %v526 = vpack.c.b16 %v497, %v496
        %v527 = vpack.c.b16 %v499, %v498
        %v528 = vpack.c.b16 %v501, %v500
        %v529 = vpack.c.b16 %v503, %v502
        %v530 = vpack.c.b16 %v505, %v504
        %v531 = vpack.c.b16 %v507, %v506
        %v532 = vpack.c.b16 %v509, %v508
        %v533 = vpack.c.b16 %v511, %v510
        %v534 = vpack.c.b16 %v513, %v512
        %v535 = vpack.c.b16 %v515, %v514
        %v536 = vpack.c.b16 %v517, %v516
        %v537 = vpack.c.b16 %v519, %v518
        %v538 = vpack.c.b16 %v521, %v520
        %v539 = vpack.c.b16 %v523, %v522
        %vm540 = vcmask 64512
        %v542 = vsel %vm540, %v524, 0
        %v545 = vsel %vm540, %v525, 0
        %v548 = vsel %vm540, %v526, 0
        %v551 = vsel %vm540, %v527, 0
        %v554 = vsel %vm540, %v528, 0
        %v557 = vsel %vm540, %v529, 0
        %v560 = vsel %vm540, %v530, 0
        %v563 = vsel %vm540, %v531, 0
        %v566 = vsel %vm540, %v532, 0
        %v569 = vsel %vm540, %v533, 0
        %v572 = vsel %vm540, %v534, 0
        %v575 = vsel %vm540, %v535, 0
        %v578 = vsel %vm540, %v536, 0
        %v581 = vsel %vm540, %v537, 0
        %v584 = vsel %vm540, %v538, 0
        %v587 = vsel %vm540, %v539, 0
        %vm589 = vcmask 1043456
        %v591 = vsel %vm589, %v452, 0
        %593 = vmatprep.subr.bf16.mxu0 0
        %594 = vmatpush1.bf16.msra.mxu0 %v591
        %595 = vmatprep.subr.bf16.mxu0 0
        %596 = vmatpush1.bf16.msra.mxu0 0
        %597 = vmatprep.subr.bf16.mxu0 0
        %598 = vmatpush1.bf16.msra.mxu0 0
        %599 = vmatprep.subr.bf16.mxu0 0
        %600 = vmatpush1.bf16.msra.mxu0 0
        %601 = vmatprep.subr.bf16.mxu0 0
        %602 = vmatpush1.bf16.msra.mxu0 0
        %603 = vmatprep.subr.bf16.mxu0 0
        %604 = vmatpush1.bf16.msra.mxu0 0
        %605 = vmatprep.subr.bf16.mxu0 0
        %606 = vmatpush1.bf16.msra.mxu0 0
        %607 = vmatprep.subr.bf16.mxu0 0
        %608 = vmatpush1.bf16.msra.mxu0 0
        %609 = vmatprep.subr.bf16.mxu0 0
        %610 = vmatpush1.bf16.msra.mxu0 0
        %611 = vmatprep.subr.bf16.mxu0 0
        %612 = vmatpush1.bf16.msra.mxu0 0
        %613 = vmatprep.subr.bf16.mxu0 0
        %614 = vmatpush1.bf16.msra.mxu0 0
        %615 = vmatprep.subr.bf16.mxu0 0
        %616 = vmatpush1.bf16.msra.mxu0 0
        %617 = vmatprep.subr.bf16.mxu0 0
        %618 = vmatpush1.bf16.msra.mxu0 0
        %619 = vmatprep.subr.bf16.mxu0 0
        %620 = vmatpush1.bf16.msra.mxu0 0
        %621 = vmatprep.subr.bf16.mxu0 0
        %622 = vmatpush1.bf16.msra.mxu0 0
        %623 = vmatprep.subr.bf16.mxu0 0
        %624 = vmatpush1.bf16.msra.mxu0 0
        %625 = vmatprep.mubr.bf16.mxu0 0
        %626 = vmatmul.mubr.bf16.gmra.mrb[0].mxu0 %v542
        %v627 = vpop.f32.mrb[0].mxu0
        %v628 = vadd.f32 %v458, %v627
        %v629 = vpop.f32.mrb[0].mxu0
        %v630 = vpop.f32.mrb[0].mxu0
        %v631 = vadd.f32 %v458, %v630
        %v632 = vpop.f32.mrb[0].mxu0
        %633 = vmatprep.mubr.bf16.mxu0 0
        %634 = vmatmul.mubr.bf16.gmra.mrb[0].mxu0 %v545
        %v635 = vpop.f32.mrb[0].mxu0
        %v636 = vadd.f32 %v458, %v635
        %v637 = vpop.f32.mrb[0].mxu0
        %v638 = vpop.f32.mrb[0].mxu0
        %v639 = vadd.f32 %v458, %v638
        %v640 = vpop.f32.mrb[0].mxu0
        %641 = vmatprep.mubr.bf16.mxu0 0
        %642 = vmatmul.mubr.bf16.gmra.mrb[0].mxu0 %v548
        %v643 = vpop.f32.mrb[0].mxu0
        %v644 = vadd.f32 %v458, %v643
        %v645 = vpop.f32.mrb[0].mxu0
        %v646 = vpop.f32.mrb[0].mxu0
        %v647 = vadd.f32 %v458, %v646
        %v648 = vpop.f32.mrb[0].mxu0
        %649 = vmatprep.mubr.bf16.mxu0 0
        %650 = vmatmul.mubr.bf16.gmra.mrb[0].mxu0 %v551
        %v651 = vpop.f32.mrb[0].mxu0
        %v652 = vadd.f32 %v458, %v651
        %v653 = vpop.f32.mrb[0].mxu0
        %v654 = vpop.f32.mrb[0].mxu0
        %v655 = vadd.f32 %v458, %v654
        %v656 = vpop.f32.mrb[0].mxu0
        %657 = vmatprep.mubr.bf16.mxu0 0
        %658 = vmatmul.mubr.bf16.gmra.mrb[0].mxu0 %v554
        %v659 = vpop.f32.mrb[0].mxu0
        %v660 = vadd.f32 %v458, %v659
        %v661 = vpop.f32.mrb[0].mxu0
        %v662 = vpop.f32.mrb[0].mxu0
        %v663 = vadd.f32 %v458, %v662
        %v664 = vpop.f32.mrb[0].mxu0
        %665 = vmatprep.mubr.bf16.mxu0 0
        %666 = vmatmul.mubr.bf16.gmra.mrb[0].mxu0 %v557
        %v667 = vpop.f32.mrb[0].mxu0
        %v668 = vadd.f32 %v458, %v667
        %v669 = vpop.f32.mrb[0].mxu0
        %v670 = vpop.f32.mrb[0].mxu0
        %v671 = vadd.f32 %v458, %v670
        %v672 = vpop.f32.mrb[0].mxu0
        %673 = vmatprep.mubr.bf16.mxu0 0
        %674 = vmatmul.mubr.bf16.gmra.mrb[0].mxu0 %v560
        %v675 = vpop.f32.mrb[0].mxu0
        %v676 = vadd.f32 %v458, %v675
        %v677 = vpop.f32.mrb[0].mxu0
        %v678 = vpop.f32.mrb[0].mxu0
        %v679 = vadd.f32 %v458, %v678
        %v680 = vpop.f32.mrb[0].mxu0
        %681 = vmatprep.mubr.bf16.mxu0 0
        %682 = vmatmul.mubr.bf16.gmra.mrb[0].mxu0 %v563
        %v683 = vpop.f32.mrb[0].mxu0
        %v684 = vadd.f32 %v458, %v683
        %v685 = vpop.f32.mrb[0].mxu0
        %v686 = vpop.f32.mrb[0].mxu0
        %v687 = vadd.f32 %v458, %v686
        %v688 = vpop.f32.mrb[0].mxu0
        %689 = vmatprep.mubr.bf16.mxu0 0
        %690 = vmatmul.mubr.bf16.gmra.mrb[0].mxu0 %v566
        %v691 = vpop.f32.mrb[0].mxu0
        %v692 = vadd.f32 %v458, %v691
        %v693 = vpop.f32.mrb[0].mxu0
        %v694 = vpop.f32.mrb[0].mxu0
        %v695 = vadd.f32 %v458, %v694
        %v696 = vpop.f32.mrb[0].mxu0
        %697 = vmatprep.mubr.bf16.mxu0 0
        %698 = vmatmul.mubr.bf16.gmra.mrb[0].mxu0 %v569
        %v699 = vpop.f32.mrb[0].mxu0
        %v700 = vadd.f32 %v458, %v699
        %v701 = vpop.f32.mrb[0].mxu0
        %v702 = vpop.f32.mrb[0].mxu0
        %v703 = vadd.f32 %v458, %v702
        %v704 = vpop.f32.mrb[0].mxu0
        %705 = vmatprep.mubr.bf16.mxu0 0
        %706 = vmatmul.mubr.bf16.gmra.mrb[0].mxu0 %v572
        %v707 = vpop.f32.mrb[0].mxu0
        %v708 = vadd.f32 %v458, %v707
        %v709 = vpop.f32.mrb[0].mxu0
        %v710 = vpop.f32.mrb[0].mxu0
        %v711 = vadd.f32 %v458, %v710
        %v712 = vpop.f32.mrb[0].mxu0
        %713 = vmatprep.mubr.bf16.mxu0 0
        %714 = vmatmul.mubr.bf16.gmra.mrb[0].mxu0 %v575
        %v715 = vpop.f32.mrb[0].mxu0
        %v716 = vadd.f32 %v458, %v715
        %v717 = vpop.f32.mrb[0].mxu0
        %v718 = vpop.f32.mrb[0].mxu0
        %v719 = vadd.f32 %v458, %v718
        %v720 = vpop.f32.mrb[0].mxu0
        %721 = vmatprep.mubr.bf16.mxu0 0
        %722 = vmatmul.mubr.bf16.gmra.mrb[0].mxu0 %v578
        %v723 = vpop.f32.mrb[0].mxu0
        %v724 = vadd.f32 %v458, %v723
        %v725 = vpop.f32.mrb[0].mxu0
        %v726 = vpop.f32.mrb[0].mxu0
        %v727 = vadd.f32 %v458, %v726
        %v728 = vpop.f32.mrb[0].mxu0
        %729 = vmatprep.mubr.bf16.mxu0 0
        %730 = vmatmul.mubr.bf16.gmra.mrb[0].mxu0 %v581
        %v731 = vpop.f32.mrb[0].mxu0
        %v732 = vadd.f32 %v458, %v731
        %v733 = vpop.f32.mrb[0].mxu0
        %v734 = vpop.f32.mrb[0].mxu0
        %v735 = vadd.f32 %v458, %v734
        %v736 = vpop.f32.mrb[0].mxu0
        %737 = vmatprep.mubr.bf16.mxu0 0
        %738 = vmatmul.mubr.bf16.gmra.mrb[0].mxu0 %v584
        %v739 = vpop.f32.mrb[0].mxu0
        %v740 = vadd.f32 %v458, %v739
        %v741 = vpop.f32.mrb[0].mxu0
        %v742 = vpop.f32.mrb[0].mxu0
        %v743 = vadd.f32 %v458, %v742
        %v744 = vpop.f32.mrb[0].mxu0
        %745 = vmatprep.mubr.bf16.mxu0 0
        %746 = vmatmul.mubr.bf16.gmra.mrb[0].mxu0 %v587
        %v747 = vpop.f32.mrb[0].mxu0
        %v748 = vadd.f32 %v458, %v747
        %v749 = vpop.f32.mrb[0].mxu0
        %v750 = vpop.f32.mrb[0].mxu0
        %v751 = vadd.f32 %v458, %v750
        %v752 = vpop.f32.mrb[0].mxu0
        %753 = vdwg.mxu0
        %vm754 = vcmask 523264
        %755 = vst.msk [vmem:[#allocation2] sm:$0xff] %vm754, %v628
        %756 = vst.msk [vmem:[#allocation2 + $0x8] sm:$0xff] %vm754, %v631
        %757 = vst.msk [vmem:[#allocation2 + $0x10] sm:$0xff] %vm754, %v636
        %758 = vst.msk [vmem:[#allocation2 + $0x18] sm:$0xff] %vm754, %v639
        %759 = vst.msk [vmem:[#allocation2 + $0x20] sm:$0xff] %vm754, %v644
        %760 = vst.msk [vmem:[#allocation2 + $0x28] sm:$0xff] %vm754, %v647
        %761 = vst.msk [vmem:[#allocation2 + $0x30] sm:$0xff] %vm754, %v652
        %762 = vst.msk [vmem:[#allocation2 + $0x38] sm:$0xff] %vm754, %v655
        %763 = vst.msk [vmem:[#allocation2 + $0x40] sm:$0xff] %vm754, %v660
        %764 = vst.msk [vmem:[#allocation2 + $0x48] sm:$0xff] %vm754, %v663
        %765 = vst.msk [vmem:[#allocation2 + $0x50] sm:$0xff] %vm754, %v668
        %766 = vst.msk [vmem:[#allocation2 + $0x58] sm:$0xff] %vm754, %v671
        %767 = vst.msk [vmem:[#allocation2 + $0x60] sm:$0xff] %vm754, %v676
        %768 = vst.msk [vmem:[#allocation2 + $0x68] sm:$0xff] %vm754, %v679
        %769 = vst.msk [vmem:[#allocation2 + $0x70] sm:$0xff] %vm754, %v684
        %770 = vst.msk [vmem:[#allocation2 + $0x78] sm:$0xff] %vm754, %v687
        %771 = vst.msk [vmem:[#allocation2 + $0x80] sm:$0xff] %vm754, %v692
        %772 = vst.msk [vmem:[#allocation2 + $0x88] sm:$0xff] %vm754, %v695
        %773 = vst.msk [vmem:[#allocation2 + $0x90] sm:$0xff] %vm754, %v700
        %774 = vst.msk [vmem:[#allocation2 + $0x98] sm:$0xff] %vm754, %v703
        %775 = vst.msk [vmem:[#allocation2 + $0xa0] sm:$0xff] %vm754, %v708
        %776 = vst.msk [vmem:[#allocation2 + $0xa8] sm:$0xff] %vm754, %v711
        %777 = vst.msk [vmem:[#allocation2 + $0xb0] sm:$0xff] %vm754, %v716
        %778 = vst.msk [vmem:[#allocation2 + $0xb8] sm:$0xff] %vm754, %v719
        %779 = vst.msk [vmem:[#allocation2 + $0xc0] sm:$0xff] %vm754, %v724
        %780 = vst.msk [vmem:[#allocation2 + $0xc8] sm:$0xff] %vm754, %v727
        %781 = vst.msk [vmem:[#allocation2 + $0xd0] sm:$0xff] %vm754, %v732
        %782 = vst.msk [vmem:[#allocation2 + $0xd8] sm:$0xff] %vm754, %v735
        %783 = vst.msk [vmem:[#allocation2 + $0xe0] sm:$0xff] %vm754, %v740
        %784 = vst.msk [vmem:[#allocation2 + $0xe8] sm:$0xff] %vm754, %v743
        %785 = vst.msk [vmem:[#allocation2 + $0xf0] sm:$0xff] %vm754, %v748
        %786 = vst.msk [vmem:[#allocation2 + $0xf8] sm:$0xff] %vm754, %v751
      $region52: #{ctrgc_forward.3} parent=47 // pred_fallthru
        _
      %v787 = vld [vmem:[%s397] sm:$0xf]
      %v788 = vld [vmem:[%s397 + $0x4] sm:$0xf]
      %v789 = vld [vmem:[%s397 + $0x8] sm:$0xf]
      %v790 = vld [vmem:[%s397 + $0xc] sm:$0xf]
      %v791 = vld [vmem:[%s397 + $0x10] sm:$0xf]
      %v792 = vld [vmem:[%s397 + $0x14] sm:$0xf]
      %v793 = vld [vmem:[%s397 + $0x18] sm:$0xf]
      %v794 = vld [vmem:[%s397 + $0x1c] sm:$0xf]
      %v795 = vld [vmem:[%s397 + $0x20] sm:$0xf]
      %v796 = vld [vmem:[%s397 + $0x24] sm:$0xf]
      %v797 = vld [vmem:[%s397 + $0x28] sm:$0xf]
      %v798 = vld [vmem:[%s397 + $0x2c] sm:$0xf]
      %v799 = vld [vmem:[%s397 + $0x30] sm:$0xf]
      %v800 = vld [vmem:[%s397 + $0x34] sm:$0xf]
      %v801 = vld [vmem:[%s397 + $0x38] sm:$0xf]
      %v802 = vld [vmem:[%s397 + $0x3c] sm:$0xf]
      %v803 = vld [vmem:[%s397 + $0x40] sm:$0xf]
      %v804 = vld [vmem:[%s397 + $0x44] sm:$0xf]
      %v805 = vld [vmem:[%s397 + $0x48] sm:$0xf]
      %v806 = vld [vmem:[%s397 + $0x4c] sm:$0xf]
      %v807 = vld [vmem:[%s397 + $0x50] sm:$0xf]
      %v808 = vld [vmem:[%s397 + $0x54] sm:$0xf]
      %v809 = vld [vmem:[%s397 + $0x58] sm:$0xf]
      %v810 = vld [vmem:[%s397 + $0x5c] sm:$0xf]
      %v811 = vld [vmem:[%s397 + $0x60] sm:$0xf]
      %v812 = vld [vmem:[%s397 + $0x64] sm:$0xf]
      %v813 = vld [vmem:[%s397 + $0x68] sm:$0xf]
      %v814 = vld [vmem:[%s397 + $0x6c] sm:$0xf]
      %v815 = vld [vmem:[%s397 + $0x70] sm:$0xf]
      %v816 = vld [vmem:[%s397 + $0x74] sm:$0xf]
      %v817 = vld [vmem:[%s397 + $0x78] sm:$0xf]
      %v818 = vld [vmem:[%s397 + $0x7c] sm:$0xf]
      %v819 = vld [vmem:[%s376] sm:$0xff]
      %v820 = vld [vmem:[%s376 + $0x8] sm:$0xff]
      %v821 = vlaneseq
      %v822 = vshrl.u32 %v821, 7
      %v823 = vsub.s32 0, %v822
      %v824 = vrot.slane %v819, %v823
      %826 = vbcast.lane.b32.xlu0 %v824, 256
      %v827 = vpop.permute.xlu0 %826
      %s829 = sor.u32 256, 8
      %830 = vbcast.lane.b32.xlu0 %v824, %s829
      %v831 = vpop.permute.xlu0 %830
      %v832 = vlaneseq
      %v833 = vshrl.u32 %v832, 7
      %v834 = vsub.s32 1, %v833
      %v835 = vrot.slane %v819, %v834
      %837 = vbcast.lane.b32.xlu0 %v835, 256
      %v838 = vpop.permute.xlu0 %837
      %s840 = sor.u32 256, 8
      %841 = vbcast.lane.b32.xlu0 %v835, %s840
      %v842 = vpop.permute.xlu0 %841
      %v843 = vlaneseq
      %v844 = vshrl.u32 %v843, 7
      %v845 = vsub.s32 2, %v844
      %v846 = vrot.slane %v819, %v845
      %848 = vbcast.lane.b32.xlu0 %v846, 256
      %v849 = vpop.permute.xlu0 %848
      %s851 = sor.u32 256, 8
      %852 = vbcast.lane.b32.xlu0 %v846, %s851
      %v853 = vpop.permute.xlu0 %852
      %v854 = vlaneseq
      %v855 = vshrl.u32 %v854, 7
      %v856 = vsub.s32 3, %v855
      %v857 = vrot.slane %v819, %v856
      %859 = vbcast.lane.b32.xlu0 %v857, 256
      %v860 = vpop.permute.xlu0 %859
      %s862 = sor.u32 256, 8
      %863 = vbcast.lane.b32.xlu0 %v857, %s862
      %v864 = vpop.permute.xlu0 %863
      %v865 = vlaneseq
      %v866 = vshrl.u32 %v865, 7
      %v867 = vsub.s32 4, %v866
      %v868 = vrot.slane %v819, %v867
      %870 = vbcast.lane.b32.xlu0 %v868, 256
      %v871 = vpop.permute.xlu0 %870
      %s873 = sor.u32 256, 8
      %874 = vbcast.lane.b32.xlu0 %v868, %s873
      %v875 = vpop.permute.xlu0 %874
      %v876 = vlaneseq
      %v877 = vshrl.u32 %v876, 7
      %v878 = vsub.s32 5, %v877
      %v879 = vrot.slane %v819, %v878
      %881 = vbcast.lane.b32.xlu0 %v879, 256
      %v882 = vpop.permute.xlu0 %881
      %s884 = sor.u32 256, 8
      %885 = vbcast.lane.b32.xlu0 %v879, %s884
      %v886 = vpop.permute.xlu0 %885
      %v887 = vlaneseq
      %v888 = vshrl.u32 %v887, 7
      %v889 = vsub.s32 6, %v888
      %v890 = vrot.slane %v819, %v889
      %892 = vbcast.lane.b32.xlu0 %v890, 256
      %v893 = vpop.permute.xlu0 %892
      %s895 = sor.u32 256, 8
      %896 = vbcast.lane.b32.xlu0 %v890, %s895
      %v897 = vpop.permute.xlu0 %896
      %v898 = vlaneseq
      %v899 = vshrl.u32 %v898, 7
      %v900 = vsub.s32 7, %v899
      %v901 = vrot.slane %v819, %v900
      %903 = vbcast.lane.b32.xlu0 %v901, 256
      %v904 = vpop.permute.xlu0 %903
      %s906 = sor.u32 256, 8
      %907 = vbcast.lane.b32.xlu0 %v901, %s906
      %v908 = vpop.permute.xlu0 %907
      %v909 = vlaneseq
      %v910 = vshrl.u32 %v909, 7
      %v911 = vsub.s32 0, %v910
      %v912 = vrot.slane %v820, %v911
      %914 = vbcast.lane.b32.xlu0 %v912, 256
      %v915 = vpop.permute.xlu0 %914
      %s917 = sor.u32 256, 8
      %918 = vbcast.lane.b32.xlu0 %v912, %s917
      %v919 = vpop.permute.xlu0 %918
      %v920 = vlaneseq
      %v921 = vshrl.u32 %v920, 7
      %v922 = vsub.s32 1, %v921
      %v923 = vrot.slane %v820, %v922
      %925 = vbcast.lane.b32.xlu0 %v923, 256
      %v926 = vpop.permute.xlu0 %925
      %s928 = sor.u32 256, 8
      %929 = vbcast.lane.b32.xlu0 %v923, %s928
      %v930 = vpop.permute.xlu0 %929
      %v931 = vlaneseq
      %v932 = vshrl.u32 %v931, 7
      %v933 = vsub.s32 2, %v932
      %v934 = vrot.slane %v820, %v933
      %936 = vbcast.lane.b32.xlu0 %v934, 256
      %v937 = vpop.permute.xlu0 %936
      %s939 = sor.u32 256, 8
      %940 = vbcast.lane.b32.xlu0 %v934, %s939
      %v941 = vpop.permute.xlu0 %940
      %v942 = vlaneseq
      %v943 = vshrl.u32 %v942, 7
      %v944 = vsub.s32 3, %v943
      %v945 = vrot.slane %v820, %v944
      %947 = vbcast.lane.b32.xlu0 %v945, 256
      %v948 = vpop.permute.xlu0 %947
      %s950 = sor.u32 256, 8
      %951 = vbcast.lane.b32.xlu0 %v945, %s950
      %v952 = vpop.permute.xlu0 %951
      %v953 = vlaneseq
      %v954 = vshrl.u32 %v953, 7
      %v955 = vsub.s32 4, %v954
      %v956 = vrot.slane %v820, %v955
      %958 = vbcast.lane.b32.xlu0 %v956, 256
      %v959 = vpop.permute.xlu0 %958
      %s961 = sor.u32 256, 8
      %962 = vbcast.lane.b32.xlu0 %v956, %s961
      %v963 = vpop.permute.xlu0 %962
      %v964 = vlaneseq
      %v965 = vshrl.u32 %v964, 7
      %v966 = vsub.s32 5, %v965
      %v967 = vrot.slane %v820, %v966
      %969 = vbcast.lane.b32.xlu0 %v967, 256
      %v970 = vpop.permute.xlu0 %969
      %s972 = sor.u32 256, 8
      %973 = vbcast.lane.b32.xlu0 %v967, %s972
      %v974 = vpop.permute.xlu0 %973
      %v975 = vlaneseq
      %v976 = vshrl.u32 %v975, 7
      %v977 = vsub.s32 6, %v976
      %v978 = vrot.slane %v820, %v977
      %980 = vbcast.lane.b32.xlu0 %v978, 256
      %v981 = vpop.permute.xlu0 %980
      %s983 = sor.u32 256, 8
      %984 = vbcast.lane.b32.xlu0 %v978, %s983
      %v985 = vpop.permute.xlu0 %984
      %v986 = vlaneseq
      %v987 = vshrl.u32 %v986, 7
      %v988 = vsub.s32 7, %v987
      %v989 = vrot.slane %v820, %v988
      %991 = vbcast.lane.b32.xlu0 %v989, 256
      %v992 = vpop.permute.xlu0 %991
      %s994 = sor.u32 256, 8
      %995 = vbcast.lane.b32.xlu0 %v989, %s994
      %v996 = vpop.permute.xlu0 %995
      %v997 = vld [vmem:[%s386] sm:$0xff]
      %v998 = vld [vmem:[%s386 + $0x8] sm:$0xff]
      %v1001 = vcombine.high %v997, %v997
      %v1003 = vunpack.c.l.s4 1966171168
      %v1004 = vunpack.c.0.s8 %v1003
      %v1005 = vlaneseq
      %v1006 = vshrl.u32 %v1005, 7
      %v1007 = vsub.s32 %v1004, %v1006
      %v1008 = vrot.slane %v997, %v1007
      %v1010 = vunpack.c.l.s4 1966171168
      %v1011 = vunpack.c.0.s8 %v1010
      %v1012 = vlaneseq
      %v1013 = vshrl.u32 %v1012, 7
      %v1014 = vsub.s32 %v1011, %v1013
      %v1015 = vrot.slane %v1001, %v1014
      %v1016 = vcombine.high %v1008, %v1008
      %v1017 = vcombine.high %v1015, %v1015
      %v1019 = vunpack.c.l.s4 1966171168
      %v1020 = vunpack.c.0.s8 %v1019
      %v1021 = vlaneseq
      %v1022 = vshrl.u32 %v1021, 7
      %v1023 = vsub.s32 %v1020, %v1022
      %v1024 = vrot.slane %v1008, %v1023
      %v1026 = vunpack.c.l.s4 1966171168
      %v1027 = vunpack.c.0.s8 %v1026
      %v1028 = vlaneseq
      %v1029 = vshrl.u32 %v1028, 7
      %v1030 = vsub.s32 %v1027, %v1029
      %v1031 = vrot.slane %v1015, %v1030
      %v1033 = vunpack.c.l.s4 1966171168
      %v1034 = vunpack.c.0.s8 %v1033
      %v1035 = vlaneseq
      %v1036 = vshrl.u32 %v1035, 7
      %v1037 = vsub.s32 %v1034, %v1036
      %v1038 = vrot.slane %v1016, %v1037
      %v1040 = vunpack.c.l.s4 1966171168
      %v1041 = vunpack.c.0.s8 %v1040
      %v1042 = vlaneseq
      %v1043 = vshrl.u32 %v1042, 7
      %v1044 = vsub.s32 %v1041, %v1043
      %v1045 = vrot.slane %v1017, %v1044
      %v1046 = vcombine.high %v1024, %v1024
      %v1047 = vcombine.high %v1031, %v1031
      %v1048 = vcombine.high %v1038, %v1038
      %v1049 = vcombine.high %v1045, %v1045
      %v1050 = vcombine.high %v998, %v998
      %v1052 = vunpack.c.l.s4 1966171168
      %v1053 = vunpack.c.0.s8 %v1052
      %v1054 = vlaneseq
      %v1055 = vshrl.u32 %v1054, 7
      %v1056 = vsub.s32 %v1053, %v1055
      %v1057 = vrot.slane %v998, %v1056
      %v1059 = vunpack.c.l.s4 1966171168
      %v1060 = vunpack.c.0.s8 %v1059
      %v1061 = vlaneseq
      %v1062 = vshrl.u32 %v1061, 7
      %v1063 = vsub.s32 %v1060, %v1062
      %v1064 = vrot.slane %v1050, %v1063
      %v1065 = vcombine.high %v1057, %v1057
      %v1066 = vcombine.high %v1064, %v1064
      %v1068 = vunpack.c.l.s4 1966171168
      %v1069 = vunpack.c.0.s8 %v1068
      %v1070 = vlaneseq
      %v1071 = vshrl.u32 %v1070, 7
      %v1072 = vsub.s32 %v1069, %v1071
      %v1073 = vrot.slane %v1057, %v1072
      %v1075 = vunpack.c.l.s4 1966171168
      %v1076 = vunpack.c.0.s8 %v1075
      %v1077 = vlaneseq
      %v1078 = vshrl.u32 %v1077, 7
      %v1079 = vsub.s32 %v1076, %v1078
      %v1080 = vrot.slane %v1064, %v1079
      %v1082 = vunpack.c.l.s4 1966171168
      %v1083 = vunpack.c.0.s8 %v1082
      %v1084 = vlaneseq
      %v1085 = vshrl.u32 %v1084, 7
      %v1086 = vsub.s32 %v1083, %v1085
      %v1087 = vrot.slane %v1065, %v1086
      %v1089 = vunpack.c.l.s4 1966171168
      %v1090 = vunpack.c.0.s8 %v1089
      %v1091 = vlaneseq
      %v1092 = vshrl.u32 %v1091, 7
      %v1093 = vsub.s32 %v1090, %v1092
      %v1094 = vrot.slane %v1066, %v1093
      %v1095 = vcombine.high %v1073, %v1073
      %v1096 = vcombine.high %v1080, %v1080
      %v1097 = vcombine.high %v1087, %v1087
      %v1098 = vcombine.high %v1094, %v1094
      %v1099 = vlaneseq
      %v1100 = vshrl.u32 %v1099, 7
      %v1101 = vsub.s32 0, %v1100
      %v1102 = vrot.slane %v1024, %v1101
      %v1103 = vlaneseq
      %v1104 = vshrl.u32 %v1103, 7
      %v1105 = vsub.s32 0, %v1104
      %v1106 = vrot.slane %v1038, %v1105
      %v1107 = vlaneseq
      %v1108 = vshrl.u32 %v1107, 7
      %v1109 = vsub.s32 0, %v1108
      %v1110 = vrot.slane %v1046, %v1109
      %v1111 = vlaneseq
      %v1112 = vshrl.u32 %v1111, 7
      %v1113 = vsub.s32 0, %v1112
      %v1114 = vrot.slane %v1048, %v1113
      %v1115 = vlaneseq
      %v1116 = vshrl.u32 %v1115, 7
      %v1117 = vsub.s32 0, %v1116
      %v1118 = vrot.slane %v1031, %v1117
      %v1119 = vlaneseq
      %v1120 = vshrl.u32 %v1119, 7
      %v1121 = vsub.s32 0, %v1120
      %v1122 = vrot.slane %v1045, %v1121
      %v1123 = vlaneseq
      %v1124 = vshrl.u32 %v1123, 7
      %v1125 = vsub.s32 0, %v1124
      %v1126 = vrot.slane %v1047, %v1125
      %v1127 = vlaneseq
      %v1128 = vshrl.u32 %v1127, 7
      %v1129 = vsub.s32 0, %v1128
      %v1130 = vrot.slane %v1049, %v1129
      %v1131 = vlaneseq
      %v1132 = vshrl.u32 %v1131, 7
      %v1133 = vsub.s32 0, %v1132
      %v1134 = vrot.slane %v1073, %v1133
      %v1135 = vlaneseq
      %v1136 = vshrl.u32 %v1135, 7
      %v1137 = vsub.s32 0, %v1136
      %v1138 = vrot.slane %v1087, %v1137
      %v1139 = vlaneseq
      %v1140 = vshrl.u32 %v1139, 7
      %v1141 = vsub.s32 0, %v1140
      %v1142 = vrot.slane %v1095, %v1141
      %v1143 = vlaneseq
      %v1144 = vshrl.u32 %v1143, 7
      %v1145 = vsub.s32 0, %v1144
      %v1146 = vrot.slane %v1097, %v1145
      %v1147 = vlaneseq
      %v1148 = vshrl.u32 %v1147, 7
      %v1149 = vsub.s32 0, %v1148
      %v1150 = vrot.slane %v1080, %v1149
      %v1151 = vlaneseq
      %v1152 = vshrl.u32 %v1151, 7
      %v1153 = vsub.s32 0, %v1152
      %v1154 = vrot.slane %v1094, %v1153
      %v1155 = vlaneseq
      %v1156 = vshrl.u32 %v1155, 7
      %v1157 = vsub.s32 0, %v1156
      %v1158 = vrot.slane %v1096, %v1157
      %v1159 = vlaneseq
      %v1160 = vshrl.u32 %v1159, 7
      %v1161 = vsub.s32 0, %v1160
      %v1162 = vrot.slane %v1098, %v1161
      %v1179 = vsub.f32 %v827, %v1102
      %v1180 = vsub.f32 %v831, %v1102
      %v1181 = vsub.f32 %v838, %v1106
      %v1182 = vsub.f32 %v842, %v1106
      %v1183 = vsub.f32 %v849, %v1110
      %v1184 = vsub.f32 %v853, %v1110
      %v1185 = vsub.f32 %v860, %v1114
      %v1186 = vsub.f32 %v864, %v1114
      %v1187 = vsub.f32 %v871, %v1118
      %v1188 = vsub.f32 %v875, %v1118
      %v1189 = vsub.f32 %v882, %v1122
      %v1190 = vsub.f32 %v886, %v1122
      %v1191 = vsub.f32 %v893, %v1126
      %v1192 = vsub.f32 %v897, %v1126
      %v1193 = vsub.f32 %v904, %v1130
      %v1194 = vsub.f32 %v908, %v1130
      %v1195 = vsub.f32 %v915, %v1134
      %v1196 = vsub.f32 %v919, %v1134
      %v1197 = vsub.f32 %v926, %v1138
      %v1198 = vsub.f32 %v930, %v1138
      %v1199 = vsub.f32 %v937, %v1142
      %v1200 = vsub.f32 %v941, %v1142
      %v1201 = vsub.f32 %v948, %v1146
      %v1202 = vsub.f32 %v952, %v1146
      %v1203 = vsub.f32 %v959, %v1150
      %v1204 = vsub.f32 %v963, %v1150
      %v1205 = vsub.f32 %v970, %v1154
      %v1206 = vsub.f32 %v974, %v1154
      %v1207 = vsub.f32 %v981, %v1158
      %v1208 = vsub.f32 %v985, %v1158
      %v1209 = vsub.f32 %v992, %v1162
      %v1210 = vsub.f32 %v996, %v1162
      %v1211 = vtanh.pop %v1179
      %v1212 = vtanh.pop %v1180
      %v1213 = vtanh.pop %v1181
      %v1214 = vtanh.pop %v1182
      %v1215 = vtanh.pop %v1183
      %v1216 = vtanh.pop %v1184
      %v1217 = vtanh.pop %v1185
      %v1218 = vtanh.pop %v1186
      %v1219 = vtanh.pop %v1187
      %v1220 = vtanh.pop %v1188
      %v1221 = vtanh.pop %v1189
      %v1222 = vtanh.pop %v1190
      %v1223 = vtanh.pop %v1191
      %v1224 = vtanh.pop %v1192
      %v1225 = vtanh.pop %v1193
      %v1226 = vtanh.pop %v1194
      %v1227 = vtanh.pop %v1195
      %v1228 = vtanh.pop %v1196
      %v1229 = vtanh.pop %v1197
      %v1230 = vtanh.pop %v1198
      %v1231 = vtanh.pop %v1199
      %v1232 = vtanh.pop %v1200
      %v1233 = vtanh.pop %v1201
      %v1234 = vtanh.pop %v1202
      %v1235 = vtanh.pop %v1203
      %v1236 = vtanh.pop %v1204
      %v1237 = vtanh.pop %v1205
      %v1238 = vtanh.pop %v1206
      %v1239 = vtanh.pop %v1207
      %v1240 = vtanh.pop %v1208
      %v1241 = vtanh.pop %v1209
      %v1242 = vtanh.pop %v1210
      %v1243 = vld [vmem:[%s2] sm:$0xff]
      %v1244 = vld [vmem:[%s2 + $0x8] sm:$0xff]
      %v1245 = vadd.f32 %v1211, %v1243
      %v1246 = vadd.f32 %v1212, %v1244
      %v1247 = vadd.f32 %v1213, %v1243
      %v1248 = vadd.f32 %v1214, %v1244
      %v1249 = vadd.f32 %v1215, %v1243
      %v1250 = vadd.f32 %v1216, %v1244
      %v1251 = vadd.f32 %v1217, %v1243
      %v1252 = vadd.f32 %v1218, %v1244
      %v1253 = vadd.f32 %v1219, %v1243
      %v1254 = vadd.f32 %v1220, %v1244
      %v1255 = vadd.f32 %v1221, %v1243
      %v1256 = vadd.f32 %v1222, %v1244
      %v1257 = vadd.f32 %v1223, %v1243
      %v1258 = vadd.f32 %v1224, %v1244
      %v1259 = vadd.f32 %v1225, %v1243
      %v1260 = vadd.f32 %v1226, %v1244
      %v1261 = vadd.f32 %v1227, %v1243
      %v1262 = vadd.f32 %v1228, %v1244
      %v1263 = vadd.f32 %v1229, %v1243
      %v1264 = vadd.f32 %v1230, %v1244
      %v1265 = vadd.f32 %v1231, %v1243
      %v1266 = vadd.f32 %v1232, %v1244
      %v1267 = vadd.f32 %v1233, %v1243
      %v1268 = vadd.f32 %v1234, %v1244
      %v1269 = vadd.f32 %v1235, %v1243
      %v1270 = vadd.f32 %v1236, %v1244
      %v1271 = vadd.f32 %v1237, %v1243
      %v1272 = vadd.f32 %v1238, %v1244
      %v1273 = vadd.f32 %v1239, %v1243
      %v1274 = vadd.f32 %v1240, %v1244
      %v1275 = vadd.f32 %v1241, %v1243
      %v1276 = vadd.f32 %v1242, %v1244
      %v1277 = vlaneseq
      %v1278 = vand.u32 %v1277, 127
      %vm1279 = vcmp.lt.s32.totalorder %v1278, 15
      %v1280 = vsel %vm1279, 1, 0
      %vm1281 = vcmp.eq.s32.totalorder %v1280, 1
      %v1282 = vsel %vm1281, %v1245, 0.0
      %v1283 = vsel %vm1281, %v1246, 0.0
      %v1284 = vsel %vm1281, %v1247, 0.0
      %v1285 = vsel %vm1281, %v1248, 0.0
      %v1286 = vsel %vm1281, %v1249, 0.0
      %v1287 = vsel %vm1281, %v1250, 0.0
      %v1288 = vsel %vm1281, %v1251, 0.0
      %v1289 = vsel %vm1281, %v1252, 0.0
      %v1290 = vsel %vm1281, %v1253, 0.0
      %v1291 = vsel %vm1281, %v1254, 0.0
      %v1292 = vsel %vm1281, %v1255, 0.0
      %v1293 = vsel %vm1281, %v1256, 0.0
      %v1294 = vsel %vm1281, %v1257, 0.0
      %v1295 = vsel %vm1281, %v1258, 0.0
      %v1296 = vsel %vm1281, %v1259, 0.0
      %v1297 = vsel %vm1281, %v1260, 0.0
      %v1298 = vsel %vm1281, %v1261, 0.0
      %v1299 = vsel %vm1281, %v1262, 0.0
      %v1300 = vsel %vm1281, %v1263, 0.0
      %v1301 = vsel %vm1281, %v1264, 0.0
      %v1302 = vsel %vm1281, %v1265, 0.0
      %v1303 = vsel %vm1281, %v1266, 0.0
      %v1304 = vsel %vm1281, %v1267, 0.0
      %v1305 = vsel %vm1281, %v1268, 0.0
      %v1306 = vsel %vm1281, %v1269, 0.0
      %v1307 = vsel %vm1281, %v1270, 0.0
      %v1308 = vsel %vm1281, %v1271, 0.0
      %v1309 = vsel %vm1281, %v1272, 0.0
      %v1310 = vsel %vm1281, %v1273, 0.0
      %v1311 = vsel %vm1281, %v1274, 0.0
      %v1312 = vsel %vm1281, %v1275, 0.0
      %v1313 = vsel %vm1281, %v1276, 0.0
      %v1314 = vpack.c.bf16 %v1283, %v1282
      %v1315 = vpack.c.bf16 %v1285, %v1284
      %v1316 = vpack.c.bf16 %v1287, %v1286
      %v1317 = vpack.c.bf16 %v1289, %v1288
      %v1318 = vpack.c.bf16 %v1291, %v1290
      %v1319 = vpack.c.bf16 %v1293, %v1292
      %v1320 = vpack.c.bf16 %v1295, %v1294
      %v1321 = vpack.c.bf16 %v1297, %v1296
      %v1322 = vpack.c.bf16 %v1299, %v1298
      %v1323 = vpack.c.bf16 %v1301, %v1300
      %v1324 = vpack.c.bf16 %v1303, %v1302
      %v1325 = vpack.c.bf16 %v1305, %v1304
      %v1326 = vpack.c.bf16 %v1307, %v1306
      %v1327 = vpack.c.bf16 %v1309, %v1308
      %v1328 = vpack.c.bf16 %v1311, %v1310
      %v1329 = vpack.c.bf16 %v1313, %v1312
      %v1330 = vunpack.c.l.bf16 %v787
      %v1331 = vunpack.c.l.bf16 %v789
      %v1332 = vunpack.c.l.bf16 %v791
      %v1333 = vunpack.c.l.bf16 %v793
      %v1334 = vunpack.c.l.bf16 %v795
      %v1335 = vunpack.c.l.bf16 %v797
      %v1336 = vunpack.c.l.bf16 %v799
      %v1337 = vunpack.c.l.bf16 %v801
      %v1338 = vunpack.c.l.bf16 %v803
      %v1339 = vunpack.c.l.bf16 %v805
      %v1340 = vunpack.c.l.bf16 %v807
      %v1341 = vunpack.c.l.bf16 %v809
      %v1342 = vunpack.c.l.bf16 %v811
      %v1343 = vunpack.c.l.bf16 %v813
      %v1344 = vunpack.c.l.bf16 %v815
      %v1345 = vunpack.c.l.bf16 %v817
      %v1346 = vld [vmem:[#allocation2] sm:$0xff]
      %v1347 = vld [vmem:[#allocation2 + $0x8] sm:$0xff]
      %v1348 = vlaneseq
      %v1349 = vshrl.u32 %v1348, 7
      %v1350 = vsub.s32 0, %v1349
      %v1351 = vrot.slane %v1330, %v1350
      %v1352 = vlaneseq
      %v1353 = vshrl.u32 %v1352, 7
      %v1354 = vsub.s32 0, %v1353
      %v1355 = vrot.slane %v1331, %v1354
      %v1356 = vlaneseq
      %v1357 = vshrl.u32 %v1356, 7
      %v1358 = vsub.s32 0, %v1357
      %v1359 = vrot.slane %v1332, %v1358
      %v1360 = vlaneseq
      %v1361 = vshrl.u32 %v1360, 7
      %v1362 = vsub.s32 0, %v1361
      %v1363 = vrot.slane %v1333, %v1362
      %v1364 = vlaneseq
      %v1365 = vshrl.u32 %v1364, 7
      %v1366 = vsub.s32 0, %v1365
      %v1367 = vrot.slane %v1334, %v1366
      %v1368 = vlaneseq
      %v1369 = vshrl.u32 %v1368, 7
      %v1370 = vsub.s32 0, %v1369
      %v1371 = vrot.slane %v1335, %v1370
      %v1372 = vlaneseq
      %v1373 = vshrl.u32 %v1372, 7
      %v1374 = vsub.s32 0, %v1373
      %v1375 = vrot.slane %v1336, %v1374
      %v1376 = vlaneseq
      %v1377 = vshrl.u32 %v1376, 7
      %v1378 = vsub.s32 0, %v1377
      %v1379 = vrot.slane %v1337, %v1378
      %v1380 = vlaneseq
      %v1381 = vshrl.u32 %v1380, 7
      %v1382 = vsub.s32 0, %v1381
      %v1383 = vrot.slane %v1338, %v1382
      %v1384 = vlaneseq
      %v1385 = vshrl.u32 %v1384, 7
      %v1386 = vsub.s32 0, %v1385
      %v1387 = vrot.slane %v1339, %v1386
      %v1388 = vlaneseq
      %v1389 = vshrl.u32 %v1388, 7
      %v1390 = vsub.s32 0, %v1389
      %v1391 = vrot.slane %v1340, %v1390
      %v1392 = vlaneseq
      %v1393 = vshrl.u32 %v1392, 7
      %v1394 = vsub.s32 0, %v1393
      %v1395 = vrot.slane %v1341, %v1394
      %v1396 = vlaneseq
      %v1397 = vshrl.u32 %v1396, 7
      %v1398 = vsub.s32 0, %v1397
      %v1399 = vrot.slane %v1342, %v1398
      %v1400 = vlaneseq
      %v1401 = vshrl.u32 %v1400, 7
      %v1402 = vsub.s32 0, %v1401
      %v1403 = vrot.slane %v1343, %v1402
      %v1404 = vlaneseq
      %v1405 = vshrl.u32 %v1404, 7
      %v1406 = vsub.s32 0, %v1405
      %v1407 = vrot.slane %v1344, %v1406
      %v1408 = vlaneseq
      %v1409 = vshrl.u32 %v1408, 7
      %v1410 = vsub.s32 0, %v1409
      %v1411 = vrot.slane %v1345, %v1410
      %v1412 = vmul.f32 %v1351, %v1346
      %v1413 = vmul.f32 %v1351, %v1347
      %v1414 = vmul.f32 %v1355, %v1346
      %v1415 = vmul.f32 %v1355, %v1347
      %v1416 = vmul.f32 %v1359, %v1346
      %v1417 = vmul.f32 %v1359, %v1347
      %v1418 = vmul.f32 %v1363, %v1346
      %v1419 = vmul.f32 %v1363, %v1347
      %v1420 = vmul.f32 %v1367, %v1346
      %v1421 = vmul.f32 %v1367, %v1347
      %v1422 = vmul.f32 %v1371, %v1346
      %v1423 = vmul.f32 %v1371, %v1347
      %v1424 = vmul.f32 %v1375, %v1346
      %v1425 = vmul.f32 %v1375, %v1347
      %v1426 = vmul.f32 %v1379, %v1346
      %v1427 = vmul.f32 %v1379, %v1347
      %v1428 = vmul.f32 %v1383, %v1346
      %v1429 = vmul.f32 %v1383, %v1347
      %v1430 = vmul.f32 %v1387, %v1346
      %v1431 = vmul.f32 %v1387, %v1347
      %v1432 = vmul.f32 %v1391, %v1346
      %v1433 = vmul.f32 %v1391, %v1347
      %v1434 = vmul.f32 %v1395, %v1346
      %v1435 = vmul.f32 %v1395, %v1347
      %v1436 = vmul.f32 %v1399, %v1346
      %v1437 = vmul.f32 %v1399, %v1347
      %v1438 = vmul.f32 %v1403, %v1346
      %v1439 = vmul.f32 %v1403, %v1347
      %v1440 = vmul.f32 %v1407, %v1346
      %v1441 = vmul.f32 %v1407, %v1347
      %v1442 = vmul.f32 %v1411, %v1346
      %v1443 = vmul.f32 %v1411, %v1347
      %v1446 = vunpack.c.l.b16 %v787
      %v1447 = vunpack.c.l.b16 %v788
      %v1448 = vpack.c.b16 %v1447, %v1446
      %vm1450 = vcmask 130048
      %v1452 = vsel %vm1450, %v1314, 0
      %1454 = vmatprep.subr.bf16.mxu0 0
      %1455 = vmatpush1.bf16.msra.mxu0 %v1448
      %1456 = vmatprep.subr.bf16.mxu0 0
      %1457 = vmatpush1.bf16.msra.mxu0 0
      %1458 = vmatprep.subr.bf16.mxu0 0
      %1459 = vmatpush1.bf16.msra.mxu0 0
      %1460 = vmatprep.subr.bf16.mxu0 0
      %1461 = vmatpush1.bf16.msra.mxu0 0
      %1462 = vmatprep.subr.bf16.mxu0 0
      %1463 = vmatpush1.bf16.msra.mxu0 0
      %1464 = vmatprep.subr.bf16.mxu0 0
      %1465 = vmatpush1.bf16.msra.mxu0 0
      %1466 = vmatprep.subr.bf16.mxu0 0
      %1467 = vmatpush1.bf16.msra.mxu0 0
      %1468 = vmatprep.subr.bf16.mxu0 0
      %1469 = vmatpush1.bf16.msra.mxu0 0
      %1470 = vmatprep.subr.bf16.mxu0 0
      %1471 = vmatpush1.bf16.msra.mxu0 0
      %1472 = vmatprep.subr.bf16.mxu0 0
      %1473 = vmatpush1.bf16.msra.mxu0 0
      %1474 = vmatprep.subr.bf16.mxu0 0
      %1475 = vmatpush1.bf16.msra.mxu0 0
      %1476 = vmatprep.subr.bf16.mxu0 0
      %1477 = vmatpush1.bf16.msra.mxu0 0
      %1478 = vmatprep.subr.bf16.mxu0 0
      %1479 = vmatpush1.bf16.msra.mxu0 0
      %1480 = vmatprep.subr.bf16.mxu0 0
      %1481 = vmatpush1.bf16.msra.mxu0 0
      %1482 = vmatprep.subr.bf16.mxu0 0
      %1483 = vmatpush1.bf16.msra.mxu0 0
      %1484 = vmatprep.subr.bf16.mxu0 0
      %1485 = vmatpush1.bf16.msra.mxu0 0
      %1486 = vmatprep.mubr.bf16.mxu0 0
      %1487 = vmatmul.mubr.bf16.gmra.mrb[0].mxu0 %v1452
      %v1488 = vpop.f32.mrb[0].mxu0
      %v1489 = vadd.f32 %v1412, %v1488
      %v1490 = vpop.f32.mrb[0].mxu0
      %v1491 = vpop.f32.mrb[0].mxu0
      %v1492 = vadd.f32 %v1413, %v1491
      %v1493 = vpop.f32.mrb[0].mxu0
      %1494 = vdwg.mxu0
      %v1497 = vunpack.c.l.b16 %v789
      %v1498 = vunpack.c.l.b16 %v790
      %v1499 = vpack.c.b16 %v1498, %v1497
      %v1502 = vsel %vm1450, %v1315, 0
      %1504 = vmatprep.subr.bf16.mxu0 0
      %1505 = vmatpush1.bf16.msra.mxu0 %v1499
      %1506 = vmatprep.subr.bf16.mxu0 0
      %1507 = vmatpush1.bf16.msra.mxu0 0
      %1508 = vmatprep.subr.bf16.mxu0 0
      %1509 = vmatpush1.bf16.msra.mxu0 0
      %1510 = vmatprep.subr.bf16.mxu0 0
      %1511 = vmatpush1.bf16.msra.mxu0 0
      %1512 = vmatprep.subr.bf16.mxu0 0
      %1513 = vmatpush1.bf16.msra.mxu0 0
      %1514 = vmatprep.subr.bf16.mxu0 0
      %1515 = vmatpush1.bf16.msra.mxu0 0
      %1516 = vmatprep.subr.bf16.mxu0 0
      %1517 = vmatpush1.bf16.msra.mxu0 0
      %1518 = vmatprep.subr.bf16.mxu0 0
      %1519 = vmatpush1.bf16.msra.mxu0 0
      %1520 = vmatprep.subr.bf16.mxu0 0
      %1521 = vmatpush1.bf16.msra.mxu0 0
      %1522 = vmatprep.subr.bf16.mxu0 0
      %1523 = vmatpush1.bf16.msra.mxu0 0
      %1524 = vmatprep.subr.bf16.mxu0 0
      %1525 = vmatpush1.bf16.msra.mxu0 0
      %1526 = vmatprep.subr.bf16.mxu0 0
      %1527 = vmatpush1.bf16.msra.mxu0 0
      %1528 = vmatprep.subr.bf16.mxu0 0
      %1529 = vmatpush1.bf16.msra.mxu0 0
      %1530 = vmatprep.subr.bf16.mxu0 0
      %1531 = vmatpush1.bf16.msra.mxu0 0
      %1532 = vmatprep.subr.bf16.mxu0 0
      %1533 = vmatpush1.bf16.msra.mxu0 0
      %1534 = vmatprep.subr.bf16.mxu0 0
      %1535 = vmatpush1.bf16.msra.mxu0 0
      %1536 = vmatprep.mubr.bf16.mxu0 0
      %1537 = vmatmul.mubr.bf16.gmra.mrb[0].mxu0 %v1502
      %v1538 = vpop.f32.mrb[0].mxu0
      %v1539 = vadd.f32 %v1414, %v1538
      %v1540 = vpop.f32.mrb[0].mxu0
      %v1541 = vpop.f32.mrb[0].mxu0
      %v1542 = vadd.f32 %v1415, %v1541
      %v1543 = vpop.f32.mrb[0].mxu0
      %1544 = vdwg.mxu0
      %v1547 = vunpack.c.l.b16 %v791
      %v1548 = vunpack.c.l.b16 %v792
      %v1549 = vpack.c.b16 %v1548, %v1547
      %v1552 = vsel %vm1450, %v1316, 0
      %1554 = vmatprep.subr.bf16.mxu0 0
      %1555 = vmatpush1.bf16.msra.mxu0 %v1549
      %1556 = vmatprep.subr.bf16.mxu0 0
      %1557 = vmatpush1.bf16.msra.mxu0 0
      %1558 = vmatprep.subr.bf16.mxu0 0
      %1559 = vmatpush1.bf16.msra.mxu0 0
      %1560 = vmatprep.subr.bf16.mxu0 0
      %1561 = vmatpush1.bf16.msra.mxu0 0
      %1562 = vmatprep.subr.bf16.mxu0 0
      %1563 = vmatpush1.bf16.msra.mxu0 0
      %1564 = vmatprep.subr.bf16.mxu0 0
      %1565 = vmatpush1.bf16.msra.mxu0 0
      %1566 = vmatprep.subr.bf16.mxu0 0
      %1567 = vmatpush1.bf16.msra.mxu0 0
      %1568 = vmatprep.subr.bf16.mxu0 0
      %1569 = vmatpush1.bf16.msra.mxu0 0
      %1570 = vmatprep.subr.bf16.mxu0 0
      %1571 = vmatpush1.bf16.msra.mxu0 0
      %1572 = vmatprep.subr.bf16.mxu0 0
      %1573 = vmatpush1.bf16.msra.mxu0 0
      %1574 = vmatprep.subr.bf16.mxu0 0
      %1575 = vmatpush1.bf16.msra.mxu0 0
      %1576 = vmatprep.subr.bf16.mxu0 0
      %1577 = vmatpush1.bf16.msra.mxu0 0
      %1578 = vmatprep.subr.bf16.mxu0 0
      %1579 = vmatpush1.bf16.msra.mxu0 0
      %1580 = vmatprep.subr.bf16.mxu0 0
      %1581 = vmatpush1.bf16.msra.mxu0 0
      %1582 = vmatprep.subr.bf16.mxu0 0
      %1583 = vmatpush1.bf16.msra.mxu0 0
      %1584 = vmatprep.subr.bf16.mxu0 0
      %1585 = vmatpush1.bf16.msra.mxu0 0
      %1586 = vmatprep.mubr.bf16.mxu0 0
      %1587 = vmatmul.mubr.bf16.gmra.mrb[0].mxu0 %v1552
      %v1588 = vpop.f32.mrb[0].mxu0
      %v1589 = vadd.f32 %v1416, %v1588
      %v1590 = vpop.f32.mrb[0].mxu0
      %v1591 = vpop.f32.mrb[0].mxu0
      %v1592 = vadd.f32 %v1417, %v1591
      %v1593 = vpop.f32.mrb[0].mxu0
      %1594 = vdwg.mxu0
      %v1597 = vunpack.c.l.b16 %v793
      %v1598 = vunpack.c.l.b16 %v794
      %v1599 = vpack.c.b16 %v1598, %v1597
      %v1602 = vsel %vm1450, %v1317, 0
      %1604 = vmatprep.subr.bf16.mxu0 0
      %1605 = vmatpush1.bf16.msra.mxu0 %v1599
      %1606 = vmatprep.subr.bf16.mxu0 0
      %1607 = vmatpush1.bf16.msra.mxu0 0
      %1608 = vmatprep.subr.bf16.mxu0 0
      %1609 = vmatpush1.bf16.msra.mxu0 0
      %1610 = vmatprep.subr.bf16.mxu0 0
      %1611 = vmatpush1.bf16.msra.mxu0 0
      %1612 = vmatprep.subr.bf16.mxu0 0
      %1613 = vmatpush1.bf16.msra.mxu0 0
      %1614 = vmatprep.subr.bf16.mxu0 0
      %1615 = vmatpush1.bf16.msra.mxu0 0
      %1616 = vmatprep.subr.bf16.mxu0 0
      %1617 = vmatpush1.bf16.msra.mxu0 0
      %1618 = vmatprep.subr.bf16.mxu0 0
      %1619 = vmatpush1.bf16.msra.mxu0 0
      %1620 = vmatprep.subr.bf16.mxu0 0
      %1621 = vmatpush1.bf16.msra.mxu0 0
      %1622 = vmatprep.subr.bf16.mxu0 0
      %1623 = vmatpush1.bf16.msra.mxu0 0
      %1624 = vmatprep.subr.bf16.mxu0 0
      %1625 = vmatpush1.bf16.msra.mxu0 0
      %1626 = vmatprep.subr.bf16.mxu0 0
      %1627 = vmatpush1.bf16.msra.mxu0 0
      %1628 = vmatprep.subr.bf16.mxu0 0
      %1629 = vmatpush1.bf16.msra.mxu0 0
      %1630 = vmatprep.subr.bf16.mxu0 0
      %1631 = vmatpush1.bf16.msra.mxu0 0
      %1632 = vmatprep.subr.bf16.mxu0 0
      %1633 = vmatpush1.bf16.msra.mxu0 0
      %1634 = vmatprep.subr.bf16.mxu0 0
      %1635 = vmatpush1.bf16.msra.mxu0 0
      %1636 = vmatprep.mubr.bf16.mxu0 0
      %1637 = vmatmul.mubr.bf16.gmra.mrb[0].mxu0 %v1602
      %v1638 = vpop.f32.mrb[0].mxu0
      %v1639 = vadd.f32 %v1418, %v1638
      %v1640 = vpop.f32.mrb[0].mxu0
      %v1641 = vpop.f32.mrb[0].mxu0
      %v1642 = vadd.f32 %v1419, %v1641
      %v1643 = vpop.f32.mrb[0].mxu0
      %1644 = vdwg.mxu0
      %v1647 = vunpack.c.l.b16 %v795
      %v1648 = vunpack.c.l.b16 %v796
      %v1649 = vpack.c.b16 %v1648, %v1647
      %v1652 = vsel %vm1450, %v1318, 0
      %1654 = vmatprep.subr.bf16.mxu0 0
      %1655 = vmatpush1.bf16.msra.mxu0 %v1649
      %1656 = vmatprep.subr.bf16.mxu0 0
      %1657 = vmatpush1.bf16.msra.mxu0 0
      %1658 = vmatprep.subr.bf16.mxu0 0
      %1659 = vmatpush1.bf16.msra.mxu0 0
      %1660 = vmatprep.subr.bf16.mxu0 0
      %1661 = vmatpush1.bf16.msra.mxu0 0
      %1662 = vmatprep.subr.bf16.mxu0 0
      %1663 = vmatpush1.bf16.msra.mxu0 0
      %1664 = vmatprep.subr.bf16.mxu0 0
      %1665 = vmatpush1.bf16.msra.mxu0 0
      %1666 = vmatprep.subr.bf16.mxu0 0
      %1667 = vmatpush1.bf16.msra.mxu0 0
      %1668 = vmatprep.subr.bf16.mxu0 0
      %1669 = vmatpush1.bf16.msra.mxu0 0
      %1670 = vmatprep.subr.bf16.mxu0 0
      %1671 = vmatpush1.bf16.msra.mxu0 0
      %1672 = vmatprep.subr.bf16.mxu0 0
      %1673 = vmatpush1.bf16.msra.mxu0 0
      %1674 = vmatprep.subr.bf16.mxu0 0
      %1675 = vmatpush1.bf16.msra.mxu0 0
      %1676 = vmatprep.subr.bf16.mxu0 0
      %1677 = vmatpush1.bf16.msra.mxu0 0
      %1678 = vmatprep.subr.bf16.mxu0 0
      %1679 = vmatpush1.bf16.msra.mxu0 0
      %1680 = vmatprep.subr.bf16.mxu0 0
      %1681 = vmatpush1.bf16.msra.mxu0 0
      %1682 = vmatprep.subr.bf16.mxu0 0
      %1683 = vmatpush1.bf16.msra.mxu0 0
      %1684 = vmatprep.subr.bf16.mxu0 0
      %1685 = vmatpush1.bf16.msra.mxu0 0
      %1686 = vmatprep.mubr.bf16.mxu0 0
      %1687 = vmatmul.mubr.bf16.gmra.mrb[0].mxu0 %v1652
      %v1688 = vpop.f32.mrb[0].mxu0
      %v1689 = vadd.f32 %v1420, %v1688
      %v1690 = vpop.f32.mrb[0].mxu0
      %v1691 = vpop.f32.mrb[0].mxu0
      %v1692 = vadd.f32 %v1421, %v1691
      %v1693 = vpop.f32.mrb[0].mxu0
      %1694 = vdwg.mxu0
      %v1697 = vunpack.c.l.b16 %v797
      %v1698 = vunpack.c.l.b16 %v798
      %v1699 = vpack.c.b16 %v1698, %v1697
      %v1702 = vsel %vm1450, %v1319, 0
      %1704 = vmatprep.subr.bf16.mxu0 0
      %1705 = vmatpush1.bf16.msra.mxu0 %v1699
      %1706 = vmatprep.subr.bf16.mxu0 0
      %1707 = vmatpush1.bf16.msra.mxu0 0
      %1708 = vmatprep.subr.bf16.mxu0 0
      %1709 = vmatpush1.bf16.msra.mxu0 0
      %1710 = vmatprep.subr.bf16.mxu0 0
      %1711 = vmatpush1.bf16.msra.mxu0 0
      %1712 = vmatprep.subr.bf16.mxu0 0
      %1713 = vmatpush1.bf16.msra.mxu0 0
      %1714 = vmatprep.subr.bf16.mxu0 0
      %1715 = vmatpush1.bf16.msra.mxu0 0
      %1716 = vmatprep.subr.bf16.mxu0 0
      %1717 = vmatpush1.bf16.msra.mxu0 0
      %1718 = vmatprep.subr.bf16.mxu0 0
      %1719 = vmatpush1.bf16.msra.mxu0 0
      %1720 = vmatprep.subr.bf16.mxu0 0
      %1721 = vmatpush1.bf16.msra.mxu0 0
      %1722 = vmatprep.subr.bf16.mxu0 0
      %1723 = vmatpush1.bf16.msra.mxu0 0
      %1724 = vmatprep.subr.bf16.mxu0 0
      %1725 = vmatpush1.bf16.msra.mxu0 0
      %1726 = vmatprep.subr.bf16.mxu0 0
      %1727 = vmatpush1.bf16.msra.mxu0 0
      %1728 = vmatprep.subr.bf16.mxu0 0
      %1729 = vmatpush1.bf16.msra.mxu0 0
      %1730 = vmatprep.subr.bf16.mxu0 0
      %1731 = vmatpush1.bf16.msra.mxu0 0
      %1732 = vmatprep.subr.bf16.mxu0 0
      %1733 = vmatpush1.bf16.msra.mxu0 0
      %1734 = vmatprep.subr.bf16.mxu0 0
      %1735 = vmatpush1.bf16.msra.mxu0 0
      %1736 = vmatprep.mubr.bf16.mxu0 0
      %1737 = vmatmul.mubr.bf16.gmra.mrb[0].mxu0 %v1702
      %v1738 = vpop.f32.mrb[0].mxu0
      %v1739 = vadd.f32 %v1422, %v1738
      %v1740 = vpop.f32.mrb[0].mxu0
      %v1741 = vpop.f32.mrb[0].mxu0
      %v1742 = vadd.f32 %v1423, %v1741
      %v1743 = vpop.f32.mrb[0].mxu0
      %1744 = vdwg.mxu0
      %v1747 = vunpack.c.l.b16 %v799
      %v1748 = vunpack.c.l.b16 %v800
      %v1749 = vpack.c.b16 %v1748, %v1747
      %v1752 = vsel %vm1450, %v1320, 0
      %1754 = vmatprep.subr.bf16.mxu0 0
      %1755 = vmatpush1.bf16.msra.mxu0 %v1749
      %1756 = vmatprep.subr.bf16.mxu0 0
      %1757 = vmatpush1.bf16.msra.mxu0 0
      %1758 = vmatprep.subr.bf16.mxu0 0
      %1759 = vmatpush1.bf16.msra.mxu0 0
      %1760 = vmatprep.subr.bf16.mxu0 0
      %1761 = vmatpush1.bf16.msra.mxu0 0
      %1762 = vmatprep.subr.bf16.mxu0 0
      %1763 = vmatpush1.bf16.msra.mxu0 0
      %1764 = vmatprep.subr.bf16.mxu0 0
      %1765 = vmatpush1.bf16.msra.mxu0 0
      %1766 = vmatprep.subr.bf16.mxu0 0
      %1767 = vmatpush1.bf16.msra.mxu0 0
      %1768 = vmatprep.subr.bf16.mxu0 0
      %1769 = vmatpush1.bf16.msra.mxu0 0
      %1770 = vmatprep.subr.bf16.mxu0 0
      %1771 = vmatpush1.bf16.msra.mxu0 0
      %1772 = vmatprep.subr.bf16.mxu0 0
      %1773 = vmatpush1.bf16.msra.mxu0 0
      %1774 = vmatprep.subr.bf16.mxu0 0
      %1775 = vmatpush1.bf16.msra.mxu0 0
      %1776 = vmatprep.subr.bf16.mxu0 0
      %1777 = vmatpush1.bf16.msra.mxu0 0
      %1778 = vmatprep.subr.bf16.mxu0 0
      %1779 = vmatpush1.bf16.msra.mxu0 0
      %1780 = vmatprep.subr.bf16.mxu0 0
      %1781 = vmatpush1.bf16.msra.mxu0 0
      %1782 = vmatprep.subr.bf16.mxu0 0
      %1783 = vmatpush1.bf16.msra.mxu0 0
      %1784 = vmatprep.subr.bf16.mxu0 0
      %1785 = vmatpush1.bf16.msra.mxu0 0
      %1786 = vmatprep.mubr.bf16.mxu0 0
      %1787 = vmatmul.mubr.bf16.gmra.mrb[0].mxu0 %v1752
      %v1788 = vpop.f32.mrb[0].mxu0
      %v1789 = vadd.f32 %v1424, %v1788
      %v1790 = vpop.f32.mrb[0].mxu0
      %v1791 = vpop.f32.mrb[0].mxu0
      %v1792 = vadd.f32 %v1425, %v1791
      %v1793 = vpop.f32.mrb[0].mxu0
      %1794 = vdwg.mxu0
      %v1797 = vunpack.c.l.b16 %v801
      %v1798 = vunpack.c.l.b16 %v802
      %v1799 = vpack.c.b16 %v1798, %v1797
      %v1802 = vsel %vm1450, %v1321, 0
      %1804 = vmatprep.subr.bf16.mxu0 0
      %1805 = vmatpush1.bf16.msra.mxu0 %v1799
      %1806 = vmatprep.subr.bf16.mxu0 0
      %1807 = vmatpush1.bf16.msra.mxu0 0
      %1808 = vmatprep.subr.bf16.mxu0 0
      %1809 = vmatpush1.bf16.msra.mxu0 0
      %1810 = vmatprep.subr.bf16.mxu0 0
      %1811 = vmatpush1.bf16.msra.mxu0 0
      %1812 = vmatprep.subr.bf16.mxu0 0
      %1813 = vmatpush1.bf16.msra.mxu0 0
      %1814 = vmatprep.subr.bf16.mxu0 0
      %1815 = vmatpush1.bf16.msra.mxu0 0
      %1816 = vmatprep.subr.bf16.mxu0 0
      %1817 = vmatpush1.bf16.msra.mxu0 0
      %1818 = vmatprep.subr.bf16.mxu0 0
      %1819 = vmatpush1.bf16.msra.mxu0 0
      %1820 = vmatprep.subr.bf16.mxu0 0
      %1821 = vmatpush1.bf16.msra.mxu0 0
      %1822 = vmatprep.subr.bf16.mxu0 0
      %1823 = vmatpush1.bf16.msra.mxu0 0
      %1824 = vmatprep.subr.bf16.mxu0 0
      %1825 = vmatpush1.bf16.msra.mxu0 0
      %1826 = vmatprep.subr.bf16.mxu0 0
      %1827 = vmatpush1.bf16.msra.mxu0 0
      %1828 = vmatprep.subr.bf16.mxu0 0
      %1829 = vmatpush1.bf16.msra.mxu0 0
      %1830 = vmatprep.subr.bf16.mxu0 0
      %1831 = vmatpush1.bf16.msra.mxu0 0
      %1832 = vmatprep.subr.bf16.mxu0 0
      %1833 = vmatpush1.bf16.msra.mxu0 0
      %1834 = vmatprep.subr.bf16.mxu0 0
      %1835 = vmatpush1.bf16.msra.mxu0 0
      %1836 = vmatprep.mubr.bf16.mxu0 0
      %1837 = vmatmul.mubr.bf16.gmra.mrb[0].mxu0 %v1802
      %v1838 = vpop.f32.mrb[0].mxu0
      %v1839 = vadd.f32 %v1426, %v1838
      %v1840 = vpop.f32.mrb[0].mxu0
      %v1841 = vpop.f32.mrb[0].mxu0
      %v1842 = vadd.f32 %v1427, %v1841
      %v1843 = vpop.f32.mrb[0].mxu0
      %1844 = vdwg.mxu0
      %v1847 = vunpack.c.l.b16 %v803
      %v1848 = vunpack.c.l.b16 %v804
      %v1849 = vpack.c.b16 %v1848, %v1847
      %v1852 = vsel %vm1450, %v1322, 0
      %1854 = vmatprep.subr.bf16.mxu0 0
      %1855 = vmatpush1.bf16.msra.mxu0 %v1849
      %1856 = vmatprep.subr.bf16.mxu0 0
      %1857 = vmatpush1.bf16.msra.mxu0 0
      %1858 = vmatprep.subr.bf16.mxu0 0
      %1859 = vmatpush1.bf16.msra.mxu0 0
      %1860 = vmatprep.subr.bf16.mxu0 0
      %1861 = vmatpush1.bf16.msra.mxu0 0
      %1862 = vmatprep.subr.bf16.mxu0 0
      %1863 = vmatpush1.bf16.msra.mxu0 0
      %1864 = vmatprep.subr.bf16.mxu0 0
      %1865 = vmatpush1.bf16.msra.mxu0 0
      %1866 = vmatprep.subr.bf16.mxu0 0
      %1867 = vmatpush1.bf16.msra.mxu0 0
      %1868 = vmatprep.subr.bf16.mxu0 0
      %1869 = vmatpush1.bf16.msra.mxu0 0
      %1870 = vmatprep.subr.bf16.mxu0 0
      %1871 = vmatpush1.bf16.msra.mxu0 0
      %1872 = vmatprep.subr.bf16.mxu0 0
      %1873 = vmatpush1.bf16.msra.mxu0 0
      %1874 = vmatprep.subr.bf16.mxu0 0
      %1875 = vmatpush1.bf16.msra.mxu0 0
      %1876 = vmatprep.subr.bf16.mxu0 0
      %1877 = vmatpush1.bf16.msra.mxu0 0
      %1878 = vmatprep.subr.bf16.mxu0 0
      %1879 = vmatpush1.bf16.msra.mxu0 0
      %1880 = vmatprep.subr.bf16.mxu0 0
      %1881 = vmatpush1.bf16.msra.mxu0 0
      %1882 = vmatprep.subr.bf16.mxu0 0
      %1883 = vmatpush1.bf16.msra.mxu0 0
      %1884 = vmatprep.subr.bf16.mxu0 0
      %1885 = vmatpush1.bf16.msra.mxu0 0
      %1886 = vmatprep.mubr.bf16.mxu0 0
      %1887 = vmatmul.mubr.bf16.gmra.mrb[0].mxu0 %v1852
      %v1888 = vpop.f32.mrb[0].mxu0
      %v1889 = vadd.f32 %v1428, %v1888
      %v1890 = vpop.f32.mrb[0].mxu0
      %v1891 = vpop.f32.mrb[0].mxu0
      %v1892 = vadd.f32 %v1429, %v1891
      %v1893 = vpop.f32.mrb[0].mxu0
      %1894 = vdwg.mxu0
      %v1897 = vunpack.c.l.b16 %v805
      %v1898 = vunpack.c.l.b16 %v806
      %v1899 = vpack.c.b16 %v1898, %v1897
      %v1902 = vsel %vm1450, %v1323, 0
      %1904 = vmatprep.subr.bf16.mxu0 0
      %1905 = vmatpush1.bf16.msra.mxu0 %v1899
      %1906 = vmatprep.subr.bf16.mxu0 0
      %1907 = vmatpush1.bf16.msra.mxu0 0
      %1908 = vmatprep.subr.bf16.mxu0 0
      %1909 = vmatpush1.bf16.msra.mxu0 0
      %1910 = vmatprep.subr.bf16.mxu0 0
      %1911 = vmatpush1.bf16.msra.mxu0 0
      %1912 = vmatprep.subr.bf16.mxu0 0
      %1913 = vmatpush1.bf16.msra.mxu0 0
      %1914 = vmatprep.subr.bf16.mxu0 0
      %1915 = vmatpush1.bf16.msra.mxu0 0
      %1916 = vmatprep.subr.bf16.mxu0 0
      %1917 = vmatpush1.bf16.msra.mxu0 0
      %1918 = vmatprep.subr.bf16.mxu0 0
      %1919 = vmatpush1.bf16.msra.mxu0 0
      %1920 = vmatprep.subr.bf16.mxu0 0
      %1921 = vmatpush1.bf16.msra.mxu0 0
      %1922 = vmatprep.subr.bf16.mxu0 0
      %1923 = vmatpush1.bf16.msra.mxu0 0
      %1924 = vmatprep.subr.bf16.mxu0 0
      %1925 = vmatpush1.bf16.msra.mxu0 0
      %1926 = vmatprep.subr.bf16.mxu0 0
      %1927 = vmatpush1.bf16.msra.mxu0 0
      %1928 = vmatprep.subr.bf16.mxu0 0
      %1929 = vmatpush1.bf16.msra.mxu0 0
      %1930 = vmatprep.subr.bf16.mxu0 0
      %1931 = vmatpush1.bf16.msra.mxu0 0
      %1932 = vmatprep.subr.bf16.mxu0 0
      %1933 = vmatpush1.bf16.msra.mxu0 0
      %1934 = vmatprep.subr.bf16.mxu0 0
      %1935 = vmatpush1.bf16.msra.mxu0 0
      %1936 = vmatprep.mubr.bf16.mxu0 0
      %1937 = vmatmul.mubr.bf16.gmra.mrb[0].mxu0 %v1902
      %v1938 = vpop.f32.mrb[0].mxu0
      %v1939 = vadd.f32 %v1430, %v1938
      %v1940 = vpop.f32.mrb[0].mxu0
      %v1941 = vpop.f32.mrb[0].mxu0
      %v1942 = vadd.f32 %v1431, %v1941
      %v1943 = vpop.f32.mrb[0].mxu0
      %1944 = vdwg.mxu0
      %v1947 = vunpack.c.l.b16 %v807
      %v1948 = vunpack.c.l.b16 %v808
      %v1949 = vpack.c.b16 %v1948, %v1947
      %v1952 = vsel %vm1450, %v1324, 0
      %1954 = vmatprep.subr.bf16.mxu0 0
      %1955 = vmatpush1.bf16.msra.mxu0 %v1949
      %1956 = vmatprep.subr.bf16.mxu0 0
      %1957 = vmatpush1.bf16.msra.mxu0 0
      %1958 = vmatprep.subr.bf16.mxu0 0
      %1959 = vmatpush1.bf16.msra.mxu0 0
      %1960 = vmatprep.subr.bf16.mxu0 0
      %1961 = vmatpush1.bf16.msra.mxu0 0
      %1962 = vmatprep.subr.bf16.mxu0 0
      %1963 = vmatpush1.bf16.msra.mxu0 0
      %1964 = vmatprep.subr.bf16.mxu0 0
      %1965 = vmatpush1.bf16.msra.mxu0 0
      %1966 = vmatprep.subr.bf16.mxu0 0
      %1967 = vmatpush1.bf16.msra.mxu0 0
      %1968 = vmatprep.subr.bf16.mxu0 0
      %1969 = vmatpush1.bf16.msra.mxu0 0
      %1970 = vmatprep.subr.bf16.mxu0 0
      %1971 = vmatpush1.bf16.msra.mxu0 0
      %1972 = vmatprep.subr.bf16.mxu0 0
      %1973 = vmatpush1.bf16.msra.mxu0 0
      %1974 = vmatprep.subr.bf16.mxu0 0
      %1975 = vmatpush1.bf16.msra.mxu0 0
      %1976 = vmatprep.subr.bf16.mxu0 0
      %1977 = vmatpush1.bf16.msra.mxu0 0
      %1978 = vmatprep.subr.bf16.mxu0 0
      %1979 = vmatpush1.bf16.msra.mxu0 0
      %1980 = vmatprep.subr.bf16.mxu0 0
      %1981 = vmatpush1.bf16.msra.mxu0 0
      %1982 = vmatprep.subr.bf16.mxu0 0
      %1983 = vmatpush1.bf16.msra.mxu0 0
      %1984 = vmatprep.subr.bf16.mxu0 0
      %1985 = vmatpush1.bf16.msra.mxu0 0
      %1986 = vmatprep.mubr.bf16.mxu0 0
      %1987 = vmatmul.mubr.bf16.gmra.mrb[0].mxu0 %v1952
      %v1988 = vpop.f32.mrb[0].mxu0
      %v1989 = vadd.f32 %v1432, %v1988
      %v1990 = vpop.f32.mrb[0].mxu0
      %v1991 = vpop.f32.mrb[0].mxu0
      %v1992 = vadd.f32 %v1433, %v1991
      %v1993 = vpop.f32.mrb[0].mxu0
      %1994 = vdwg.mxu0
      %v1997 = vunpack.c.l.b16 %v809
      %v1998 = vunpack.c.l.b16 %v810
      %v1999 = vpack.c.b16 %v1998, %v1997
      %v2002 = vsel %vm1450, %v1325, 0
      %2004 = vmatprep.subr.bf16.mxu0 0
      %2005 = vmatpush1.bf16.msra.mxu0 %v1999
      %2006 = vmatprep.subr.bf16.mxu0 0
      %2007 = vmatpush1.bf16.msra.mxu0 0
      %2008 = vmatprep.subr.bf16.mxu0 0
      %2009 = vmatpush1.bf16.msra.mxu0 0
      %2010 = vmatprep.subr.bf16.mxu0 0
      %2011 = vmatpush1.bf16.msra.mxu0 0
      %2012 = vmatprep.subr.bf16.mxu0 0
      %2013 = vmatpush1.bf16.msra.mxu0 0
      %2014 = vmatprep.subr.bf16.mxu0 0
      %2015 = vmatpush1.bf16.msra.mxu0 0
      %2016 = vmatprep.subr.bf16.mxu0 0
      %2017 = vmatpush1.bf16.msra.mxu0 0
      %2018 = vmatprep.subr.bf16.mxu0 0
      %2019 = vmatpush1.bf16.msra.mxu0 0
      %2020 = vmatprep.subr.bf16.mxu0 0
      %2021 = vmatpush1.bf16.msra.mxu0 0
      %2022 = vmatprep.subr.bf16.mxu0 0
      %2023 = vmatpush1.bf16.msra.mxu0 0
      %2024 = vmatprep.subr.bf16.mxu0 0
      %2025 = vmatpush1.bf16.msra.mxu0 0
      %2026 = vmatprep.subr.bf16.mxu0 0
      %2027 = vmatpush1.bf16.msra.mxu0 0
      %2028 = vmatprep.subr.bf16.mxu0 0
      %2029 = vmatpush1.bf16.msra.mxu0 0
      %2030 = vmatprep.subr.bf16.mxu0 0
      %2031 = vmatpush1.bf16.msra.mxu0 0
      %2032 = vmatprep.subr.bf16.mxu0 0
      %2033 = vmatpush1.bf16.msra.mxu0 0
      %2034 = vmatprep.subr.bf16.mxu0 0
      %2035 = vmatpush1.bf16.msra.mxu0 0
      %2036 = vmatprep.mubr.bf16.mxu0 0
      %2037 = vmatmul.mubr.bf16.gmra.mrb[0].mxu0 %v2002
      %v2038 = vpop.f32.mrb[0].mxu0
      %v2039 = vadd.f32 %v1434, %v2038
      %v2040 = vpop.f32.mrb[0].mxu0
      %v2041 = vpop.f32.mrb[0].mxu0
      %v2042 = vadd.f32 %v1435, %v2041
      %v2043 = vpop.f32.mrb[0].mxu0
      %2044 = vdwg.mxu0
      %v2047 = vunpack.c.l.b16 %v811
      %v2048 = vunpack.c.l.b16 %v812
      %v2049 = vpack.c.b16 %v2048, %v2047
      %v2052 = vsel %vm1450, %v1326, 0
      %2054 = vmatprep.subr.bf16.mxu0 0
      %2055 = vmatpush1.bf16.msra.mxu0 %v2049
      %2056 = vmatprep.subr.bf16.mxu0 0
      %2057 = vmatpush1.bf16.msra.mxu0 0
      %2058 = vmatprep.subr.bf16.mxu0 0
      %2059 = vmatpush1.bf16.msra.mxu0 0
      %2060 = vmatprep.subr.bf16.mxu0 0
      %2061 = vmatpush1.bf16.msra.mxu0 0
      %2062 = vmatprep.subr.bf16.mxu0 0
      %2063 = vmatpush1.bf16.msra.mxu0 0
      %2064 = vmatprep.subr.bf16.mxu0 0
      %2065 = vmatpush1.bf16.msra.mxu0 0
      %2066 = vmatprep.subr.bf16.mxu0 0
      %2067 = vmatpush1.bf16.msra.mxu0 0
      %2068 = vmatprep.subr.bf16.mxu0 0
      %2069 = vmatpush1.bf16.msra.mxu0 0
      %2070 = vmatprep.subr.bf16.mxu0 0
      %2071 = vmatpush1.bf16.msra.mxu0 0
      %2072 = vmatprep.subr.bf16.mxu0 0
      %2073 = vmatpush1.bf16.msra.mxu0 0
      %2074 = vmatprep.subr.bf16.mxu0 0
      %2075 = vmatpush1.bf16.msra.mxu0 0
      %2076 = vmatprep.subr.bf16.mxu0 0
      %2077 = vmatpush1.bf16.msra.mxu0 0
      %2078 = vmatprep.subr.bf16.mxu0 0
      %2079 = vmatpush1.bf16.msra.mxu0 0
      %2080 = vmatprep.subr.bf16.mxu0 0
      %2081 = vmatpush1.bf16.msra.mxu0 0
      %2082 = vmatprep.subr.bf16.mxu0 0
      %2083 = vmatpush1.bf16.msra.mxu0 0
      %2084 = vmatprep.subr.bf16.mxu0 0
      %2085 = vmatpush1.bf16.msra.mxu0 0
      %2086 = vmatprep.mubr.bf16.mxu0 0
      %2087 = vmatmul.mubr.bf16.gmra.mrb[0].mxu0 %v2052
      %v2088 = vpop.f32.mrb[0].mxu0
      %v2089 = vadd.f32 %v1436, %v2088
      %v2090 = vpop.f32.mrb[0].mxu0
      %v2091 = vpop.f32.mrb[0].mxu0
      %v2092 = vadd.f32 %v1437, %v2091
      %v2093 = vpop.f32.mrb[0].mxu0
      %2094 = vdwg.mxu0
      %v2097 = vunpack.c.l.b16 %v813
      %v2098 = vunpack.c.l.b16 %v814
      %v2099 = vpack.c.b16 %v2098, %v2097
      %v2102 = vsel %vm1450, %v1327, 0
      %2104 = vmatprep.subr.bf16.mxu0 0
      %2105 = vmatpush1.bf16.msra.mxu0 %v2099
      %2106 = vmatprep.subr.bf16.mxu0 0
      %2107 = vmatpush1.bf16.msra.mxu0 0
      %2108 = vmatprep.subr.bf16.mxu0 0
      %2109 = vmatpush1.bf16.msra.mxu0 0
      %2110 = vmatprep.subr.bf16.mxu0 0
      %2111 = vmatpush1.bf16.msra.mxu0 0
      %2112 = vmatprep.subr.bf16.mxu0 0
      %2113 = vmatpush1.bf16.msra.mxu0 0
      %2114 = vmatprep.subr.bf16.mxu0 0
      %2115 = vmatpush1.bf16.msra.mxu0 0
      %2116 = vmatprep.subr.bf16.mxu0 0
      %2117 = vmatpush1.bf16.msra.mxu0 0
      %2118 = vmatprep.subr.bf16.mxu0 0
      %2119 = vmatpush1.bf16.msra.mxu0 0
      %2120 = vmatprep.subr.bf16.mxu0 0
      %2121 = vmatpush1.bf16.msra.mxu0 0
      %2122 = vmatprep.subr.bf16.mxu0 0
      %2123 = vmatpush1.bf16.msra.mxu0 0
      %2124 = vmatprep.subr.bf16.mxu0 0
      %2125 = vmatpush1.bf16.msra.mxu0 0
      %2126 = vmatprep.subr.bf16.mxu0 0
      %2127 = vmatpush1.bf16.msra.mxu0 0
      %2128 = vmatprep.subr.bf16.mxu0 0
      %2129 = vmatpush1.bf16.msra.mxu0 0
      %2130 = vmatprep.subr.bf16.mxu0 0
      %2131 = vmatpush1.bf16.msra.mxu0 0
      %2132 = vmatprep.subr.bf16.mxu0 0
      %2133 = vmatpush1.bf16.msra.mxu0 0
      %2134 = vmatprep.subr.bf16.mxu0 0
      %2135 = vmatpush1.bf16.msra.mxu0 0
      %2136 = vmatprep.mubr.bf16.mxu0 0
      %2137 = vmatmul.mubr.bf16.gmra.mrb[0].mxu0 %v2102
      %v2138 = vpop.f32.mrb[0].mxu0
      %v2139 = vadd.f32 %v1438, %v2138
      %v2140 = vpop.f32.mrb[0].mxu0
      %v2141 = vpop.f32.mrb[0].mxu0
      %v2142 = vadd.f32 %v1439, %v2141
      %v2143 = vpop.f32.mrb[0].mxu0
      %2144 = vdwg.mxu0
      %v2147 = vunpack.c.l.b16 %v815
      %v2148 = vunpack.c.l.b16 %v816
      %v2149 = vpack.c.b16 %v2148, %v2147
      %v2152 = vsel %vm1450, %v1328, 0
      %2154 = vmatprep.subr.bf16.mxu0 0
      %2155 = vmatpush1.bf16.msra.mxu0 %v2149
      %2156 = vmatprep.subr.bf16.mxu0 0
      %2157 = vmatpush1.bf16.msra.mxu0 0
      %2158 = vmatprep.subr.bf16.mxu0 0
      %2159 = vmatpush1.bf16.msra.mxu0 0
      %2160 = vmatprep.subr.bf16.mxu0 0
      %2161 = vmatpush1.bf16.msra.mxu0 0
      %2162 = vmatprep.subr.bf16.mxu0 0
      %2163 = vmatpush1.bf16.msra.mxu0 0
      %2164 = vmatprep.subr.bf16.mxu0 0
      %2165 = vmatpush1.bf16.msra.mxu0 0
      %2166 = vmatprep.subr.bf16.mxu0 0
      %2167 = vmatpush1.bf16.msra.mxu0 0
      %2168 = vmatprep.subr.bf16.mxu0 0
      %2169 = vmatpush1.bf16.msra.mxu0 0
      %2170 = vmatprep.subr.bf16.mxu0 0
      %2171 = vmatpush1.bf16.msra.mxu0 0
      %2172 = vmatprep.subr.bf16.mxu0 0
      %2173 = vmatpush1.bf16.msra.mxu0 0
      %2174 = vmatprep.subr.bf16.mxu0 0
      %2175 = vmatpush1.bf16.msra.mxu0 0
      %2176 = vmatprep.subr.bf16.mxu0 0
      %2177 = vmatpush1.bf16.msra.mxu0 0
      %2178 = vmatprep.subr.bf16.mxu0 0
      %2179 = vmatpush1.bf16.msra.mxu0 0
      %2180 = vmatprep.subr.bf16.mxu0 0
      %2181 = vmatpush1.bf16.msra.mxu0 0
      %2182 = vmatprep.subr.bf16.mxu0 0
      %2183 = vmatpush1.bf16.msra.mxu0 0
      %2184 = vmatprep.subr.bf16.mxu0 0
      %2185 = vmatpush1.bf16.msra.mxu0 0
      %2186 = vmatprep.mubr.bf16.mxu0 0
      %2187 = vmatmul.mubr.bf16.gmra.mrb[0].mxu0 %v2152
      %v2188 = vpop.f32.mrb[0].mxu0
      %v2189 = vadd.f32 %v1440, %v2188
      %v2190 = vpop.f32.mrb[0].mxu0
      %v2191 = vpop.f32.mrb[0].mxu0
      %v2192 = vadd.f32 %v1441, %v2191
      %v2193 = vpop.f32.mrb[0].mxu0
      %2194 = vdwg.mxu0
      %v2197 = vunpack.c.l.b16 %v817
      %v2198 = vunpack.c.l.b16 %v818
      %v2199 = vpack.c.b16 %v2198, %v2197
      %v2202 = vsel %vm1450, %v1329, 0
      %2204 = vmatprep.subr.bf16.mxu0 0
      %2205 = vmatpush1.bf16.msra.mxu0 %v2199
      %2206 = vmatprep.subr.bf16.mxu0 0
      %2207 = vmatpush1.bf16.msra.mxu0 0
      %2208 = vmatprep.subr.bf16.mxu0 0
      %2209 = vmatpush1.bf16.msra.mxu0 0
      %2210 = vmatprep.subr.bf16.mxu0 0
      %2211 = vmatpush1.bf16.msra.mxu0 0
      %2212 = vmatprep.subr.bf16.mxu0 0
      %2213 = vmatpush1.bf16.msra.mxu0 0
      %2214 = vmatprep.subr.bf16.mxu0 0
      %2215 = vmatpush1.bf16.msra.mxu0 0
      %2216 = vmatprep.subr.bf16.mxu0 0
      %2217 = vmatpush1.bf16.msra.mxu0 0
      %2218 = vmatprep.subr.bf16.mxu0 0
      %2219 = vmatpush1.bf16.msra.mxu0 0
      %2220 = vmatprep.subr.bf16.mxu0 0
      %2221 = vmatpush1.bf16.msra.mxu0 0
      %2222 = vmatprep.subr.bf16.mxu0 0
      %2223 = vmatpush1.bf16.msra.mxu0 0
      %2224 = vmatprep.subr.bf16.mxu0 0
      %2225 = vmatpush1.bf16.msra.mxu0 0
      %2226 = vmatprep.subr.bf16.mxu0 0
      %2227 = vmatpush1.bf16.msra.mxu0 0
      %2228 = vmatprep.subr.bf16.mxu0 0
      %2229 = vmatpush1.bf16.msra.mxu0 0
      %2230 = vmatprep.subr.bf16.mxu0 0
      %2231 = vmatpush1.bf16.msra.mxu0 0
      %2232 = vmatprep.subr.bf16.mxu0 0
      %2233 = vmatpush1.bf16.msra.mxu0 0
      %2234 = vmatprep.subr.bf16.mxu0 0
      %2235 = vmatpush1.bf16.msra.mxu0 0
      %2236 = vmatprep.mubr.bf16.mxu0 0
      %2237 = vmatmul.mubr.bf16.gmra.mrb[0].mxu0 %v2202
      %v2238 = vpop.f32.mrb[0].mxu0
      %v2239 = vadd.f32 %v1442, %v2238
      %v2240 = vpop.f32.mrb[0].mxu0
      %v2241 = vpop.f32.mrb[0].mxu0
      %v2242 = vadd.f32 %v1443, %v2241
      %v2243 = vpop.f32.mrb[0].mxu0
      %2244 = vdwg.mxu0
      %v2245 = vld [vmem:[#allocation2 + $0x10] sm:$0xff]
      %v2246 = vld [vmem:[#allocation2 + $0x18] sm:$0xff]
      %v2247 = vlaneseq
      %v2248 = vshrl.u32 %v2247, 7
      %v2249 = vsub.s32 1, %v2248
      %v2250 = vrot.slane %v1330, %v2249
      %v2251 = vlaneseq
      %v2252 = vshrl.u32 %v2251, 7
      %v2253 = vsub.s32 1, %v2252
      %v2254 = vrot.slane %v1331, %v2253
      %v2255 = vlaneseq
      %v2256 = vshrl.u32 %v2255, 7
      %v2257 = vsub.s32 1, %v2256
      %v2258 = vrot.slane %v1332, %v2257
      %v2259 = vlaneseq
      %v2260 = vshrl.u32 %v2259, 7
      %v2261 = vsub.s32 1, %v2260
      %v2262 = vrot.slane %v1333, %v2261
      %v2263 = vlaneseq
      %v2264 = vshrl.u32 %v2263, 7
      %v2265 = vsub.s32 1, %v2264
      %v2266 = vrot.slane %v1334, %v2265
      %v2267 = vlaneseq
      %v2268 = vshrl.u32 %v2267, 7
      %v2269 = vsub.s32 1, %v2268
      %v2270 = vrot.slane %v1335, %v2269
      %v2271 = vlaneseq
      %v2272 = vshrl.u32 %v2271, 7
      %v2273 = vsub.s32 1, %v2272
      %v2274 = vrot.slane %v1336, %v2273
      %v2275 = vlaneseq
      %v2276 = vshrl.u32 %v2275, 7
      %v2277 = vsub.s32 1, %v2276
      %v2278 = vrot.slane %v1337, %v2277
      %v2279 = vlaneseq
      %v2280 = vshrl.u32 %v2279, 7
      %v2281 = vsub.s32 1, %v2280
      %v2282 = vrot.slane %v1338, %v2281
      %v2283 = vlaneseq
      %v2284 = vshrl.u32 %v2283, 7
      %v2285 = vsub.s32 1, %v2284
      %v2286 = vrot.slane %v1339, %v2285
      %v2287 = vlaneseq
      %v2288 = vshrl.u32 %v2287, 7
      %v2289 = vsub.s32 1, %v2288
      %v2290 = vrot.slane %v1340, %v2289
      %v2291 = vlaneseq
      %v2292 = vshrl.u32 %v2291, 7
      %v2293 = vsub.s32 1, %v2292
      %v2294 = vrot.slane %v1341, %v2293
      %v2295 = vlaneseq
      %v2296 = vshrl.u32 %v2295, 7
      %v2297 = vsub.s32 1, %v2296
      %v2298 = vrot.slane %v1342, %v2297
      %v2299 = vlaneseq
      %v2300 = vshrl.u32 %v2299, 7
      %v2301 = vsub.s32 1, %v2300
      %v2302 = vrot.slane %v1343, %v2301
      %v2303 = vlaneseq
      %v2304 = vshrl.u32 %v2303, 7
      %v2305 = vsub.s32 1, %v2304
      %v2306 = vrot.slane %v1344, %v2305
      %v2307 = vlaneseq
      %v2308 = vshrl.u32 %v2307, 7
      %v2309 = vsub.s32 1, %v2308
      %v2310 = vrot.slane %v1345, %v2309
      %v2311 = vmul.f32 %v2250, %v2245
      %v2312 = vmul.f32 %v2250, %v2246
      %v2313 = vmul.f32 %v2254, %v2245
      %v2314 = vmul.f32 %v2254, %v2246
      %v2315 = vmul.f32 %v2258, %v2245
      %v2316 = vmul.f32 %v2258, %v2246
      %v2317 = vmul.f32 %v2262, %v2245
      %v2318 = vmul.f32 %v2262, %v2246
      %v2319 = vmul.f32 %v2266, %v2245
      %v2320 = vmul.f32 %v2266, %v2246
      %v2321 = vmul.f32 %v2270, %v2245
      %v2322 = vmul.f32 %v2270, %v2246
      %v2323 = vmul.f32 %v2274, %v2245
      %v2324 = vmul.f32 %v2274, %v2246
      %v2325 = vmul.f32 %v2278, %v2245
      %v2326 = vmul.f32 %v2278, %v2246
      %v2327 = vmul.f32 %v2282, %v2245
      %v2328 = vmul.f32 %v2282, %v2246
      %v2329 = vmul.f32 %v2286, %v2245
      %v2330 = vmul.f32 %v2286, %v2246
      %v2331 = vmul.f32 %v2290, %v2245
      %v2332 = vmul.f32 %v2290, %v2246
      %v2333 = vmul.f32 %v2294, %v2245
      %v2334 = vmul.f32 %v2294, %v2246
      %v2335 = vmul.f32 %v2298, %v2245
      %v2336 = vmul.f32 %v2298, %v2246
      %v2337 = vmul.f32 %v2302, %v2245
      %v2338 = vmul.f32 %v2302, %v2246
      %v2339 = vmul.f32 %v2306, %v2245
      %v2340 = vmul.f32 %v2306, %v2246
      %v2341 = vmul.f32 %v2310, %v2245
      %v2342 = vmul.f32 %v2310, %v2246
      %v2343 = vadd.f32 %v1489, %v2311
      %v2344 = vadd.f32 %v1492, %v2312
      %v2345 = vadd.f32 %v1539, %v2313
      %v2346 = vadd.f32 %v1542, %v2314
      %v2347 = vadd.f32 %v1589, %v2315
      %v2348 = vadd.f32 %v1592, %v2316
      %v2349 = vadd.f32 %v1639, %v2317
      %v2350 = vadd.f32 %v1642, %v2318
      %v2351 = vadd.f32 %v1689, %v2319
      %v2352 = vadd.f32 %v1692, %v2320
      %v2353 = vadd.f32 %v1739, %v2321
      %v2354 = vadd.f32 %v1742, %v2322
      %v2355 = vadd.f32 %v1789, %v2323
      %v2356 = vadd.f32 %v1792, %v2324
      %v2357 = vadd.f32 %v1839, %v2325
      %v2358 = vadd.f32 %v1842, %v2326
      %v2359 = vadd.f32 %v1889, %v2327
      %v2360 = vadd.f32 %v1892, %v2328
      %v2361 = vadd.f32 %v1939, %v2329
      %v2362 = vadd.f32 %v1942, %v2330
      %v2363 = vadd.f32 %v1989, %v2331
      %v2364 = vadd.f32 %v1992, %v2332
      %v2365 = vadd.f32 %v2039, %v2333
      %v2366 = vadd.f32 %v2042, %v2334
      %v2367 = vadd.f32 %v2089, %v2335
      %v2368 = vadd.f32 %v2092, %v2336
      %v2369 = vadd.f32 %v2139, %v2337
      %v2370 = vadd.f32 %v2142, %v2338
      %v2371 = vadd.f32 %v2189, %v2339
      %v2372 = vadd.f32 %v2192, %v2340
      %v2373 = vadd.f32 %v2239, %v2341
      %v2374 = vadd.f32 %v2242, %v2342
      %v2375 = vld [vmem:[#allocation2 + $0x20] sm:$0xff]
      %v2376 = vld [vmem:[#allocation2 + $0x28] sm:$0xff]
      %v2377 = vlaneseq
      %v2378 = vshrl.u32 %v2377, 7
      %v2379 = vsub.s32 2, %v2378
      %v2380 = vrot.slane %v1330, %v2379
      %v2381 = vlaneseq
      %v2382 = vshrl.u32 %v2381, 7
      %v2383 = vsub.s32 2, %v2382
      %v2384 = vrot.slane %v1331, %v2383
      %v2385 = vlaneseq
      %v2386 = vshrl.u32 %v2385, 7
      %v2387 = vsub.s32 2, %v2386
      %v2388 = vrot.slane %v1332, %v2387
      %v2389 = vlaneseq
      %v2390 = vshrl.u32 %v2389, 7
      %v2391 = vsub.s32 2, %v2390
      %v2392 = vrot.slane %v1333, %v2391
      %v2393 = vlaneseq
      %v2394 = vshrl.u32 %v2393, 7
      %v2395 = vsub.s32 2, %v2394
      %v2396 = vrot.slane %v1334, %v2395
      %v2397 = vlaneseq
      %v2398 = vshrl.u32 %v2397, 7
      %v2399 = vsub.s32 2, %v2398
      %v2400 = vrot.slane %v1335, %v2399
      %v2401 = vlaneseq
      %v2402 = vshrl.u32 %v2401, 7
      %v2403 = vsub.s32 2, %v2402
      %v2404 = vrot.slane %v1336, %v2403
      %v2405 = vlaneseq
      %v2406 = vshrl.u32 %v2405, 7
      %v2407 = vsub.s32 2, %v2406
      %v2408 = vrot.slane %v1337, %v2407
      %v2409 = vlaneseq
      %v2410 = vshrl.u32 %v2409, 7
      %v2411 = vsub.s32 2, %v2410
      %v2412 = vrot.slane %v1338, %v2411
      %v2413 = vlaneseq
      %v2414 = vshrl.u32 %v2413, 7
      %v2415 = vsub.s32 2, %v2414
      %v2416 = vrot.slane %v1339, %v2415
      %v2417 = vlaneseq
      %v2418 = vshrl.u32 %v2417, 7
      %v2419 = vsub.s32 2, %v2418
      %v2420 = vrot.slane %v1340, %v2419
      %v2421 = vlaneseq
      %v2422 = vshrl.u32 %v2421, 7
      %v2423 = vsub.s32 2, %v2422
      %v2424 = vrot.slane %v1341, %v2423
      %v2425 = vlaneseq
      %v2426 = vshrl.u32 %v2425, 7
      %v2427 = vsub.s32 2, %v2426
      %v2428 = vrot.slane %v1342, %v2427
      %v2429 = vlaneseq
      %v2430 = vshrl.u32 %v2429, 7
      %v2431 = vsub.s32 2, %v2430
      %v2432 = vrot.slane %v1343, %v2431
      %v2433 = vlaneseq
      %v2434 = vshrl.u32 %v2433, 7
      %v2435 = vsub.s32 2, %v2434
      %v2436 = vrot.slane %v1344, %v2435
      %v2437 = vlaneseq
      %v2438 = vshrl.u32 %v2437, 7
      %v2439 = vsub.s32 2, %v2438
      %v2440 = vrot.slane %v1345, %v2439
      %v2441 = vmul.f32 %v2380, %v2375
      %v2442 = vmul.f32 %v2380, %v2376
      %v2443 = vmul.f32 %v2384, %v2375
      %v2444 = vmul.f32 %v2384, %v2376
      %v2445 = vmul.f32 %v2388, %v2375
      %v2446 = vmul.f32 %v2388, %v2376
      %v2447 = vmul.f32 %v2392, %v2375
      %v2448 = vmul.f32 %v2392, %v2376
      %v2449 = vmul.f32 %v2396, %v2375
      %v2450 = vmul.f32 %v2396, %v2376
      %v2451 = vmul.f32 %v2400, %v2375
      %v2452 = vmul.f32 %v2400, %v2376
      %v2453 = vmul.f32 %v2404, %v2375
      %v2454 = vmul.f32 %v2404, %v2376
      %v2455 = vmul.f32 %v2408, %v2375
      %v2456 = vmul.f32 %v2408, %v2376
      %v2457 = vmul.f32 %v2412, %v2375
      %v2458 = vmul.f32 %v2412, %v2376
      %v2459 = vmul.f32 %v2416, %v2375
      %v2460 = vmul.f32 %v2416, %v2376
      %v2461 = vmul.f32 %v2420, %v2375
      %v2462 = vmul.f32 %v2420, %v2376
      %v2463 = vmul.f32 %v2424, %v2375
      %v2464 = vmul.f32 %v2424, %v2376
      %v2465 = vmul.f32 %v2428, %v2375
      %v2466 = vmul.f32 %v2428, %v2376
      %v2467 = vmul.f32 %v2432, %v2375
      %v2468 = vmul.f32 %v2432, %v2376
      %v2469 = vmul.f32 %v2436, %v2375
      %v2470 = vmul.f32 %v2436, %v2376
      %v2471 = vmul.f32 %v2440, %v2375
      %v2472 = vmul.f32 %v2440, %v2376
      %v2473 = vadd.f32 %v2343, %v2441
      %v2474 = vadd.f32 %v2344, %v2442
      %v2475 = vadd.f32 %v2345, %v2443
      %v2476 = vadd.f32 %v2346, %v2444
      %v2477 = vadd.f32 %v2347, %v2445
      %v2478 = vadd.f32 %v2348, %v2446
      %v2479 = vadd.f32 %v2349, %v2447
      %v2480 = vadd.f32 %v2350, %v2448
      %v2481 = vadd.f32 %v2351, %v2449
      %v2482 = vadd.f32 %v2352, %v2450
      %v2483 = vadd.f32 %v2353, %v2451
      %v2484 = vadd.f32 %v2354, %v2452
      %v2485 = vadd.f32 %v2355, %v2453
      %v2486 = vadd.f32 %v2356, %v2454
      %v2487 = vadd.f32 %v2357, %v2455
      %v2488 = vadd.f32 %v2358, %v2456
      %v2489 = vadd.f32 %v2359, %v2457
      %v2490 = vadd.f32 %v2360, %v2458
      %v2491 = vadd.f32 %v2361, %v2459
      %v2492 = vadd.f32 %v2362, %v2460
      %v2493 = vadd.f32 %v2363, %v2461
      %v2494 = vadd.f32 %v2364, %v2462
      %v2495 = vadd.f32 %v2365, %v2463
      %v2496 = vadd.f32 %v2366, %v2464
      %v2497 = vadd.f32 %v2367, %v2465
      %v2498 = vadd.f32 %v2368, %v2466
      %v2499 = vadd.f32 %v2369, %v2467
      %v2500 = vadd.f32 %v2370, %v2468
      %v2501 = vadd.f32 %v2371, %v2469
      %v2502 = vadd.f32 %v2372, %v2470
      %v2503 = vadd.f32 %v2373, %v2471
      %v2504 = vadd.f32 %v2374, %v2472
      %v2505 = vld [vmem:[#allocation2 + $0x30] sm:$0xff]
      %v2506 = vld [vmem:[#allocation2 + $0x38] sm:$0xff]
      %v2507 = vlaneseq
      %v2508 = vshrl.u32 %v2507, 7
      %v2509 = vsub.s32 3, %v2508
      %v2510 = vrot.slane %v1330, %v2509
      %v2511 = vlaneseq
      %v2512 = vshrl.u32 %v2511, 7
      %v2513 = vsub.s32 3, %v2512
      %v2514 = vrot.slane %v1331, %v2513
      %v2515 = vlaneseq
      %v2516 = vshrl.u32 %v2515, 7
      %v2517 = vsub.s32 3, %v2516
      %v2518 = vrot.slane %v1332, %v2517
      %v2519 = vlaneseq
      %v2520 = vshrl.u32 %v2519, 7
      %v2521 = vsub.s32 3, %v2520
      %v2522 = vrot.slane %v1333, %v2521
      %v2523 = vlaneseq
      %v2524 = vshrl.u32 %v2523, 7
      %v2525 = vsub.s32 3, %v2524
      %v2526 = vrot.slane %v1334, %v2525
      %v2527 = vlaneseq
      %v2528 = vshrl.u32 %v2527, 7
      %v2529 = vsub.s32 3, %v2528
      %v2530 = vrot.slane %v1335, %v2529
      %v2531 = vlaneseq
      %v2532 = vshrl.u32 %v2531, 7
      %v2533 = vsub.s32 3, %v2532
      %v2534 = vrot.slane %v1336, %v2533
      %v2535 = vlaneseq
      %v2536 = vshrl.u32 %v2535, 7
      %v2537 = vsub.s32 3, %v2536
      %v2538 = vrot.slane %v1337, %v2537
      %v2539 = vlaneseq
      %v2540 = vshrl.u32 %v2539, 7
      %v2541 = vsub.s32 3, %v2540
      %v2542 = vrot.slane %v1338, %v2541
      %v2543 = vlaneseq
      %v2544 = vshrl.u32 %v2543, 7
      %v2545 = vsub.s32 3, %v2544
      %v2546 = vrot.slane %v1339, %v2545
      %v2547 = vlaneseq
      %v2548 = vshrl.u32 %v2547, 7
      %v2549 = vsub.s32 3, %v2548
      %v2550 = vrot.slane %v1340, %v2549
      %v2551 = vlaneseq
      %v2552 = vshrl.u32 %v2551, 7
      %v2553 = vsub.s32 3, %v2552
      %v2554 = vrot.slane %v1341, %v2553
      %v2555 = vlaneseq
      %v2556 = vshrl.u32 %v2555, 7
      %v2557 = vsub.s32 3, %v2556
      %v2558 = vrot.slane %v1342, %v2557
      %v2559 = vlaneseq
      %v2560 = vshrl.u32 %v2559, 7
      %v2561 = vsub.s32 3, %v2560
      %v2562 = vrot.slane %v1343, %v2561
      %v2563 = vlaneseq
      %v2564 = vshrl.u32 %v2563, 7
      %v2565 = vsub.s32 3, %v2564
      %v2566 = vrot.slane %v1344, %v2565
      %v2567 = vlaneseq
      %v2568 = vshrl.u32 %v2567, 7
      %v2569 = vsub.s32 3, %v2568
      %v2570 = vrot.slane %v1345, %v2569
      %v2571 = vmul.f32 %v2510, %v2505
      %v2572 = vmul.f32 %v2510, %v2506
      %v2573 = vmul.f32 %v2514, %v2505
      %v2574 = vmul.f32 %v2514, %v2506
      %v2575 = vmul.f32 %v2518, %v2505
      %v2576 = vmul.f32 %v2518, %v2506
      %v2577 = vmul.f32 %v2522, %v2505
      %v2578 = vmul.f32 %v2522, %v2506
      %v2579 = vmul.f32 %v2526, %v2505
      %v2580 = vmul.f32 %v2526, %v2506
      %v2581 = vmul.f32 %v2530, %v2505
      %v2582 = vmul.f32 %v2530, %v2506
      %v2583 = vmul.f32 %v2534, %v2505
      %v2584 = vmul.f32 %v2534, %v2506
      %v2585 = vmul.f32 %v2538, %v2505
      %v2586 = vmul.f32 %v2538, %v2506
      %v2587 = vmul.f32 %v2542, %v2505
      %v2588 = vmul.f32 %v2542, %v2506
      %v2589 = vmul.f32 %v2546, %v2505
      %v2590 = vmul.f32 %v2546, %v2506
      %v2591 = vmul.f32 %v2550, %v2505
      %v2592 = vmul.f32 %v2550, %v2506
      %v2593 = vmul.f32 %v2554, %v2505
      %v2594 = vmul.f32 %v2554, %v2506
      %v2595 = vmul.f32 %v2558, %v2505
      %v2596 = vmul.f32 %v2558, %v2506
      %v2597 = vmul.f32 %v2562, %v2505
      %v2598 = vmul.f32 %v2562, %v2506
      %v2599 = vmul.f32 %v2566, %v2505
      %v2600 = vmul.f32 %v2566, %v2506
      %v2601 = vmul.f32 %v2570, %v2505
      %v2602 = vmul.f32 %v2570, %v2506
      %v2603 = vadd.f32 %v2473, %v2571
      %v2604 = vadd.f32 %v2474, %v2572
      %v2605 = vadd.f32 %v2475, %v2573
      %v2606 = vadd.f32 %v2476, %v2574
      %v2607 = vadd.f32 %v2477, %v2575
      %v2608 = vadd.f32 %v2478, %v2576
      %v2609 = vadd.f32 %v2479, %v2577
      %v2610 = vadd.f32 %v2480, %v2578
      %v2611 = vadd.f32 %v2481, %v2579
      %v2612 = vadd.f32 %v2482, %v2580
      %v2613 = vadd.f32 %v2483, %v2581
      %v2614 = vadd.f32 %v2484, %v2582
      %v2615 = vadd.f32 %v2485, %v2583
      %v2616 = vadd.f32 %v2486, %v2584
      %v2617 = vadd.f32 %v2487, %v2585
      %v2618 = vadd.f32 %v2488, %v2586
      %v2619 = vadd.f32 %v2489, %v2587
      %v2620 = vadd.f32 %v2490, %v2588
      %v2621 = vadd.f32 %v2491, %v2589
      %v2622 = vadd.f32 %v2492, %v2590
      %v2623 = vadd.f32 %v2493, %v2591
      %v2624 = vadd.f32 %v2494, %v2592
      %v2625 = vadd.f32 %v2495, %v2593
      %v2626 = vadd.f32 %v2496, %v2594
      %v2627 = vadd.f32 %v2497, %v2595
      %v2628 = vadd.f32 %v2498, %v2596
      %v2629 = vadd.f32 %v2499, %v2597
      %v2630 = vadd.f32 %v2500, %v2598
      %v2631 = vadd.f32 %v2501, %v2599
      %v2632 = vadd.f32 %v2502, %v2600
      %v2633 = vadd.f32 %v2503, %v2601
      %v2634 = vadd.f32 %v2504, %v2602
      %v2635 = vld [vmem:[#allocation2 + $0x40] sm:$0xff]
      %v2636 = vld [vmem:[#allocation2 + $0x48] sm:$0xff]
      %v2637 = vlaneseq
      %v2638 = vshrl.u32 %v2637, 7
      %v2639 = vsub.s32 4, %v2638
      %v2640 = vrot.slane %v1330, %v2639
      %v2641 = vlaneseq
      %v2642 = vshrl.u32 %v2641, 7
      %v2643 = vsub.s32 4, %v2642
      %v2644 = vrot.slane %v1331, %v2643
      %v2645 = vlaneseq
      %v2646 = vshrl.u32 %v2645, 7
      %v2647 = vsub.s32 4, %v2646
      %v2648 = vrot.slane %v1332, %v2647
      %v2649 = vlaneseq
      %v2650 = vshrl.u32 %v2649, 7
      %v2651 = vsub.s32 4, %v2650
      %v2652 = vrot.slane %v1333, %v2651
      %v2653 = vlaneseq
      %v2654 = vshrl.u32 %v2653, 7
      %v2655 = vsub.s32 4, %v2654
      %v2656 = vrot.slane %v1334, %v2655
      %v2657 = vlaneseq
      %v2658 = vshrl.u32 %v2657, 7
      %v2659 = vsub.s32 4, %v2658
      %v2660 = vrot.slane %v1335, %v2659
      %v2661 = vlaneseq
      %v2662 = vshrl.u32 %v2661, 7
      %v2663 = vsub.s32 4, %v2662
      %v2664 = vrot.slane %v1336, %v2663
      %v2665 = vlaneseq
      %v2666 = vshrl.u32 %v2665, 7
      %v2667 = vsub.s32 4, %v2666
      %v2668 = vrot.slane %v1337, %v2667
      %v2669 = vlaneseq
      %v2670 = vshrl.u32 %v2669, 7
      %v2671 = vsub.s32 4, %v2670
      %v2672 = vrot.slane %v1338, %v2671
      %v2673 = vlaneseq
      %v2674 = vshrl.u32 %v2673, 7
      %v2675 = vsub.s32 4, %v2674
      %v2676 = vrot.slane %v1339, %v2675
      %v2677 = vlaneseq
      %v2678 = vshrl.u32 %v2677, 7
      %v2679 = vsub.s32 4, %v2678
      %v2680 = vrot.slane %v1340, %v2679
      %v2681 = vlaneseq
      %v2682 = vshrl.u32 %v2681, 7
      %v2683 = vsub.s32 4, %v2682
      %v2684 = vrot.slane %v1341, %v2683
      %v2685 = vlaneseq
      %v2686 = vshrl.u32 %v2685, 7
      %v2687 = vsub.s32 4, %v2686
      %v2688 = vrot.slane %v1342, %v2687
      %v2689 = vlaneseq
      %v2690 = vshrl.u32 %v2689, 7
      %v2691 = vsub.s32 4, %v2690
      %v2692 = vrot.slane %v1343, %v2691
      %v2693 = vlaneseq
      %v2694 = vshrl.u32 %v2693, 7
      %v2695 = vsub.s32 4, %v2694
      %v2696 = vrot.slane %v1344, %v2695
      %v2697 = vlaneseq
      %v2698 = vshrl.u32 %v2697, 7
      %v2699 = vsub.s32 4, %v2698
      %v2700 = vrot.slane %v1345, %v2699
      %v2701 = vmul.f32 %v2640, %v2635
      %v2702 = vmul.f32 %v2640, %v2636
      %v2703 = vmul.f32 %v2644, %v2635
      %v2704 = vmul.f32 %v2644, %v2636
      %v2705 = vmul.f32 %v2648, %v2635
      %v2706 = vmul.f32 %v2648, %v2636
      %v2707 = vmul.f32 %v2652, %v2635
      %v2708 = vmul.f32 %v2652, %v2636
      %v2709 = vmul.f32 %v2656, %v2635
      %v2710 = vmul.f32 %v2656, %v2636
      %v2711 = vmul.f32 %v2660, %v2635
      %v2712 = vmul.f32 %v2660, %v2636
      %v2713 = vmul.f32 %v2664, %v2635
      %v2714 = vmul.f32 %v2664, %v2636
      %v2715 = vmul.f32 %v2668, %v2635
      %v2716 = vmul.f32 %v2668, %v2636
      %v2717 = vmul.f32 %v2672, %v2635
      %v2718 = vmul.f32 %v2672, %v2636
      %v2719 = vmul.f32 %v2676, %v2635
      %v2720 = vmul.f32 %v2676, %v2636
      %v2721 = vmul.f32 %v2680, %v2635
      %v2722 = vmul.f32 %v2680, %v2636
      %v2723 = vmul.f32 %v2684, %v2635
      %v2724 = vmul.f32 %v2684, %v2636
      %v2725 = vmul.f32 %v2688, %v2635
      %v2726 = vmul.f32 %v2688, %v2636
      %v2727 = vmul.f32 %v2692, %v2635
      %v2728 = vmul.f32 %v2692, %v2636
      %v2729 = vmul.f32 %v2696, %v2635
      %v2730 = vmul.f32 %v2696, %v2636
      %v2731 = vmul.f32 %v2700, %v2635
      %v2732 = vmul.f32 %v2700, %v2636
      %v2733 = vadd.f32 %v2603, %v2701
      %v2734 = vadd.f32 %v2604, %v2702
      %v2735 = vadd.f32 %v2605, %v2703
      %v2736 = vadd.f32 %v2606, %v2704
      %v2737 = vadd.f32 %v2607, %v2705
      %v2738 = vadd.f32 %v2608, %v2706
      %v2739 = vadd.f32 %v2609, %v2707
      %v2740 = vadd.f32 %v2610, %v2708
      %v2741 = vadd.f32 %v2611, %v2709
      %v2742 = vadd.f32 %v2612, %v2710
      %v2743 = vadd.f32 %v2613, %v2711
      %v2744 = vadd.f32 %v2614, %v2712
      %v2745 = vadd.f32 %v2615, %v2713
      %v2746 = vadd.f32 %v2616, %v2714
      %v2747 = vadd.f32 %v2617, %v2715
      %v2748 = vadd.f32 %v2618, %v2716
      %v2749 = vadd.f32 %v2619, %v2717
      %v2750 = vadd.f32 %v2620, %v2718
      %v2751 = vadd.f32 %v2621, %v2719
      %v2752 = vadd.f32 %v2622, %v2720
      %v2753 = vadd.f32 %v2623, %v2721
      %v2754 = vadd.f32 %v2624, %v2722
      %v2755 = vadd.f32 %v2625, %v2723
      %v2756 = vadd.f32 %v2626, %v2724
      %v2757 = vadd.f32 %v2627, %v2725
      %v2758 = vadd.f32 %v2628, %v2726
      %v2759 = vadd.f32 %v2629, %v2727
      %v2760 = vadd.f32 %v2630, %v2728
      %v2761 = vadd.f32 %v2631, %v2729
      %v2762 = vadd.f32 %v2632, %v2730
      %v2763 = vadd.f32 %v2633, %v2731
      %v2764 = vadd.f32 %v2634, %v2732
      %v2765 = vld [vmem:[#allocation2 + $0x50] sm:$0xff]
      %v2766 = vld [vmem:[#allocation2 + $0x58] sm:$0xff]
      %v2767 = vlaneseq
      %v2768 = vshrl.u32 %v2767, 7
      %v2769 = vsub.s32 5, %v2768
      %v2770 = vrot.slane %v1330, %v2769
      %v2771 = vlaneseq
      %v2772 = vshrl.u32 %v2771, 7
      %v2773 = vsub.s32 5, %v2772
      %v2774 = vrot.slane %v1331, %v2773
      %v2775 = vlaneseq
      %v2776 = vshrl.u32 %v2775, 7
      %v2777 = vsub.s32 5, %v2776
      %v2778 = vrot.slane %v1332, %v2777
      %v2779 = vlaneseq
      %v2780 = vshrl.u32 %v2779, 7
      %v2781 = vsub.s32 5, %v2780
      %v2782 = vrot.slane %v1333, %v2781
      %v2783 = vlaneseq
      %v2784 = vshrl.u32 %v2783, 7
      %v2785 = vsub.s32 5, %v2784
      %v2786 = vrot.slane %v1334, %v2785
      %v2787 = vlaneseq
      %v2788 = vshrl.u32 %v2787, 7
      %v2789 = vsub.s32 5, %v2788
      %v2790 = vrot.slane %v1335, %v2789
      %v2791 = vlaneseq
      %v2792 = vshrl.u32 %v2791, 7
      %v2793 = vsub.s32 5, %v2792
      %v2794 = vrot.slane %v1336, %v2793
      %v2795 = vlaneseq
      %v2796 = vshrl.u32 %v2795, 7
      %v2797 = vsub.s32 5, %v2796
      %v2798 = vrot.slane %v1337, %v2797
      %v2799 = vlaneseq
      %v2800 = vshrl.u32 %v2799, 7
      %v2801 = vsub.s32 5, %v2800
      %v2802 = vrot.slane %v1338, %v2801
      %v2803 = vlaneseq
      %v2804 = vshrl.u32 %v2803, 7
      %v2805 = vsub.s32 5, %v2804
      %v2806 = vrot.slane %v1339, %v2805
      %v2807 = vlaneseq
      %v2808 = vshrl.u32 %v2807, 7
      %v2809 = vsub.s32 5, %v2808
      %v2810 = vrot.slane %v1340, %v2809
      %v2811 = vlaneseq
      %v2812 = vshrl.u32 %v2811, 7
      %v2813 = vsub.s32 5, %v2812
      %v2814 = vrot.slane %v1341, %v2813
      %v2815 = vlaneseq
      %v2816 = vshrl.u32 %v2815, 7
      %v2817 = vsub.s32 5, %v2816
      %v2818 = vrot.slane %v1342, %v2817
      %v2819 = vlaneseq
      %v2820 = vshrl.u32 %v2819, 7
      %v2821 = vsub.s32 5, %v2820
      %v2822 = vrot.slane %v1343, %v2821
      %v2823 = vlaneseq
      %v2824 = vshrl.u32 %v2823, 7
      %v2825 = vsub.s32 5, %v2824
      %v2826 = vrot.slane %v1344, %v2825
      %v2827 = vlaneseq
      %v2828 = vshrl.u32 %v2827, 7
      %v2829 = vsub.s32 5, %v2828
      %v2830 = vrot.slane %v1345, %v2829
      %v2831 = vmul.f32 %v2770, %v2765
      %v2832 = vmul.f32 %v2770, %v2766
      %v2833 = vmul.f32 %v2774, %v2765
      %v2834 = vmul.f32 %v2774, %v2766
      %v2835 = vmul.f32 %v2778, %v2765
      %v2836 = vmul.f32 %v2778, %v2766
      %v2837 = vmul.f32 %v2782, %v2765
      %v2838 = vmul.f32 %v2782, %v2766
      %v2839 = vmul.f32 %v2786, %v2765
      %v2840 = vmul.f32 %v2786, %v2766
      %v2841 = vmul.f32 %v2790, %v2765
      %v2842 = vmul.f32 %v2790, %v2766
      %v2843 = vmul.f32 %v2794, %v2765
      %v2844 = vmul.f32 %v2794, %v2766
      %v2845 = vmul.f32 %v2798, %v2765
      %v2846 = vmul.f32 %v2798, %v2766
      %v2847 = vmul.f32 %v2802, %v2765
      %v2848 = vmul.f32 %v2802, %v2766
      %v2849 = vmul.f32 %v2806, %v2765
      %v2850 = vmul.f32 %v2806, %v2766
      %v2851 = vmul.f32 %v2810, %v2765
      %v2852 = vmul.f32 %v2810, %v2766
      %v2853 = vmul.f32 %v2814, %v2765
      %v2854 = vmul.f32 %v2814, %v2766
      %v2855 = vmul.f32 %v2818, %v2765
      %v2856 = vmul.f32 %v2818, %v2766
      %v2857 = vmul.f32 %v2822, %v2765
      %v2858 = vmul.f32 %v2822, %v2766
      %v2859 = vmul.f32 %v2826, %v2765
      %v2860 = vmul.f32 %v2826, %v2766
      %v2861 = vmul.f32 %v2830, %v2765
      %v2862 = vmul.f32 %v2830, %v2766
      %v2863 = vadd.f32 %v2733, %v2831
      %v2864 = vadd.f32 %v2734, %v2832
      %v2865 = vadd.f32 %v2735, %v2833
      %v2866 = vadd.f32 %v2736, %v2834
      %v2867 = vadd.f32 %v2737, %v2835
      %v2868 = vadd.f32 %v2738, %v2836
      %v2869 = vadd.f32 %v2739, %v2837
      %v2870 = vadd.f32 %v2740, %v2838
      %v2871 = vadd.f32 %v2741, %v2839
      %v2872 = vadd.f32 %v2742, %v2840
      %v2873 = vadd.f32 %v2743, %v2841
      %v2874 = vadd.f32 %v2744, %v2842
      %v2875 = vadd.f32 %v2745, %v2843
      %v2876 = vadd.f32 %v2746, %v2844
      %v2877 = vadd.f32 %v2747, %v2845
      %v2878 = vadd.f32 %v2748, %v2846
      %v2879 = vadd.f32 %v2749, %v2847
      %v2880 = vadd.f32 %v2750, %v2848
      %v2881 = vadd.f32 %v2751, %v2849
      %v2882 = vadd.f32 %v2752, %v2850
      %v2883 = vadd.f32 %v2753, %v2851
      %v2884 = vadd.f32 %v2754, %v2852
      %v2885 = vadd.f32 %v2755, %v2853
      %v2886 = vadd.f32 %v2756, %v2854
      %v2887 = vadd.f32 %v2757, %v2855
      %v2888 = vadd.f32 %v2758, %v2856
      %v2889 = vadd.f32 %v2759, %v2857
      %v2890 = vadd.f32 %v2760, %v2858
      %v2891 = vadd.f32 %v2761, %v2859
      %v2892 = vadd.f32 %v2762, %v2860
      %v2893 = vadd.f32 %v2763, %v2861
      %v2894 = vadd.f32 %v2764, %v2862
      %v2895 = vld [vmem:[#allocation2 + $0x60] sm:$0xff]
      %v2896 = vld [vmem:[#allocation2 + $0x68] sm:$0xff]
      %v2897 = vlaneseq
      %v2898 = vshrl.u32 %v2897, 7
      %v2899 = vsub.s32 6, %v2898
      %v2900 = vrot.slane %v1330, %v2899
      %v2901 = vlaneseq
      %v2902 = vshrl.u32 %v2901, 7
      %v2903 = vsub.s32 6, %v2902
      %v2904 = vrot.slane %v1331, %v2903
      %v2905 = vlaneseq
      %v2906 = vshrl.u32 %v2905, 7
      %v2907 = vsub.s32 6, %v2906
      %v2908 = vrot.slane %v1332, %v2907
      %v2909 = vlaneseq
      %v2910 = vshrl.u32 %v2909, 7
      %v2911 = vsub.s32 6, %v2910
      %v2912 = vrot.slane %v1333, %v2911
      %v2913 = vlaneseq
      %v2914 = vshrl.u32 %v2913, 7
      %v2915 = vsub.s32 6, %v2914
      %v2916 = vrot.slane %v1334, %v2915
      %v2917 = vlaneseq
      %v2918 = vshrl.u32 %v2917, 7
      %v2919 = vsub.s32 6, %v2918
      %v2920 = vrot.slane %v1335, %v2919
      %v2921 = vlaneseq
      %v2922 = vshrl.u32 %v2921, 7
      %v2923 = vsub.s32 6, %v2922
      %v2924 = vrot.slane %v1336, %v2923
      %v2925 = vlaneseq
      %v2926 = vshrl.u32 %v2925, 7
      %v2927 = vsub.s32 6, %v2926
      %v2928 = vrot.slane %v1337, %v2927
      %v2929 = vlaneseq
      %v2930 = vshrl.u32 %v2929, 7
      %v2931 = vsub.s32 6, %v2930
      %v2932 = vrot.slane %v1338, %v2931
      %v2933 = vlaneseq
      %v2934 = vshrl.u32 %v2933, 7
      %v2935 = vsub.s32 6, %v2934
      %v2936 = vrot.slane %v1339, %v2935
      %v2937 = vlaneseq
      %v2938 = vshrl.u32 %v2937, 7
      %v2939 = vsub.s32 6, %v2938
      %v2940 = vrot.slane %v1340, %v2939
      %v2941 = vlaneseq
      %v2942 = vshrl.u32 %v2941, 7
      %v2943 = vsub.s32 6, %v2942
      %v2944 = vrot.slane %v1341, %v2943
      %v2945 = vlaneseq
      %v2946 = vshrl.u32 %v2945, 7
      %v2947 = vsub.s32 6, %v2946
      %v2948 = vrot.slane %v1342, %v2947
      %v2949 = vlaneseq
      %v2950 = vshrl.u32 %v2949, 7
      %v2951 = vsub.s32 6, %v2950
      %v2952 = vrot.slane %v1343, %v2951
      %v2953 = vlaneseq
      %v2954 = vshrl.u32 %v2953, 7
      %v2955 = vsub.s32 6, %v2954
      %v2956 = vrot.slane %v1344, %v2955
      %v2957 = vlaneseq
      %v2958 = vshrl.u32 %v2957, 7
      %v2959 = vsub.s32 6, %v2958
      %v2960 = vrot.slane %v1345, %v2959
      %v2961 = vmul.f32 %v2900, %v2895
      %v2962 = vmul.f32 %v2900, %v2896
      %v2963 = vmul.f32 %v2904, %v2895
      %v2964 = vmul.f32 %v2904, %v2896
      %v2965 = vmul.f32 %v2908, %v2895
      %v2966 = vmul.f32 %v2908, %v2896
      %v2967 = vmul.f32 %v2912, %v2895
      %v2968 = vmul.f32 %v2912, %v2896
      %v2969 = vmul.f32 %v2916, %v2895
      %v2970 = vmul.f32 %v2916, %v2896
      %v2971 = vmul.f32 %v2920, %v2895
      %v2972 = vmul.f32 %v2920, %v2896
      %v2973 = vmul.f32 %v2924, %v2895
      %v2974 = vmul.f32 %v2924, %v2896
      %v2975 = vmul.f32 %v2928, %v2895
      %v2976 = vmul.f32 %v2928, %v2896
      %v2977 = vmul.f32 %v2932, %v2895
      %v2978 = vmul.f32 %v2932, %v2896
      %v2979 = vmul.f32 %v2936, %v2895
      %v2980 = vmul.f32 %v2936, %v2896
      %v2981 = vmul.f32 %v2940, %v2895
      %v2982 = vmul.f32 %v2940, %v2896
      %v2983 = vmul.f32 %v2944, %v2895
      %v2984 = vmul.f32 %v2944, %v2896
      %v2985 = vmul.f32 %v2948, %v2895
      %v2986 = vmul.f32 %v2948, %v2896
      %v2987 = vmul.f32 %v2952, %v2895
      %v2988 = vmul.f32 %v2952, %v2896
      %v2989 = vmul.f32 %v2956, %v2895
      %v2990 = vmul.f32 %v2956, %v2896
      %v2991 = vmul.f32 %v2960, %v2895
      %v2992 = vmul.f32 %v2960, %v2896
      %v2993 = vadd.f32 %v2863, %v2961
      %v2994 = vadd.f32 %v2864, %v2962
      %v2995 = vadd.f32 %v2865, %v2963
      %v2996 = vadd.f32 %v2866, %v2964
      %v2997 = vadd.f32 %v2867, %v2965
      %v2998 = vadd.f32 %v2868, %v2966
      %v2999 = vadd.f32 %v2869, %v2967
      %v3000 = vadd.f32 %v2870, %v2968
      %v3001 = vadd.f32 %v2871, %v2969
      %v3002 = vadd.f32 %v2872, %v2970
      %v3003 = vadd.f32 %v2873, %v2971
      %v3004 = vadd.f32 %v2874, %v2972
      %v3005 = vadd.f32 %v2875, %v2973
      %v3006 = vadd.f32 %v2876, %v2974
      %v3007 = vadd.f32 %v2877, %v2975
      %v3008 = vadd.f32 %v2878, %v2976
      %v3009 = vadd.f32 %v2879, %v2977
      %v3010 = vadd.f32 %v2880, %v2978
      %v3011 = vadd.f32 %v2881, %v2979
      %v3012 = vadd.f32 %v2882, %v2980
      %v3013 = vadd.f32 %v2883, %v2981
      %v3014 = vadd.f32 %v2884, %v2982
      %v3015 = vadd.f32 %v2885, %v2983
      %v3016 = vadd.f32 %v2886, %v2984
      %v3017 = vadd.f32 %v2887, %v2985
      %v3018 = vadd.f32 %v2888, %v2986
      %v3019 = vadd.f32 %v2889, %v2987
      %v3020 = vadd.f32 %v2890, %v2988
      %v3021 = vadd.f32 %v2891, %v2989
      %v3022 = vadd.f32 %v2892, %v2990
      %v3023 = vadd.f32 %v2893, %v2991
      %v3024 = vadd.f32 %v2894, %v2992
      %v3025 = vld [vmem:[#allocation2 + $0x70] sm:$0xff]
      %v3026 = vld [vmem:[#allocation2 + $0x78] sm:$0xff]
      %v3027 = vlaneseq
      %v3028 = vshrl.u32 %v3027, 7
      %v3029 = vsub.s32 7, %v3028
      %v3030 = vrot.slane %v1330, %v3029
      %v3031 = vlaneseq
      %v3032 = vshrl.u32 %v3031, 7
      %v3033 = vsub.s32 7, %v3032
      %v3034 = vrot.slane %v1331, %v3033
      %v3035 = vlaneseq
      %v3036 = vshrl.u32 %v3035, 7
      %v3037 = vsub.s32 7, %v3036
      %v3038 = vrot.slane %v1332, %v3037
      %v3039 = vlaneseq
      %v3040 = vshrl.u32 %v3039, 7
      %v3041 = vsub.s32 7, %v3040
      %v3042 = vrot.slane %v1333, %v3041
      %v3043 = vlaneseq
      %v3044 = vshrl.u32 %v3043, 7
      %v3045 = vsub.s32 7, %v3044
      %v3046 = vrot.slane %v1334, %v3045
      %v3047 = vlaneseq
      %v3048 = vshrl.u32 %v3047, 7
      %v3049 = vsub.s32 7, %v3048
      %v3050 = vrot.slane %v1335, %v3049
      %v3051 = vlaneseq
      %v3052 = vshrl.u32 %v3051, 7
      %v3053 = vsub.s32 7, %v3052
      %v3054 = vrot.slane %v1336, %v3053
      %v3055 = vlaneseq
      %v3056 = vshrl.u32 %v3055, 7
      %v3057 = vsub.s32 7, %v3056
      %v3058 = vrot.slane %v1337, %v3057
      %v3059 = vlaneseq
      %v3060 = vshrl.u32 %v3059, 7
      %v3061 = vsub.s32 7, %v3060
      %v3062 = vrot.slane %v1338, %v3061
      %v3063 = vlaneseq
      %v3064 = vshrl.u32 %v3063, 7
      %v3065 = vsub.s32 7, %v3064
      %v3066 = vrot.slane %v1339, %v3065
      %v3067 = vlaneseq
      %v3068 = vshrl.u32 %v3067, 7
      %v3069 = vsub.s32 7, %v3068
      %v3070 = vrot.slane %v1340, %v3069
      %v3071 = vlaneseq
      %v3072 = vshrl.u32 %v3071, 7
      %v3073 = vsub.s32 7, %v3072
      %v3074 = vrot.slane %v1341, %v3073
      %v3075 = vlaneseq
      %v3076 = vshrl.u32 %v3075, 7
      %v3077 = vsub.s32 7, %v3076
      %v3078 = vrot.slane %v1342, %v3077
      %v3079 = vlaneseq
      %v3080 = vshrl.u32 %v3079, 7
      %v3081 = vsub.s32 7, %v3080
      %v3082 = vrot.slane %v1343, %v3081
      %v3083 = vlaneseq
      %v3084 = vshrl.u32 %v3083, 7
      %v3085 = vsub.s32 7, %v3084
      %v3086 = vrot.slane %v1344, %v3085
      %v3087 = vlaneseq
      %v3088 = vshrl.u32 %v3087, 7
      %v3089 = vsub.s32 7, %v3088
      %v3090 = vrot.slane %v1345, %v3089
      %v3091 = vmul.f32 %v3030, %v3025
      %v3092 = vmul.f32 %v3030, %v3026
      %v3093 = vmul.f32 %v3034, %v3025
      %v3094 = vmul.f32 %v3034, %v3026
      %v3095 = vmul.f32 %v3038, %v3025
      %v3096 = vmul.f32 %v3038, %v3026
      %v3097 = vmul.f32 %v3042, %v3025
      %v3098 = vmul.f32 %v3042, %v3026
      %v3099 = vmul.f32 %v3046, %v3025
      %v3100 = vmul.f32 %v3046, %v3026
      %v3101 = vmul.f32 %v3050, %v3025
      %v3102 = vmul.f32 %v3050, %v3026
      %v3103 = vmul.f32 %v3054, %v3025
      %v3104 = vmul.f32 %v3054, %v3026
      %v3105 = vmul.f32 %v3058, %v3025
      %v3106 = vmul.f32 %v3058, %v3026
      %v3107 = vmul.f32 %v3062, %v3025
      %v3108 = vmul.f32 %v3062, %v3026
      %v3109 = vmul.f32 %v3066, %v3025
      %v3110 = vmul.f32 %v3066, %v3026
      %v3111 = vmul.f32 %v3070, %v3025
      %v3112 = vmul.f32 %v3070, %v3026
      %v3113 = vmul.f32 %v3074, %v3025
      %v3114 = vmul.f32 %v3074, %v3026
      %v3115 = vmul.f32 %v3078, %v3025
      %v3116 = vmul.f32 %v3078, %v3026
      %v3117 = vmul.f32 %v3082, %v3025
      %v3118 = vmul.f32 %v3082, %v3026
      %v3119 = vmul.f32 %v3086, %v3025
      %v3120 = vmul.f32 %v3086, %v3026
      %v3121 = vmul.f32 %v3090, %v3025
      %v3122 = vmul.f32 %v3090, %v3026
      %v3123 = vadd.f32 %v2993, %v3091
      %v3124 = vadd.f32 %v2994, %v3092
      %v3125 = vadd.f32 %v2995, %v3093
      %v3126 = vadd.f32 %v2996, %v3094
      %v3127 = vadd.f32 %v2997, %v3095
      %v3128 = vadd.f32 %v2998, %v3096
      %v3129 = vadd.f32 %v2999, %v3097
      %v3130 = vadd.f32 %v3000, %v3098
      %v3131 = vadd.f32 %v3001, %v3099
      %v3132 = vadd.f32 %v3002, %v3100
      %v3133 = vadd.f32 %v3003, %v3101
      %v3134 = vadd.f32 %v3004, %v3102
      %v3135 = vadd.f32 %v3005, %v3103
      %v3136 = vadd.f32 %v3006, %v3104
      %v3137 = vadd.f32 %v3007, %v3105
      %v3138 = vadd.f32 %v3008, %v3106
      %v3139 = vadd.f32 %v3009, %v3107
      %v3140 = vadd.f32 %v3010, %v3108
      %v3141 = vadd.f32 %v3011, %v3109
      %v3142 = vadd.f32 %v3012, %v3110
      %v3143 = vadd.f32 %v3013, %v3111
      %v3144 = vadd.f32 %v3014, %v3112
      %v3145 = vadd.f32 %v3015, %v3113
      %v3146 = vadd.f32 %v3016, %v3114
      %v3147 = vadd.f32 %v3017, %v3115
      %v3148 = vadd.f32 %v3018, %v3116
      %v3149 = vadd.f32 %v3019, %v3117
      %v3150 = vadd.f32 %v3020, %v3118
      %v3151 = vadd.f32 %v3021, %v3119
      %v3152 = vadd.f32 %v3022, %v3120
      %v3153 = vadd.f32 %v3023, %v3121
      %v3154 = vadd.f32 %v3024, %v3122
      %v3155 = vunpack.c.l.bf16 %v788
      %v3156 = vunpack.c.l.bf16 %v790
      %v3157 = vunpack.c.l.bf16 %v792
      %v3158 = vunpack.c.l.bf16 %v794
      %v3159 = vunpack.c.l.bf16 %v796
      %v3160 = vunpack.c.l.bf16 %v798
      %v3161 = vunpack.c.l.bf16 %v800
      %v3162 = vunpack.c.l.bf16 %v802
      %v3163 = vunpack.c.l.bf16 %v804
      %v3164 = vunpack.c.l.bf16 %v806
      %v3165 = vunpack.c.l.bf16 %v808
      %v3166 = vunpack.c.l.bf16 %v810
      %v3167 = vunpack.c.l.bf16 %v812
      %v3168 = vunpack.c.l.bf16 %v814
      %v3169 = vunpack.c.l.bf16 %v816
      %v3170 = vunpack.c.l.bf16 %v818
      %v3171 = vld [vmem:[#allocation2 + $0x80] sm:$0xff]
      %v3172 = vld [vmem:[#allocation2 + $0x88] sm:$0xff]
      %v3173 = vlaneseq
      %v3174 = vshrl.u32 %v3173, 7
      %v3175 = vsub.s32 0, %v3174
      %v3176 = vrot.slane %v3155, %v3175
      %v3177 = vlaneseq
      %v3178 = vshrl.u32 %v3177, 7
      %v3179 = vsub.s32 0, %v3178
      %v3180 = vrot.slane %v3156, %v3179
      %v3181 = vlaneseq
      %v3182 = vshrl.u32 %v3181, 7
      %v3183 = vsub.s32 0, %v3182
      %v3184 = vrot.slane %v3157, %v3183
      %v3185 = vlaneseq
      %v3186 = vshrl.u32 %v3185, 7
      %v3187 = vsub.s32 0, %v3186
      %v3188 = vrot.slane %v3158, %v3187
      %v3189 = vlaneseq
      %v3190 = vshrl.u32 %v3189, 7
      %v3191 = vsub.s32 0, %v3190
      %v3192 = vrot.slane %v3159, %v3191
      %v3193 = vlaneseq
      %v3194 = vshrl.u32 %v3193, 7
      %v3195 = vsub.s32 0, %v3194
      %v3196 = vrot.slane %v3160, %v3195
      %v3197 = vlaneseq
      %v3198 = vshrl.u32 %v3197, 7
      %v3199 = vsub.s32 0, %v3198
      %v3200 = vrot.slane %v3161, %v3199
      %v3201 = vlaneseq
      %v3202 = vshrl.u32 %v3201, 7
      %v3203 = vsub.s32 0, %v3202
      %v3204 = vrot.slane %v3162, %v3203
      %v3205 = vlaneseq
      %v3206 = vshrl.u32 %v3205, 7
      %v3207 = vsub.s32 0, %v3206
      %v3208 = vrot.slane %v3163, %v3207
      %v3209 = vlaneseq
      %v3210 = vshrl.u32 %v3209, 7
      %v3211 = vsub.s32 0, %v3210
      %v3212 = vrot.slane %v3164, %v3211
      %v3213 = vlaneseq
      %v3214 = vshrl.u32 %v3213, 7
      %v3215 = vsub.s32 0, %v3214
      %v3216 = vrot.slane %v3165, %v3215
      %v3217 = vlaneseq
      %v3218 = vshrl.u32 %v3217, 7
      %v3219 = vsub.s32 0, %v3218
      %v3220 = vrot.slane %v3166, %v3219
      %v3221 = vlaneseq
      %v3222 = vshrl.u32 %v3221, 7
      %v3223 = vsub.s32 0, %v3222
      %v3224 = vrot.slane %v3167, %v3223
      %v3225 = vlaneseq
      %v3226 = vshrl.u32 %v3225, 7
      %v3227 = vsub.s32 0, %v3226
      %v3228 = vrot.slane %v3168, %v3227
      %v3229 = vlaneseq
      %v3230 = vshrl.u32 %v3229, 7
      %v3231 = vsub.s32 0, %v3230
      %v3232 = vrot.slane %v3169, %v3231
      %v3233 = vlaneseq
      %v3234 = vshrl.u32 %v3233, 7
      %v3235 = vsub.s32 0, %v3234
      %v3236 = vrot.slane %v3170, %v3235
      %v3237 = vmul.f32 %v3176, %v3171
      %v3238 = vmul.f32 %v3176, %v3172
      %v3239 = vmul.f32 %v3180, %v3171
      %v3240 = vmul.f32 %v3180, %v3172
      %v3241 = vmul.f32 %v3184, %v3171
      %v3242 = vmul.f32 %v3184, %v3172
      %v3243 = vmul.f32 %v3188, %v3171
      %v3244 = vmul.f32 %v3188, %v3172
      %v3245 = vmul.f32 %v3192, %v3171
      %v3246 = vmul.f32 %v3192, %v3172
      %v3247 = vmul.f32 %v3196, %v3171
      %v3248 = vmul.f32 %v3196, %v3172
      %v3249 = vmul.f32 %v3200, %v3171
      %v3250 = vmul.f32 %v3200, %v3172
      %v3251 = vmul.f32 %v3204, %v3171
      %v3252 = vmul.f32 %v3204, %v3172
      %v3253 = vmul.f32 %v3208, %v3171
      %v3254 = vmul.f32 %v3208, %v3172
      %v3255 = vmul.f32 %v3212, %v3171
      %v3256 = vmul.f32 %v3212, %v3172
      %v3257 = vmul.f32 %v3216, %v3171
      %v3258 = vmul.f32 %v3216, %v3172
      %v3259 = vmul.f32 %v3220, %v3171
      %v3260 = vmul.f32 %v3220, %v3172
      %v3261 = vmul.f32 %v3224, %v3171
      %v3262 = vmul.f32 %v3224, %v3172
      %v3263 = vmul.f32 %v3228, %v3171
      %v3264 = vmul.f32 %v3228, %v3172
      %v3265 = vmul.f32 %v3232, %v3171
      %v3266 = vmul.f32 %v3232, %v3172
      %v3267 = vmul.f32 %v3236, %v3171
      %v3268 = vmul.f32 %v3236, %v3172
      %v3269 = vadd.f32 %v3123, %v3237
      %v3270 = vadd.f32 %v3124, %v3238
      %v3271 = vadd.f32 %v3125, %v3239
      %v3272 = vadd.f32 %v3126, %v3240
      %v3273 = vadd.f32 %v3127, %v3241
      %v3274 = vadd.f32 %v3128, %v3242
      %v3275 = vadd.f32 %v3129, %v3243
      %v3276 = vadd.f32 %v3130, %v3244
      %v3277 = vadd.f32 %v3131, %v3245
      %v3278 = vadd.f32 %v3132, %v3246
      %v3279 = vadd.f32 %v3133, %v3247
      %v3280 = vadd.f32 %v3134, %v3248
      %v3281 = vadd.f32 %v3135, %v3249
      %v3282 = vadd.f32 %v3136, %v3250
      %v3283 = vadd.f32 %v3137, %v3251
      %v3284 = vadd.f32 %v3138, %v3252
      %v3285 = vadd.f32 %v3139, %v3253
      %v3286 = vadd.f32 %v3140, %v3254
      %v3287 = vadd.f32 %v3141, %v3255
      %v3288 = vadd.f32 %v3142, %v3256
      %v3289 = vadd.f32 %v3143, %v3257
      %v3290 = vadd.f32 %v3144, %v3258
      %v3291 = vadd.f32 %v3145, %v3259
      %v3292 = vadd.f32 %v3146, %v3260
      %v3293 = vadd.f32 %v3147, %v3261
      %v3294 = vadd.f32 %v3148, %v3262
      %v3295 = vadd.f32 %v3149, %v3263
      %v3296 = vadd.f32 %v3150, %v3264
      %v3297 = vadd.f32 %v3151, %v3265
      %v3298 = vadd.f32 %v3152, %v3266
      %v3299 = vadd.f32 %v3153, %v3267
      %v3300 = vadd.f32 %v3154, %v3268
      %v3301 = vld [vmem:[#allocation2 + $0x90] sm:$0xff]
      %v3302 = vld [vmem:[#allocation2 + $0x98] sm:$0xff]
      %v3303 = vlaneseq
      %v3304 = vshrl.u32 %v3303, 7
      %v3305 = vsub.s32 1, %v3304
      %v3306 = vrot.slane %v3155, %v3305
      %v3307 = vlaneseq
      %v3308 = vshrl.u32 %v3307, 7
      %v3309 = vsub.s32 1, %v3308
      %v3310 = vrot.slane %v3156, %v3309
      %v3311 = vlaneseq
      %v3312 = vshrl.u32 %v3311, 7
      %v3313 = vsub.s32 1, %v3312
      %v3314 = vrot.slane %v3157, %v3313
      %v3315 = vlaneseq
      %v3316 = vshrl.u32 %v3315, 7
      %v3317 = vsub.s32 1, %v3316
      %v3318 = vrot.slane %v3158, %v3317
      %v3319 = vlaneseq
      %v3320 = vshrl.u32 %v3319, 7
      %v3321 = vsub.s32 1, %v3320
      %v3322 = vrot.slane %v3159, %v3321
      %v3323 = vlaneseq
      %v3324 = vshrl.u32 %v3323, 7
      %v3325 = vsub.s32 1, %v3324
      %v3326 = vrot.slane %v3160, %v3325
      %v3327 = vlaneseq
      %v3328 = vshrl.u32 %v3327, 7
      %v3329 = vsub.s32 1, %v3328
      %v3330 = vrot.slane %v3161, %v3329
      %v3331 = vlaneseq
      %v3332 = vshrl.u32 %v3331, 7
      %v3333 = vsub.s32 1, %v3332
      %v3334 = vrot.slane %v3162, %v3333
      %v3335 = vlaneseq
      %v3336 = vshrl.u32 %v3335, 7
      %v3337 = vsub.s32 1, %v3336
      %v3338 = vrot.slane %v3163, %v3337
      %v3339 = vlaneseq
      %v3340 = vshrl.u32 %v3339, 7
      %v3341 = vsub.s32 1, %v3340
      %v3342 = vrot.slane %v3164, %v3341
      %v3343 = vlaneseq
      %v3344 = vshrl.u32 %v3343, 7
      %v3345 = vsub.s32 1, %v3344
      %v3346 = vrot.slane %v3165, %v3345
      %v3347 = vlaneseq
      %v3348 = vshrl.u32 %v3347, 7
      %v3349 = vsub.s32 1, %v3348
      %v3350 = vrot.slane %v3166, %v3349
      %v3351 = vlaneseq
      %v3352 = vshrl.u32 %v3351, 7
      %v3353 = vsub.s32 1, %v3352
      %v3354 = vrot.slane %v3167, %v3353
      %v3355 = vlaneseq
      %v3356 = vshrl.u32 %v3355, 7
      %v3357 = vsub.s32 1, %v3356
      %v3358 = vrot.slane %v3168, %v3357
      %v3359 = vlaneseq
      %v3360 = vshrl.u32 %v3359, 7
      %v3361 = vsub.s32 1, %v3360
      %v3362 = vrot.slane %v3169, %v3361
      %v3363 = vlaneseq
      %v3364 = vshrl.u32 %v3363, 7
      %v3365 = vsub.s32 1, %v3364
      %v3366 = vrot.slane %v3170, %v3365
      %v3367 = vmul.f32 %v3306, %v3301
      %v3368 = vmul.f32 %v3306, %v3302
      %v3369 = vmul.f32 %v3310, %v3301
      %v3370 = vmul.f32 %v3310, %v3302
      %v3371 = vmul.f32 %v3314, %v3301
      %v3372 = vmul.f32 %v3314, %v3302
      %v3373 = vmul.f32 %v3318, %v3301
      %v3374 = vmul.f32 %v3318, %v3302
      %v3375 = vmul.f32 %v3322, %v3301
      %v3376 = vmul.f32 %v3322, %v3302
      %v3377 = vmul.f32 %v3326, %v3301
      %v3378 = vmul.f32 %v3326, %v3302
      %v3379 = vmul.f32 %v3330, %v3301
      %v3380 = vmul.f32 %v3330, %v3302
      %v3381 = vmul.f32 %v3334, %v3301
      %v3382 = vmul.f32 %v3334, %v3302
      %v3383 = vmul.f32 %v3338, %v3301
      %v3384 = vmul.f32 %v3338, %v3302
      %v3385 = vmul.f32 %v3342, %v3301
      %v3386 = vmul.f32 %v3342, %v3302
      %v3387 = vmul.f32 %v3346, %v3301
      %v3388 = vmul.f32 %v3346, %v3302
      %v3389 = vmul.f32 %v3350, %v3301
      %v3390 = vmul.f32 %v3350, %v3302
      %v3391 = vmul.f32 %v3354, %v3301
      %v3392 = vmul.f32 %v3354, %v3302
      %v3393 = vmul.f32 %v3358, %v3301
      %v3394 = vmul.f32 %v3358, %v3302
      %v3395 = vmul.f32 %v3362, %v3301
      %v3396 = vmul.f32 %v3362, %v3302
      %v3397 = vmul.f32 %v3366, %v3301
      %v3398 = vmul.f32 %v3366, %v3302
      %v3399 = vadd.f32 %v3269, %v3367
      %v3400 = vadd.f32 %v3270, %v3368
      %v3401 = vadd.f32 %v3271, %v3369
      %v3402 = vadd.f32 %v3272, %v3370
      %v3403 = vadd.f32 %v3273, %v3371
      %v3404 = vadd.f32 %v3274, %v3372
      %v3405 = vadd.f32 %v3275, %v3373
      %v3406 = vadd.f32 %v3276, %v3374
      %v3407 = vadd.f32 %v3277, %v3375
      %v3408 = vadd.f32 %v3278, %v3376
      %v3409 = vadd.f32 %v3279, %v3377
      %v3410 = vadd.f32 %v3280, %v3378
      %v3411 = vadd.f32 %v3281, %v3379
      %v3412 = vadd.f32 %v3282, %v3380
      %v3413 = vadd.f32 %v3283, %v3381
      %v3414 = vadd.f32 %v3284, %v3382
      %v3415 = vadd.f32 %v3285, %v3383
      %v3416 = vadd.f32 %v3286, %v3384
      %v3417 = vadd.f32 %v3287, %v3385
      %v3418 = vadd.f32 %v3288, %v3386
      %v3419 = vadd.f32 %v3289, %v3387
      %v3420 = vadd.f32 %v3290, %v3388
      %v3421 = vadd.f32 %v3291, %v3389
      %v3422 = vadd.f32 %v3292, %v3390
      %v3423 = vadd.f32 %v3293, %v3391
      %v3424 = vadd.f32 %v3294, %v3392
      %v3425 = vadd.f32 %v3295, %v3393
      %v3426 = vadd.f32 %v3296, %v3394
      %v3427 = vadd.f32 %v3297, %v3395
      %v3428 = vadd.f32 %v3298, %v3396
      %v3429 = vadd.f32 %v3299, %v3397
      %v3430 = vadd.f32 %v3300, %v3398
      %v3431 = vld [vmem:[#allocation2 + $0xa0] sm:$0xff]
      %v3432 = vld [vmem:[#allocation2 + $0xa8] sm:$0xff]
      %v3433 = vlaneseq
      %v3434 = vshrl.u32 %v3433, 7
      %v3435 = vsub.s32 2, %v3434
      %v3436 = vrot.slane %v3155, %v3435
      %v3437 = vlaneseq
      %v3438 = vshrl.u32 %v3437, 7
      %v3439 = vsub.s32 2, %v3438
      %v3440 = vrot.slane %v3156, %v3439
      %v3441 = vlaneseq
      %v3442 = vshrl.u32 %v3441, 7
      %v3443 = vsub.s32 2, %v3442
      %v3444 = vrot.slane %v3157, %v3443
      %v3445 = vlaneseq
      %v3446 = vshrl.u32 %v3445, 7
      %v3447 = vsub.s32 2, %v3446
      %v3448 = vrot.slane %v3158, %v3447
      %v3449 = vlaneseq
      %v3450 = vshrl.u32 %v3449, 7
      %v3451 = vsub.s32 2, %v3450
      %v3452 = vrot.slane %v3159, %v3451
      %v3453 = vlaneseq
      %v3454 = vshrl.u32 %v3453, 7
      %v3455 = vsub.s32 2, %v3454
      %v3456 = vrot.slane %v3160, %v3455
      %v3457 = vlaneseq
      %v3458 = vshrl.u32 %v3457, 7
      %v3459 = vsub.s32 2, %v3458
      %v3460 = vrot.slane %v3161, %v3459
      %v3461 = vlaneseq
      %v3462 = vshrl.u32 %v3461, 7
      %v3463 = vsub.s32 2, %v3462
      %v3464 = vrot.slane %v3162, %v3463
      %v3465 = vlaneseq
      %v3466 = vshrl.u32 %v3465, 7
      %v3467 = vsub.s32 2, %v3466
      %v3468 = vrot.slane %v3163, %v3467
      %v3469 = vlaneseq
      %v3470 = vshrl.u32 %v3469, 7
      %v3471 = vsub.s32 2, %v3470
      %v3472 = vrot.slane %v3164, %v3471
      %v3473 = vlaneseq
      %v3474 = vshrl.u32 %v3473, 7
      %v3475 = vsub.s32 2, %v3474
      %v3476 = vrot.slane %v3165, %v3475
      %v3477 = vlaneseq
      %v3478 = vshrl.u32 %v3477, 7
      %v3479 = vsub.s32 2, %v3478
      %v3480 = vrot.slane %v3166, %v3479
      %v3481 = vlaneseq
      %v3482 = vshrl.u32 %v3481, 7
      %v3483 = vsub.s32 2, %v3482
      %v3484 = vrot.slane %v3167, %v3483
      %v3485 = vlaneseq
      %v3486 = vshrl.u32 %v3485, 7
      %v3487 = vsub.s32 2, %v3486
      %v3488 = vrot.slane %v3168, %v3487
      %v3489 = vlaneseq
      %v3490 = vshrl.u32 %v3489, 7
      %v3491 = vsub.s32 2, %v3490
      %v3492 = vrot.slane %v3169, %v3491
      %v3493 = vlaneseq
      %v3494 = vshrl.u32 %v3493, 7
      %v3495 = vsub.s32 2, %v3494
      %v3496 = vrot.slane %v3170, %v3495
      %v3497 = vmul.f32 %v3436, %v3431
      %v3498 = vmul.f32 %v3436, %v3432
      %v3499 = vmul.f32 %v3440, %v3431
      %v3500 = vmul.f32 %v3440, %v3432
      %v3501 = vmul.f32 %v3444, %v3431
      %v3502 = vmul.f32 %v3444, %v3432
      %v3503 = vmul.f32 %v3448, %v3431
      %v3504 = vmul.f32 %v3448, %v3432
      %v3505 = vmul.f32 %v3452, %v3431
      %v3506 = vmul.f32 %v3452, %v3432
      %v3507 = vmul.f32 %v3456, %v3431
      %v3508 = vmul.f32 %v3456, %v3432
      %v3509 = vmul.f32 %v3460, %v3431
      %v3510 = vmul.f32 %v3460, %v3432
      %v3511 = vmul.f32 %v3464, %v3431
      %v3512 = vmul.f32 %v3464, %v3432
      %v3513 = vmul.f32 %v3468, %v3431
      %v3514 = vmul.f32 %v3468, %v3432
      %v3515 = vmul.f32 %v3472, %v3431
      %v3516 = vmul.f32 %v3472, %v3432
      %v3517 = vmul.f32 %v3476, %v3431
      %v3518 = vmul.f32 %v3476, %v3432
      %v3519 = vmul.f32 %v3480, %v3431
      %v3520 = vmul.f32 %v3480, %v3432
      %v3521 = vmul.f32 %v3484, %v3431
      %v3522 = vmul.f32 %v3484, %v3432
      %v3523 = vmul.f32 %v3488, %v3431
      %v3524 = vmul.f32 %v3488, %v3432
      %v3525 = vmul.f32 %v3492, %v3431
      %v3526 = vmul.f32 %v3492, %v3432
      %v3527 = vmul.f32 %v3496, %v3431
      %v3528 = vmul.f32 %v3496, %v3432
      %v3529 = vadd.f32 %v3399, %v3497
      %v3530 = vadd.f32 %v3400, %v3498
      %v3531 = vadd.f32 %v3401, %v3499
      %v3532 = vadd.f32 %v3402, %v3500
      %v3533 = vadd.f32 %v3403, %v3501
      %v3534 = vadd.f32 %v3404, %v3502
      %v3535 = vadd.f32 %v3405, %v3503
      %v3536 = vadd.f32 %v3406, %v3504
      %v3537 = vadd.f32 %v3407, %v3505
      %v3538 = vadd.f32 %v3408, %v3506
      %v3539 = vadd.f32 %v3409, %v3507
      %v3540 = vadd.f32 %v3410, %v3508
      %v3541 = vadd.f32 %v3411, %v3509
      %v3542 = vadd.f32 %v3412, %v3510
      %v3543 = vadd.f32 %v3413, %v3511
      %v3544 = vadd.f32 %v3414, %v3512
      %v3545 = vadd.f32 %v3415, %v3513
      %v3546 = vadd.f32 %v3416, %v3514
      %v3547 = vadd.f32 %v3417, %v3515
      %v3548 = vadd.f32 %v3418, %v3516
      %v3549 = vadd.f32 %v3419, %v3517
      %v3550 = vadd.f32 %v3420, %v3518
      %v3551 = vadd.f32 %v3421, %v3519
      %v3552 = vadd.f32 %v3422, %v3520
      %v3553 = vadd.f32 %v3423, %v3521
      %v3554 = vadd.f32 %v3424, %v3522
      %v3555 = vadd.f32 %v3425, %v3523
      %v3556 = vadd.f32 %v3426, %v3524
      %v3557 = vadd.f32 %v3427, %v3525
      %v3558 = vadd.f32 %v3428, %v3526
      %v3559 = vadd.f32 %v3429, %v3527
      %v3560 = vadd.f32 %v3430, %v3528
      %v3561 = vld [vmem:[#allocation2 + $0xb0] sm:$0xff]
      %v3562 = vld [vmem:[#allocation2 + $0xb8] sm:$0xff]
      %v3563 = vlaneseq
      %v3564 = vshrl.u32 %v3563, 7
      %v3565 = vsub.s32 3, %v3564
      %v3566 = vrot.slane %v3155, %v3565
      %v3567 = vlaneseq
      %v3568 = vshrl.u32 %v3567, 7
      %v3569 = vsub.s32 3, %v3568
      %v3570 = vrot.slane %v3156, %v3569
      %v3571 = vlaneseq
      %v3572 = vshrl.u32 %v3571, 7
      %v3573 = vsub.s32 3, %v3572
      %v3574 = vrot.slane %v3157, %v3573
      %v3575 = vlaneseq
      %v3576 = vshrl.u32 %v3575, 7
      %v3577 = vsub.s32 3, %v3576
      %v3578 = vrot.slane %v3158, %v3577
      %v3579 = vlaneseq
      %v3580 = vshrl.u32 %v3579, 7
      %v3581 = vsub.s32 3, %v3580
      %v3582 = vrot.slane %v3159, %v3581
      %v3583 = vlaneseq
      %v3584 = vshrl.u32 %v3583, 7
      %v3585 = vsub.s32 3, %v3584
      %v3586 = vrot.slane %v3160, %v3585
      %v3587 = vlaneseq
      %v3588 = vshrl.u32 %v3587, 7
      %v3589 = vsub.s32 3, %v3588
      %v3590 = vrot.slane %v3161, %v3589
      %v3591 = vlaneseq
      %v3592 = vshrl.u32 %v3591, 7
      %v3593 = vsub.s32 3, %v3592
      %v3594 = vrot.slane %v3162, %v3593
      %v3595 = vlaneseq
      %v3596 = vshrl.u32 %v3595, 7
      %v3597 = vsub.s32 3, %v3596
      %v3598 = vrot.slane %v3163, %v3597
      %v3599 = vlaneseq
      %v3600 = vshrl.u32 %v3599, 7
      %v3601 = vsub.s32 3, %v3600
      %v3602 = vrot.slane %v3164, %v3601
      %v3603 = vlaneseq
      %v3604 = vshrl.u32 %v3603, 7
      %v3605 = vsub.s32 3, %v3604
      %v3606 = vrot.slane %v3165, %v3605
      %v3607 = vlaneseq
      %v3608 = vshrl.u32 %v3607, 7
      %v3609 = vsub.s32 3, %v3608
      %v3610 = vrot.slane %v3166, %v3609
      %v3611 = vlaneseq
      %v3612 = vshrl.u32 %v3611, 7
      %v3613 = vsub.s32 3, %v3612
      %v3614 = vrot.slane %v3167, %v3613
      %v3615 = vlaneseq
      %v3616 = vshrl.u32 %v3615, 7
      %v3617 = vsub.s32 3, %v3616
      %v3618 = vrot.slane %v3168, %v3617
      %v3619 = vlaneseq
      %v3620 = vshrl.u32 %v3619, 7
      %v3621 = vsub.s32 3, %v3620
      %v3622 = vrot.slane %v3169, %v3621
      %v3623 = vlaneseq
      %v3624 = vshrl.u32 %v3623, 7
      %v3625 = vsub.s32 3, %v3624
      %v3626 = vrot.slane %v3170, %v3625
      %v3627 = vmul.f32 %v3566, %v3561
      %v3628 = vmul.f32 %v3566, %v3562
      %v3629 = vmul.f32 %v3570, %v3561
      %v3630 = vmul.f32 %v3570, %v3562
      %v3631 = vmul.f32 %v3574, %v3561
      %v3632 = vmul.f32 %v3574, %v3562
      %v3633 = vmul.f32 %v3578, %v3561
      %v3634 = vmul.f32 %v3578, %v3562
      %v3635 = vmul.f32 %v3582, %v3561
      %v3636 = vmul.f32 %v3582, %v3562
      %v3637 = vmul.f32 %v3586, %v3561
      %v3638 = vmul.f32 %v3586, %v3562
      %v3639 = vmul.f32 %v3590, %v3561
      %v3640 = vmul.f32 %v3590, %v3562
      %v3641 = vmul.f32 %v3594, %v3561
      %v3642 = vmul.f32 %v3594, %v3562
      %v3643 = vmul.f32 %v3598, %v3561
      %v3644 = vmul.f32 %v3598, %v3562
      %v3645 = vmul.f32 %v3602, %v3561
      %v3646 = vmul.f32 %v3602, %v3562
      %v3647 = vmul.f32 %v3606, %v3561
      %v3648 = vmul.f32 %v3606, %v3562
      %v3649 = vmul.f32 %v3610, %v3561
      %v3650 = vmul.f32 %v3610, %v3562
      %v3651 = vmul.f32 %v3614, %v3561
      %v3652 = vmul.f32 %v3614, %v3562
      %v3653 = vmul.f32 %v3618, %v3561
      %v3654 = vmul.f32 %v3618, %v3562
      %v3655 = vmul.f32 %v3622, %v3561
      %v3656 = vmul.f32 %v3622, %v3562
      %v3657 = vmul.f32 %v3626, %v3561
      %v3658 = vmul.f32 %v3626, %v3562
      %v3659 = vadd.f32 %v3529, %v3627
      %v3660 = vadd.f32 %v3530, %v3628
      %v3661 = vadd.f32 %v3531, %v3629
      %v3662 = vadd.f32 %v3532, %v3630
      %v3663 = vadd.f32 %v3533, %v3631
      %v3664 = vadd.f32 %v3534, %v3632
      %v3665 = vadd.f32 %v3535, %v3633
      %v3666 = vadd.f32 %v3536, %v3634
      %v3667 = vadd.f32 %v3537, %v3635
      %v3668 = vadd.f32 %v3538, %v3636
      %v3669 = vadd.f32 %v3539, %v3637
      %v3670 = vadd.f32 %v3540, %v3638
      %v3671 = vadd.f32 %v3541, %v3639
      %v3672 = vadd.f32 %v3542, %v3640
      %v3673 = vadd.f32 %v3543, %v3641
      %v3674 = vadd.f32 %v3544, %v3642
      %v3675 = vadd.f32 %v3545, %v3643
      %v3676 = vadd.f32 %v3546, %v3644
      %v3677 = vadd.f32 %v3547, %v3645
      %v3678 = vadd.f32 %v3548, %v3646
      %v3679 = vadd.f32 %v3549, %v3647
      %v3680 = vadd.f32 %v3550, %v3648
      %v3681 = vadd.f32 %v3551, %v3649
      %v3682 = vadd.f32 %v3552, %v3650
      %v3683 = vadd.f32 %v3553, %v3651
      %v3684 = vadd.f32 %v3554, %v3652
      %v3685 = vadd.f32 %v3555, %v3653
      %v3686 = vadd.f32 %v3556, %v3654
      %v3687 = vadd.f32 %v3557, %v3655
      %v3688 = vadd.f32 %v3558, %v3656
      %v3689 = vadd.f32 %v3559, %v3657
      %v3690 = vadd.f32 %v3560, %v3658
      %v3691 = vld [vmem:[#allocation2 + $0xc0] sm:$0xff]
      %v3692 = vld [vmem:[#allocation2 + $0xc8] sm:$0xff]
      %v3693 = vlaneseq
      %v3694 = vshrl.u32 %v3693, 7
      %v3695 = vsub.s32 4, %v3694
      %v3696 = vrot.slane %v3155, %v3695
      %v3697 = vlaneseq
      %v3698 = vshrl.u32 %v3697, 7
      %v3699 = vsub.s32 4, %v3698
      %v3700 = vrot.slane %v3156, %v3699
      %v3701 = vlaneseq
      %v3702 = vshrl.u32 %v3701, 7
      %v3703 = vsub.s32 4, %v3702
      %v3704 = vrot.slane %v3157, %v3703
      %v3705 = vlaneseq
      %v3706 = vshrl.u32 %v3705, 7
      %v3707 = vsub.s32 4, %v3706
      %v3708 = vrot.slane %v3158, %v3707
      %v3709 = vlaneseq
      %v3710 = vshrl.u32 %v3709, 7
      %v3711 = vsub.s32 4, %v3710
      %v3712 = vrot.slane %v3159, %v3711
      %v3713 = vlaneseq
      %v3714 = vshrl.u32 %v3713, 7
      %v3715 = vsub.s32 4, %v3714
      %v3716 = vrot.slane %v3160, %v3715
      %v3717 = vlaneseq
      %v3718 = vshrl.u32 %v3717, 7
      %v3719 = vsub.s32 4, %v3718
      %v3720 = vrot.slane %v3161, %v3719
      %v3721 = vlaneseq
      %v3722 = vshrl.u32 %v3721, 7
      %v3723 = vsub.s32 4, %v3722
      %v3724 = vrot.slane %v3162, %v3723
      %v3725 = vlaneseq
      %v3726 = vshrl.u32 %v3725, 7
      %v3727 = vsub.s32 4, %v3726
      %v3728 = vrot.slane %v3163, %v3727
      %v3729 = vlaneseq
      %v3730 = vshrl.u32 %v3729, 7
      %v3731 = vsub.s32 4, %v3730
      %v3732 = vrot.slane %v3164, %v3731
      %v3733 = vlaneseq
      %v3734 = vshrl.u32 %v3733, 7
      %v3735 = vsub.s32 4, %v3734
      %v3736 = vrot.slane %v3165, %v3735
      %v3737 = vlaneseq
      %v3738 = vshrl.u32 %v3737, 7
      %v3739 = vsub.s32 4, %v3738
      %v3740 = vrot.slane %v3166, %v3739
      %v3741 = vlaneseq
      %v3742 = vshrl.u32 %v3741, 7
      %v3743 = vsub.s32 4, %v3742
      %v3744 = vrot.slane %v3167, %v3743
      %v3745 = vlaneseq
      %v3746 = vshrl.u32 %v3745, 7
      %v3747 = vsub.s32 4, %v3746
      %v3748 = vrot.slane %v3168, %v3747
      %v3749 = vlaneseq
      %v3750 = vshrl.u32 %v3749, 7
      %v3751 = vsub.s32 4, %v3750
      %v3752 = vrot.slane %v3169, %v3751
      %v3753 = vlaneseq
      %v3754 = vshrl.u32 %v3753, 7
      %v3755 = vsub.s32 4, %v3754
      %v3756 = vrot.slane %v3170, %v3755
      %v3757 = vmul.f32 %v3696, %v3691
      %v3758 = vmul.f32 %v3696, %v3692
      %v3759 = vmul.f32 %v3700, %v3691
      %v3760 = vmul.f32 %v3700, %v3692
      %v3761 = vmul.f32 %v3704, %v3691
      %v3762 = vmul.f32 %v3704, %v3692
      %v3763 = vmul.f32 %v3708, %v3691
      %v3764 = vmul.f32 %v3708, %v3692
      %v3765 = vmul.f32 %v3712, %v3691
      %v3766 = vmul.f32 %v3712, %v3692
      %v3767 = vmul.f32 %v3716, %v3691
      %v3768 = vmul.f32 %v3716, %v3692
      %v3769 = vmul.f32 %v3720, %v3691
      %v3770 = vmul.f32 %v3720, %v3692
      %v3771 = vmul.f32 %v3724, %v3691
      %v3772 = vmul.f32 %v3724, %v3692
      %v3773 = vmul.f32 %v3728, %v3691
      %v3774 = vmul.f32 %v3728, %v3692
      %v3775 = vmul.f32 %v3732, %v3691
      %v3776 = vmul.f32 %v3732, %v3692
      %v3777 = vmul.f32 %v3736, %v3691
      %v3778 = vmul.f32 %v3736, %v3692
      %v3779 = vmul.f32 %v3740, %v3691
      %v3780 = vmul.f32 %v3740, %v3692
      %v3781 = vmul.f32 %v3744, %v3691
      %v3782 = vmul.f32 %v3744, %v3692
      %v3783 = vmul.f32 %v3748, %v3691
      %v3784 = vmul.f32 %v3748, %v3692
      %v3785 = vmul.f32 %v3752, %v3691
      %v3786 = vmul.f32 %v3752, %v3692
      %v3787 = vmul.f32 %v3756, %v3691
      %v3788 = vmul.f32 %v3756, %v3692
      %v3789 = vadd.f32 %v3659, %v3757
      %v3790 = vadd.f32 %v3660, %v3758
      %v3791 = vadd.f32 %v3661, %v3759
      %v3792 = vadd.f32 %v3662, %v3760
      %v3793 = vadd.f32 %v3663, %v3761
      %v3794 = vadd.f32 %v3664, %v3762
      %v3795 = vadd.f32 %v3665, %v3763
      %v3796 = vadd.f32 %v3666, %v3764
      %v3797 = vadd.f32 %v3667, %v3765
      %v3798 = vadd.f32 %v3668, %v3766
      %v3799 = vadd.f32 %v3669, %v3767
      %v3800 = vadd.f32 %v3670, %v3768
      %v3801 = vadd.f32 %v3671, %v3769
      %v3802 = vadd.f32 %v3672, %v3770
      %v3803 = vadd.f32 %v3673, %v3771
      %v3804 = vadd.f32 %v3674, %v3772
      %v3805 = vadd.f32 %v3675, %v3773
      %v3806 = vadd.f32 %v3676, %v3774
      %v3807 = vadd.f32 %v3677, %v3775
      %v3808 = vadd.f32 %v3678, %v3776
      %v3809 = vadd.f32 %v3679, %v3777
      %v3810 = vadd.f32 %v3680, %v3778
      %v3811 = vadd.f32 %v3681, %v3779
      %v3812 = vadd.f32 %v3682, %v3780
      %v3813 = vadd.f32 %v3683, %v3781
      %v3814 = vadd.f32 %v3684, %v3782
      %v3815 = vadd.f32 %v3685, %v3783
      %v3816 = vadd.f32 %v3686, %v3784
      %v3817 = vadd.f32 %v3687, %v3785
      %v3818 = vadd.f32 %v3688, %v3786
      %v3819 = vadd.f32 %v3689, %v3787
      %v3820 = vadd.f32 %v3690, %v3788
      %v3821 = vld [vmem:[#allocation2 + $0xd0] sm:$0xff]
      %v3822 = vld [vmem:[#allocation2 + $0xd8] sm:$0xff]
      %v3823 = vlaneseq
      %v3824 = vshrl.u32 %v3823, 7
      %v3825 = vsub.s32 5, %v3824
      %v3826 = vrot.slane %v3155, %v3825
      %v3827 = vlaneseq
      %v3828 = vshrl.u32 %v3827, 7
      %v3829 = vsub.s32 5, %v3828
      %v3830 = vrot.slane %v3156, %v3829
      %v3831 = vlaneseq
      %v3832 = vshrl.u32 %v3831, 7
      %v3833 = vsub.s32 5, %v3832
      %v3834 = vrot.slane %v3157, %v3833
      %v3835 = vlaneseq
      %v3836 = vshrl.u32 %v3835, 7
      %v3837 = vsub.s32 5, %v3836
      %v3838 = vrot.slane %v3158, %v3837
      %v3839 = vlaneseq
      %v3840 = vshrl.u32 %v3839, 7
      %v3841 = vsub.s32 5, %v3840
      %v3842 = vrot.slane %v3159, %v3841
      %v3843 = vlaneseq
      %v3844 = vshrl.u32 %v3843, 7
      %v3845 = vsub.s32 5, %v3844
      %v3846 = vrot.slane %v3160, %v3845
      %v3847 = vlaneseq
      %v3848 = vshrl.u32 %v3847, 7
      %v3849 = vsub.s32 5, %v3848
      %v3850 = vrot.slane %v3161, %v3849
      %v3851 = vlaneseq
      %v3852 = vshrl.u32 %v3851, 7
      %v3853 = vsub.s32 5, %v3852
      %v3854 = vrot.slane %v3162, %v3853
      %v3855 = vlaneseq
      %v3856 = vshrl.u32 %v3855, 7
      %v3857 = vsub.s32 5, %v3856
      %v3858 = vrot.slane %v3163, %v3857
      %v3859 = vlaneseq
      %v3860 = vshrl.u32 %v3859, 7
      %v3861 = vsub.s32 5, %v3860
      %v3862 = vrot.slane %v3164, %v3861
      %v3863 = vlaneseq
      %v3864 = vshrl.u32 %v3863, 7
      %v3865 = vsub.s32 5, %v3864
      %v3866 = vrot.slane %v3165, %v3865
      %v3867 = vlaneseq
      %v3868 = vshrl.u32 %v3867, 7
      %v3869 = vsub.s32 5, %v3868
      %v3870 = vrot.slane %v3166, %v3869
      %v3871 = vlaneseq
      %v3872 = vshrl.u32 %v3871, 7
      %v3873 = vsub.s32 5, %v3872
      %v3874 = vrot.slane %v3167, %v3873
      %v3875 = vlaneseq
      %v3876 = vshrl.u32 %v3875, 7
      %v3877 = vsub.s32 5, %v3876
      %v3878 = vrot.slane %v3168, %v3877
      %v3879 = vlaneseq
      %v3880 = vshrl.u32 %v3879, 7
      %v3881 = vsub.s32 5, %v3880
      %v3882 = vrot.slane %v3169, %v3881
      %v3883 = vlaneseq
      %v3884 = vshrl.u32 %v3883, 7
      %v3885 = vsub.s32 5, %v3884
      %v3886 = vrot.slane %v3170, %v3885
      %v3887 = vmul.f32 %v3826, %v3821
      %v3888 = vmul.f32 %v3826, %v3822
      %v3889 = vmul.f32 %v3830, %v3821
      %v3890 = vmul.f32 %v3830, %v3822
      %v3891 = vmul.f32 %v3834, %v3821
      %v3892 = vmul.f32 %v3834, %v3822
      %v3893 = vmul.f32 %v3838, %v3821
      %v3894 = vmul.f32 %v3838, %v3822
      %v3895 = vmul.f32 %v3842, %v3821
      %v3896 = vmul.f32 %v3842, %v3822
      %v3897 = vmul.f32 %v3846, %v3821
      %v3898 = vmul.f32 %v3846, %v3822
      %v3899 = vmul.f32 %v3850, %v3821
      %v3900 = vmul.f32 %v3850, %v3822
      %v3901 = vmul.f32 %v3854, %v3821
      %v3902 = vmul.f32 %v3854, %v3822
      %v3903 = vmul.f32 %v3858, %v3821
      %v3904 = vmul.f32 %v3858, %v3822
      %v3905 = vmul.f32 %v3862, %v3821
      %v3906 = vmul.f32 %v3862, %v3822
      %v3907 = vmul.f32 %v3866, %v3821
      %v3908 = vmul.f32 %v3866, %v3822
      %v3909 = vmul.f32 %v3870, %v3821
      %v3910 = vmul.f32 %v3870, %v3822
      %v3911 = vmul.f32 %v3874, %v3821
      %v3912 = vmul.f32 %v3874, %v3822
      %v3913 = vmul.f32 %v3878, %v3821
      %v3914 = vmul.f32 %v3878, %v3822
      %v3915 = vmul.f32 %v3882, %v3821
      %v3916 = vmul.f32 %v3882, %v3822
      %v3917 = vmul.f32 %v3886, %v3821
      %v3918 = vmul.f32 %v3886, %v3822
      %v3919 = vadd.f32 %v3789, %v3887
      %v3920 = vadd.f32 %v3790, %v3888
      %v3921 = vadd.f32 %v3791, %v3889
      %v3922 = vadd.f32 %v3792, %v3890
      %v3923 = vadd.f32 %v3793, %v3891
      %v3924 = vadd.f32 %v3794, %v3892
      %v3925 = vadd.f32 %v3795, %v3893
      %v3926 = vadd.f32 %v3796, %v3894
      %v3927 = vadd.f32 %v3797, %v3895
      %v3928 = vadd.f32 %v3798, %v3896
      %v3929 = vadd.f32 %v3799, %v3897
      %v3930 = vadd.f32 %v3800, %v3898
      %v3931 = vadd.f32 %v3801, %v3899
      %v3932 = vadd.f32 %v3802, %v3900
      %v3933 = vadd.f32 %v3803, %v3901
      %v3934 = vadd.f32 %v3804, %v3902
      %v3935 = vadd.f32 %v3805, %v3903
      %v3936 = vadd.f32 %v3806, %v3904
      %v3937 = vadd.f32 %v3807, %v3905
      %v3938 = vadd.f32 %v3808, %v3906
      %v3939 = vadd.f32 %v3809, %v3907
      %v3940 = vadd.f32 %v3810, %v3908
      %v3941 = vadd.f32 %v3811, %v3909
      %v3942 = vadd.f32 %v3812, %v3910
      %v3943 = vadd.f32 %v3813, %v3911
      %v3944 = vadd.f32 %v3814, %v3912
      %v3945 = vadd.f32 %v3815, %v3913
      %v3946 = vadd.f32 %v3816, %v3914
      %v3947 = vadd.f32 %v3817, %v3915
      %v3948 = vadd.f32 %v3818, %v3916
      %v3949 = vadd.f32 %v3819, %v3917
      %v3950 = vadd.f32 %v3820, %v3918
      %v3951 = vld [vmem:[#allocation2 + $0xe0] sm:$0xff]
      %v3952 = vld [vmem:[#allocation2 + $0xe8] sm:$0xff]
      %v3953 = vlaneseq
      %v3954 = vshrl.u32 %v3953, 7
      %v3955 = vsub.s32 6, %v3954
      %v3956 = vrot.slane %v3155, %v3955
      %v3957 = vlaneseq
      %v3958 = vshrl.u32 %v3957, 7
      %v3959 = vsub.s32 6, %v3958
      %v3960 = vrot.slane %v3156, %v3959
      %v3961 = vlaneseq
      %v3962 = vshrl.u32 %v3961, 7
      %v3963 = vsub.s32 6, %v3962
      %v3964 = vrot.slane %v3157, %v3963
      %v3965 = vlaneseq
      %v3966 = vshrl.u32 %v3965, 7
      %v3967 = vsub.s32 6, %v3966
      %v3968 = vrot.slane %v3158, %v3967
      %v3969 = vlaneseq
      %v3970 = vshrl.u32 %v3969, 7
      %v3971 = vsub.s32 6, %v3970
      %v3972 = vrot.slane %v3159, %v3971
      %v3973 = vlaneseq
      %v3974 = vshrl.u32 %v3973, 7
      %v3975 = vsub.s32 6, %v3974
      %v3976 = vrot.slane %v3160, %v3975
      %v3977 = vlaneseq
      %v3978 = vshrl.u32 %v3977, 7
      %v3979 = vsub.s32 6, %v3978
      %v3980 = vrot.slane %v3161, %v3979
      %v3981 = vlaneseq
      %v3982 = vshrl.u32 %v3981, 7
      %v3983 = vsub.s32 6, %v3982
      %v3984 = vrot.slane %v3162, %v3983
      %v3985 = vlaneseq
      %v3986 = vshrl.u32 %v3985, 7
      %v3987 = vsub.s32 6, %v3986
      %v3988 = vrot.slane %v3163, %v3987
      %v3989 = vlaneseq
      %v3990 = vshrl.u32 %v3989, 7
      %v3991 = vsub.s32 6, %v3990
      %v3992 = vrot.slane %v3164, %v3991
      %v3993 = vlaneseq
      %v3994 = vshrl.u32 %v3993, 7
      %v3995 = vsub.s32 6, %v3994
      %v3996 = vrot.slane %v3165, %v3995
      %v3997 = vlaneseq
      %v3998 = vshrl.u32 %v3997, 7
      %v3999 = vsub.s32 6, %v3998
      %v4000 = vrot.slane %v3166, %v3999
      %v4001 = vlaneseq
      %v4002 = vshrl.u32 %v4001, 7
      %v4003 = vsub.s32 6, %v4002
      %v4004 = vrot.slane %v3167, %v4003
      %v4005 = vlaneseq
      %v4006 = vshrl.u32 %v4005, 7
      %v4007 = vsub.s32 6, %v4006
      %v4008 = vrot.slane %v3168, %v4007
      %v4009 = vlaneseq
      %v4010 = vshrl.u32 %v4009, 7
      %v4011 = vsub.s32 6, %v4010
      %v4012 = vrot.slane %v3169, %v4011
      %v4013 = vlaneseq
      %v4014 = vshrl.u32 %v4013, 7
      %v4015 = vsub.s32 6, %v4014
      %v4016 = vrot.slane %v3170, %v4015
      %v4017 = vmul.f32 %v3956, %v3951
      %v4018 = vmul.f32 %v3956, %v3952
      %v4019 = vmul.f32 %v3960, %v3951
      %v4020 = vmul.f32 %v3960, %v3952
      %v4021 = vmul.f32 %v3964, %v3951
      %v4022 = vmul.f32 %v3964, %v3952
      %v4023 = vmul.f32 %v3968, %v3951
      %v4024 = vmul.f32 %v3968, %v3952
      %v4025 = vmul.f32 %v3972, %v3951
      %v4026 = vmul.f32 %v3972, %v3952
      %v4027 = vmul.f32 %v3976, %v3951
      %v4028 = vmul.f32 %v3976, %v3952
      %v4029 = vmul.f32 %v3980, %v3951
      %v4030 = vmul.f32 %v3980, %v3952
      %v4031 = vmul.f32 %v3984, %v3951
      %v4032 = vmul.f32 %v3984, %v3952
      %v4033 = vmul.f32 %v3988, %v3951
      %v4034 = vmul.f32 %v3988, %v3952
      %v4035 = vmul.f32 %v3992, %v3951
      %v4036 = vmul.f32 %v3992, %v3952
      %v4037 = vmul.f32 %v3996, %v3951
      %v4038 = vmul.f32 %v3996, %v3952
      %v4039 = vmul.f32 %v4000, %v3951
      %v4040 = vmul.f32 %v4000, %v3952
      %v4041 = vmul.f32 %v4004, %v3951
      %v4042 = vmul.f32 %v4004, %v3952
      %v4043 = vmul.f32 %v4008, %v3951
      %v4044 = vmul.f32 %v4008, %v3952
      %v4045 = vmul.f32 %v4012, %v3951
      %v4046 = vmul.f32 %v4012, %v3952
      %v4047 = vmul.f32 %v4016, %v3951
      %v4048 = vmul.f32 %v4016, %v3952
      %v4049 = vadd.f32 %v3919, %v4017
      %v4050 = vadd.f32 %v3920, %v4018
      %v4051 = vadd.f32 %v3921, %v4019
      %v4052 = vadd.f32 %v3922, %v4020
      %v4053 = vadd.f32 %v3923, %v4021
      %v4054 = vadd.f32 %v3924, %v4022
      %v4055 = vadd.f32 %v3925, %v4023
      %v4056 = vadd.f32 %v3926, %v4024
      %v4057 = vadd.f32 %v3927, %v4025
      %v4058 = vadd.f32 %v3928, %v4026
      %v4059 = vadd.f32 %v3929, %v4027
      %v4060 = vadd.f32 %v3930, %v4028
      %v4061 = vadd.f32 %v3931, %v4029
      %v4062 = vadd.f32 %v3932, %v4030
      %v4063 = vadd.f32 %v3933, %v4031
      %v4064 = vadd.f32 %v3934, %v4032
      %v4065 = vadd.f32 %v3935, %v4033
      %v4066 = vadd.f32 %v3936, %v4034
      %v4067 = vadd.f32 %v3937, %v4035
      %v4068 = vadd.f32 %v3938, %v4036
      %v4069 = vadd.f32 %v3939, %v4037
      %v4070 = vadd.f32 %v3940, %v4038
      %v4071 = vadd.f32 %v3941, %v4039
      %v4072 = vadd.f32 %v3942, %v4040
      %v4073 = vadd.f32 %v3943, %v4041
      %v4074 = vadd.f32 %v3944, %v4042
      %v4075 = vadd.f32 %v3945, %v4043
      %v4076 = vadd.f32 %v3946, %v4044
      %v4077 = vadd.f32 %v3947, %v4045
      %v4078 = vadd.f32 %v3948, %v4046
      %v4079 = vadd.f32 %v3949, %v4047
      %v4080 = vadd.f32 %v3950, %v4048
      %vm4081 = vcmask 523264
      %4082 = vst.msk [vmem:[%s413] sm:$0xff] %vm4081, %v4049
      %4083 = vst.msk [vmem:[%s413 + $0x8] sm:$0xff] %vm4081, %v4050
      %4084 = vst.msk [vmem:[%s413 + $0x10] sm:$0xff] %vm4081, %v4051
      %4085 = vst.msk [vmem:[%s413 + $0x18] sm:$0xff] %vm4081, %v4052
      %4086 = vst.msk [vmem:[%s413 + $0x20] sm:$0xff] %vm4081, %v4053
      %4087 = vst.msk [vmem:[%s413 + $0x28] sm:$0xff] %vm4081, %v4054
      %4088 = vst.msk [vmem:[%s413 + $0x30] sm:$0xff] %vm4081, %v4055
      %4089 = vst.msk [vmem:[%s413 + $0x38] sm:$0xff] %vm4081, %v4056
      %4090 = vst.msk [vmem:[%s413 + $0x40] sm:$0xff] %vm4081, %v4057
      %4091 = vst.msk [vmem:[%s413 + $0x48] sm:$0xff] %vm4081, %v4058
      %4092 = vst.msk [vmem:[%s413 + $0x50] sm:$0xff] %vm4081, %v4059
      %4093 = vst.msk [vmem:[%s413 + $0x58] sm:$0xff] %vm4081, %v4060
      %4094 = vst.msk [vmem:[%s413 + $0x60] sm:$0xff] %vm4081, %v4061
      %4095 = vst.msk [vmem:[%s413 + $0x68] sm:$0xff] %vm4081, %v4062
      %4096 = vst.msk [vmem:[%s413 + $0x70] sm:$0xff] %vm4081, %v4063
      %4097 = vst.msk [vmem:[%s413 + $0x78] sm:$0xff] %vm4081, %v4064
      %4098 = vst.msk [vmem:[%s413 + $0x80] sm:$0xff] %vm4081, %v4065
      %4099 = vst.msk [vmem:[%s413 + $0x88] sm:$0xff] %vm4081, %v4066
      %4100 = vst.msk [vmem:[%s413 + $0x90] sm:$0xff] %vm4081, %v4067
      %4101 = vst.msk [vmem:[%s413 + $0x98] sm:$0xff] %vm4081, %v4068
      %4102 = vst.msk [vmem:[%s413 + $0xa0] sm:$0xff] %vm4081, %v4069
      %4103 = vst.msk [vmem:[%s413 + $0xa8] sm:$0xff] %vm4081, %v4070
      %4104 = vst.msk [vmem:[%s413 + $0xb0] sm:$0xff] %vm4081, %v4071
      %4105 = vst.msk [vmem:[%s413 + $0xb8] sm:$0xff] %vm4081, %v4072
      %4106 = vst.msk [vmem:[%s413 + $0xc0] sm:$0xff] %vm4081, %v4073
      %4107 = vst.msk [vmem:[%s413 + $0xc8] sm:$0xff] %vm4081, %v4074
      %4108 = vst.msk [vmem:[%s413 + $0xd0] sm:$0xff] %vm4081, %v4075
      %4109 = vst.msk [vmem:[%s413 + $0xd8] sm:$0xff] %vm4081, %v4076
      %4110 = vst.msk [vmem:[%s413 + $0xe0] sm:$0xff] %vm4081, %v4077
      %4111 = vst.msk [vmem:[%s413 + $0xe8] sm:$0xff] %vm4081, %v4078
      %4112 = vst.msk [vmem:[%s413 + $0xf0] sm:$0xff] %vm4081, %v4079
      %4113 = vst.msk [vmem:[%s413 + $0xf8] sm:$0xff] %vm4081, %v4080
      %s4114 = smul.u32 16, %s23
      %p4115 = scmp.lt.s32.totalorder %s22, 1
      %s4116 = scalar_select %p4115, %s22, 1
      %p4117 = scmp.lt.s32.totalorder %s4114, 15
      %s4118 = scalar_select %p4117, %s4114, 15
      %s4119 = smul.addr %s4118, 2
      %s4120 = smul.addr %s4116, 32
      %s4121 = sadd.s32 %s4119, %s4120
      %s4122 = smul.addr %s4121, 8
      %s4123 = scalar_lea.vmem %s7, %s4122
      // Predicated region
      $region53: #{ctrgc_forward.3} parent=47 // pred_check
        %p4124 = pneg %p223
      $region54: #{ctrgc_forward.3} parent=47 // pred_check_branch
        %4126 = sbr.rel (%p4124) target = $region56
      $region55: #{ctrgc_forward.3} parent=47 // pred_region
        %s4127 = smul.u32 16, %s23
      $region56: #{ctrgc_forward.3} parent=47 // pred_fallthru
        _
    $region48: #{ctrgc_forward.3} parent=5 // pred_fallthru
      _
    %p4128 = scmp.le.s32.totalorder 2, %s13
    // Predicated region
    $region57: #{ctrgc_forward.3} parent=5 // pred_check
      %p4129 = pneg %p4128
    $region58: #{ctrgc_forward.3} parent=5 // pred_check_branch
      %4131 = sbr.rel (%p4129) target = $region60
    $region59: #{ctrgc_forward.3} parent=5 // pred_region
      %s4132 = ssub.s32 %s13, 2
      // Predicated region
      $region61: #{ctrgc_forward.3} parent=59 // pred_check
        %p4133 = pneg %p229
      $region62: #{ctrgc_forward.3} parent=59 // pred_check_branch
        %4135 = sbr.rel (%p4133) target = $region64
      $region63: #{ctrgc_forward.3} parent=59 // pred_region
        %s4136 = smul.u32 16, %s25
        %p4137 = scmp.lt.s32.totalorder %s24, 1
        %s4138 = scalar_select %p4137, %s24, 1
        %p4139 = scmp.lt.s32.totalorder %s4136, 15
        %s4140 = scalar_select %p4139, %s4136, 15
        %s4141 = smul.addr %s4140, 2
        %s4142 = smul.addr %s4138, 32
        %s4143 = sadd.s32 %s4141, %s4142
        %s4144 = smul.addr %s4143, 8
        %s4145 = scalar_lea.vmem %s7, %s4144
      $region64: #{ctrgc_forward.3} parent=59 // pred_fallthru
        _
    $region60: #{ctrgc_forward.3} parent=5 // pred_fallthru
      _
  $region6: #{ctrgc_forward.3} parent=0 // loop_footer
    %s17 = sadd.s32 1, %s13
  $region7: #{ctrgc_forward.3} parent=0 // loop_footer_branch
    %12 = sbr.rel target = $region3
  $region8: #{ctrgc_forward.3} parent=0 // loop_exit
    _

</llo_original>
